<compile_context>
chip_gen: v7x
topology: tpu7x:2x2x1
jax: 0.10.0
libtpu: 0.0.40
codegen_flags: <defaults>
</compile_context>

<pallas_src>
import functools
import math
import random

import jax
import jax.numpy as jnp
from jax.experimental import pallas as pl
from jax.experimental.pallas import tpu as pltpu

RELU6_MAX = 6.0
LANE = 128


def _round_up(v, m):
    return (v + m - 1) // m * m


# ----------------------------------------------------------------------------
# Fused MBConv kernel: 1x1 expand -> kxk depthwise -> 1x1 project (+residual)
# ----------------------------------------------------------------------------
def _mbconv_fused_kernel(x_ref, wexp_ref, bexp_ref, wdw_ref, bdw_ref, wpj_ref, bpj_ref,
                         o_ref, hid_ref, *, k, p, th, w_out, h_img, use_res):
    thp, w_pad, cin_pad = x_ref.shape          # (th+2p, round_up(W+2p, 8), Cin_pad)
    hid_pad = hid_ref.shape[-1]
    cout_pad = o_ref.shape[-1]
    i = pl.program_id(1)                       # H-tile index

    # ---- 1x1 expand (MXU, bf16 x bf16 -> f32 accumulate) + bias + ReLU6 -------------
    xb = x_ref[...]                                                # f32 block
    x2d = xb.reshape(thp * w_pad, cin_pad).astype(jnp.bfloat16)    # view-reshape, then cast
    h = jnp.dot(x2d, wexp_ref[...], preferred_element_type=jnp.float32)
    h = jnp.clip(h + bexp_ref[...], 0.0, RELU6_MAX)
    h3 = h.reshape(thp, w_pad, hid_pad)

    # Zero the spatial halo positions: the reference zero-pads the *post-activation*
    # hidden tensor, while halo rows/cols here were produced from zero input
    # (-> clip(bias) != 0), so mask them explicitly.
    row = jax.lax.broadcasted_iota(jnp.int32, (thp, w_pad), 0) + i * th
    col = jax.lax.broadcasted_iota(jnp.int32, (thp, w_pad), 1)
    valid = (row >= p) & (row < p + h_img) & (col >= p) & (col < p + w_out)
    h3 = h3 * valid.astype(jnp.float32)[:, :, None]
    hid_ref[...] = h3                                              # hidden stays in VMEM

    # ---- kxk depthwise (VPU) + bias + ReLU6 -----------------------------------------
    # H-offset slices are cheap (major-dim base offset); W-offset slices are sublane shifts.
    # TODO(synk): for large W, route the W shifts through pltpu.roll (XLU) instead of
    #             k*k sublane-offset loads.
    acc = jnp.zeros((th, w_out, hid_pad), jnp.float32)
    for dh in range(k):
        for dw in range(k):
            tap = wdw_ref[dh, dw, :].reshape(1, 1, hid_pad)
            acc = acc + hid_ref[dh:dh + th, dw:dw + w_out, :] * tap
    g = jnp.clip(acc + bdw_ref[...], 0.0, RELU6_MAX)

    # ---- 1x1 project (MXU) + bias (+ residual) ---------------------------------------
    g2d = g.reshape(th * w_out, hid_pad).astype(jnp.bfloat16)
    y = jnp.dot(g2d, wpj_ref[...], preferred_element_type=jnp.float32) + bpj_ref[...]
    y3 = y.reshape(th, w_out, cout_pad)
    if use_res:
        y3 = y3 + xb[p:p + th, p:p + w_out, :]
    o_ref[...] = y3.astype(o_ref.dtype)


# ----------------------------------------------------------------------------
# Candidate op: Mobile inverted bottleneck (BN folded into weights, eval mode)
# ----------------------------------------------------------------------------
class MBConvPallas:
    def __init__(self, key, in_ch, out_ch, kernel_size, expand_ratio, stride=1, tile_h=8):
        assert stride == 1  # TODO(synk): strided depthwise (common in MBConv spaces) would
        #                     need a strided output index_map; not required for this config.
        self.k = kernel_size
        self.in_ch, self.out_ch = in_ch, out_ch
        self.hidden = in_ch * expand_ratio
        self.use_res = (stride == 1 and in_ch == out_ch)
        self.tile_h = tile_h
        self.cin_pad = _round_up(in_ch, LANE)
        self.hid_pad = _round_up(self.hidden, LANE)
        self.cout_pad = _round_up(out_ch, LANE)

        ks = jax.random.split(key, 9)
        f = jnp.float32
        w_exp = jax.random.normal(ks[0], (in_ch, self.hidden), f) / math.sqrt(in_ch)
        s_exp = 1.0 + 0.05 * jax.random.normal(ks[1], (self.hidden,), f)
        b_exp = 0.05 * jax.random.normal(ks[2], (self.hidden,), f)
        w_dw = jax.random.normal(ks[3], (self.k, self.k, self.hidden), f) / self.k
        s_dw = 1.0 + 0.05 * jax.random.normal(ks[4], (self.hidden,), f)
        b_dw = 0.05 * jax.random.normal(ks[5], (self.hidden,), f)
        w_proj = jax.random.normal(ks[6], (self.hidden, out_ch), f) / math.sqrt(self.hidden)
        s_proj = 1.0 + 0.05 * jax.random.normal(ks[7], (out_ch,), f)
        b_proj = 0.05 * jax.random.normal(ks[8], (out_ch,), f)

        def padto(a, shape):
            return jnp.pad(a, [(0, t - s) for s, t in zip(a.shape, shape)])

        # Fold BN scale into conv weights (x@(w*s) + b); pad channels to lane width;
        # cast the MXU operands to bf16 once at init.
        self.w_exp_p = padto(w_exp * s_exp[None, :], (self.cin_pad, self.hid_pad)).astype(jnp.bfloat16)
        self.b_exp_p = padto(b_exp[None, :], (1, self.hid_pad))
        self.w_dw_p = padto(w_dw * s_dw[None, None, :], (self.k, self.k, self.hid_pad))
        self.b_dw_p = padto(b_dw[None, None, :], (1, 1, self.hid_pad))
        self.w_proj_p = padto(w_proj * s_proj[None, :], (self.hid_pad, self.cout_pad)).astype(jnp.bfloat16)
        self.b_proj_p = padto(b_proj[None, :], (1, self.cout_pad))

    def __call__(self, x_nchw):
        # TODO(synk): in a full network, keep NHWC end-to-end and do this transpose once
        #             at the model boundary rather than per layer.
        N, C, H, W = x_nchw.shape
        p = self.k // 2
        th = self.tile_h if (self.tile_h and H % self.tile_h == 0 and self.tile_h <= H) else H
        n_h = H // th
        thp = th + 2 * p
        w_halo = _round_up(W + 2 * p, 8)       # pad W halo up to a sublane multiple

        # NCHW -> NHWC, pad channels to lane width, zero-pad the spatial halo once
        # (small input tensor; the big `hidden` tensor is never padded/materialized).
        x = jnp.transpose(x_nchw, (0, 2, 3, 1))
        x = jnp.pad(x, ((0, 0), (p, p), (p, w_halo - W - p), (0, self.cin_pad - C)))
        # Overlapping H tiles so the fused kernel uses plain Blocked BlockSpecs.
        xt = jnp.stack([x[:, i * th: i * th + thp] for i in range(n_h)], axis=1)

        flops = (2 * N * n_h * thp * w_halo * self.cin_pad * self.hid_pad
                 + 2 * N * H * W * self.k * self.k * self.hid_pad
                 + 2 * N * H * W * self.hid_pad * self.cout_pad)
        bytes_accessed = (xt.size * 4 + N * H * W * self.cout_pad * 4
                          + self.w_exp_p.size * 2 + self.w_proj_p.size * 2
                          + self.w_dw_p.size * 4)

        out = pl.pallas_call(
            functools.partial(_mbconv_fused_kernel, k=self.k, p=p, th=th,
                              w_out=W, h_img=H, use_res=self.use_res),
            out_shape=jax.ShapeDtypeStruct((N, H, W, self.cout_pad), jnp.float32),
            grid=(N, n_h),
            in_specs=[
                pl.BlockSpec((None, None, thp, w_halo, self.cin_pad),
                             lambda n, i: (n, i, 0, 0, 0)),
                # weights / biases: constant index_map -> fetched once, VMEM-resident
                pl.BlockSpec((self.cin_pad, self.hid_pad), lambda n, i: (0, 0)),
                pl.BlockSpec((1, self.hid_pad), lambda n, i: (0, 0)),
                pl.BlockSpec((self.k, self.k, self.hid_pad), lambda n, i: (0, 0, 0)),
                pl.BlockSpec((1, 1, self.hid_pad), lambda n, i: (0, 0, 0)),
                pl.BlockSpec((self.hid_pad, self.cout_pad), lambda n, i: (0, 0)),
                pl.BlockSpec((1, self.cout_pad), lambda n, i: (0, 0)),
            ],
            out_specs=pl.BlockSpec((None, th, W, self.cout_pad), lambda n, i: (n, i, 0, 0)),
            scratch_shapes=[pltpu.VMEM((thp, w_halo, self.hid_pad), jnp.float32)],
            compiler_params=pltpu.CompilerParams(
                dimension_semantics=("parallel", "parallel"),
                vmem_limit_bytes=32 * 1024 * 1024),
            cost_estimate=pl.CostEstimate(flops=int(flops), transcendentals=0,
                                          bytes_accessed=int(bytes_accessed)),
        )(xt, self.w_exp_p, self.b_exp_p, self.w_dw_p, self.b_dw_p,
          self.w_proj_p, self.b_proj_p)

        y = out[..., :self.out_ch]
        return jnp.transpose(y, (0, 3, 1, 2))   # NHWC -> NCHW


def identity_op(x):
    return x


# ----------------------------------------------------------------------------
# _MbMixLayer equivalent (op-selection semantics preserved)
# ----------------------------------------------------------------------------
class MbMixLayerPallas:
    def __init__(self, ops, **metainfo):
        self._op_fns = dict(ops)
        self.ops = list(ops.keys())
        self.metainfo = metainfo
        # single-host: mirrors the torch.distributed-not-initialized branch
        self.world_rank = 0
        self.world_size = 1
        self.fixed = None

    def _sample(self):
        chosen = None
        for i in range(self.world_size):
            tmp = random.choice(self.ops)
            if i == self.world_rank:
                chosen = tmp
        assert chosen is not None
        return chosen

    def __call__(self, x):
        if self.fixed is not None:
            return self._op_fns[self.fixed](x)
        return self._op_fns[self._sample()](x)

    def summary(self):
        return 'MbMixLayer(' + ', '.join(
            f'{k}={v}' for k, v in {'ops': self.ops, **self.metainfo}.items()) + ')'


# ----------------------------------------------------------------------------
# Pure-JAX reference (mirrors the kernel's bf16-matmul / f32-epilogue policy)
# ----------------------------------------------------------------------------
def mbconv_ref(op, x_nchw):
    N, C, H, W = x_nchw.shape
    p = op.k // 2
    x = jnp.transpose(x_nchw, (0, 2, 3, 1))
    xc = jnp.pad(x, ((0, 0), (0, 0), (0, 0), (0, op.cin_pad - C)))
    h = jnp.einsum('nhwc,cd->nhwd', xc.astype(jnp.bfloat16), op.w_exp_p,
                   preferred_element_type=jnp.float32)
    h = jnp.clip(h + op.b_exp_p.reshape(1, 1, 1, -1), 0.0, RELU6_MAX)
    hp = jnp.pad(h, ((0, 0), (p, p), (p, p), (0, 0)))
    wdw = op.w_dw_p.reshape(op.k, op.k, 1, op.hid_pad)
    g = jax.lax.conv_general_dilated(hp, wdw, window_strides=(1, 1), padding='VALID',
                                     dimension_numbers=('NHWC', 'HWIO', 'NHWC'),
                                     feature_group_count=op.hid_pad)
    g = jnp.clip(g + op.b_dw_p.reshape(1, 1, 1, -1), 0.0, RELU6_MAX)
    y = jnp.einsum('nhwd,dc->nhwc', g.astype(jnp.bfloat16), op.w_proj_p,
                   preferred_element_type=jnp.float32)
    y = y + op.b_proj_p.reshape(1, 1, 1, -1)
    if op.use_res:
        y = y + xc
    return jnp.transpose(y[..., :op.out_ch], (0, 3, 1, 2))


if __name__ == "__main__":
    random.seed(0)
    key = jax.random.PRNGKey(0)
    kx, kp1, kp2 = jax.random.split(key, 3)

    N, C, H, W = 2, 4, 16, 16
    x = jax.random.normal(kx, (N, C, H, W), jnp.float32)

    ops = {
        "mbconv_k3_e3": MBConvPallas(kp1, C, C, kernel_size=3, expand_ratio=3, tile_h=8),
        "mbconv_k5_e6": MBConvPallas(kp2, C, C, kernel_size=5, expand_ratio=6, tile_h=8),
        "identity": identity_op,
    }
    layer = MbMixLayerPallas(ops, in_channels=C, out_channels=C, stride=1)

    # fixed path (deterministic): run each fused MBConv Pallas op and check vs reference
    for name in ("mbconv_k5_e6", "mbconv_k3_e3"):
        layer.fixed = name
        out = jax.block_until_ready(layer(x))
        assert out.shape == (N, C, H, W) and out.dtype == jnp.float32
        ref = mbconv_ref(ops[name], x)
        err = float(jnp.max(jnp.abs(out - ref)))
        # tolerance covers the shared bf16 matmul policy (accumulation order / rounding
        # points differ slightly between the Pallas kernel and the XLA reference)
        assert err < 5e-2, f"{name} mismatch: {err}"

    # sampled path (mirrors _MbMixLayer._sample); identity may be chosen — still valid
    layer.fixed = None
    out2 = jax.block_until_ready(layer(x))
    assert out2.shape == (N, C, H, W)

    print("KERNEL_OK")
</pallas_src>

<mosaic_0001>
module attributes {stable_mosaic.version = 11 : i64} {
  func.func @_mbconv_fused_kernel(%arg0: i32, %arg1: i32, %arg2: memref<1x1x12x24x128xf32, #tpu.memory_space<vmem>>, %arg3: memref<128x128xbf16, #tpu.memory_space<vmem>>, %arg4: memref<1x128xf32, #tpu.memory_space<vmem>>, %arg5: memref<5x5x128xf32, #tpu.memory_space<vmem>>, %arg6: memref<1x1x128xf32, #tpu.memory_space<vmem>>, %arg7: memref<128x128xbf16, #tpu.memory_space<vmem>>, %arg8: memref<1x128xf32, #tpu.memory_space<vmem>>, %arg9: memref<1x8x16x128xf32, #tpu.memory_space<vmem>>, %arg10: memref<12x24x128xf32, #tpu.memory_space<vmem>>) attributes {dimension_semantics = [#tpu.dimension_semantics<parallel>, #tpu.dimension_semantics<parallel>], iteration_bounds = array<i64: 2, 2>, scalar_prefetch = 0 : i64, scratch_operands = 1 : i64, tpu.core_type = #tpu.core_type<tc>, window_params = [{transform_indices = @transform_0, window_bounds = array<i64: 1, 1, 12, 24, 128>}, {pipeline_mode = #tpu.pipeline_mode<synchronous>, transform_indices = @transform_1, window_bounds = array<i64: 128, 128>}, {pipeline_mode = #tpu.pipeline_mode<synchronous>, transform_indices = @transform_2, window_bounds = array<i64: 1, 128>}, {pipeline_mode = #tpu.pipeline_mode<synchronous>, transform_indices = @transform_3, window_bounds = array<i64: 5, 5, 128>}, {pipeline_mode = #tpu.pipeline_mode<synchronous>, transform_indices = @transform_4, window_bounds = array<i64: 1, 1, 128>}, {pipeline_mode = #tpu.pipeline_mode<synchronous>, transform_indices = @transform_5, window_bounds = array<i64: 128, 128>}, {pipeline_mode = #tpu.pipeline_mode<synchronous>, transform_indices = @transform_6, window_bounds = array<i64: 1, 128>}, {transform_indices = @transform_7, window_bounds = array<i64: 1, 8, 16, 128>}]} {
    %c0 = arith.constant 0 : index
    %c0_0 = arith.constant 0 : index
    %c0_1 = arith.constant 0 : index
    %c0_2 = arith.constant 0 : index
    %c0_3 = arith.constant 0 : index
    %0 = vector.load %arg2[%c0, %c0_0, %c0_1, %c0_2, %c0_3] : memref<1x1x12x24x128xf32, #tpu.memory_space<vmem>>, vector<1x1x12x24x128xf32>
    %1 = vector.shape_cast %0 : vector<1x1x12x24x128xf32> to vector<12x24x128xf32>
    %2 = vector.shape_cast %1 : vector<12x24x128xf32> to vector<288x128xf32>
    %3 = arith.truncf %2 : vector<288x128xf32> to vector<288x128xbf16>
    %c0_4 = arith.constant 0 : index
    %c0_5 = arith.constant 0 : index
    %4 = vector.load %arg3[%c0_4, %c0_5] : memref<128x128xbf16, #tpu.memory_space<vmem>>, vector<128x128xbf16>
    %cst = arith.constant dense<0.000000e+00> : vector<288x128xf32>
    %5 = tpu.matmul %3, %4, %cst {dimension_numbers = #tpu.dot_dimension_numbers<[1], [0], [0], [1], [0, 0, 1, 1], [], []>} : vector<288x128xbf16>, vector<128x128xbf16>, vector<288x128xf32> -> vector<288x128xf32>
    %c0_6 = arith.constant 0 : index
    %c0_7 = arith.constant 0 : index
    %6 = vector.load %arg4[%c0_6, %c0_7] : memref<1x128xf32, #tpu.memory_space<vmem>>, vector<1x128xf32>
    %7 = vector.broadcast %6 : vector<1x128xf32> to vector<288x128xf32>
    %8 = arith.addf %5, %7 : vector<288x128xf32>
    %cst_8 = arith.constant 0.000000e+00 : f32
    %cst_9 = arith.constant 6.000000e+00 : f32
    %9 = vector.broadcast %cst_8 : f32 to vector<288x128xf32>
    %10 = arith.maximumf %9, %8 : vector<288x128xf32>
    %11 = vector.broadcast %cst_9 : f32 to vector<288x128xf32>
    %12 = arith.minimumf %11, %10 : vector<288x128xf32>
    %13 = vector.shape_cast %12 : vector<288x128xf32> to vector<12x24x128xf32>
    %14 = tpu.iota {dimensions = array<i32: 0>} : vector<12x24xi32>
    %c8_i32 = arith.constant 8 : i32
    %15 = arith.muli %arg1, %c8_i32 : i32
    %16 = vector.broadcast %15 : i32 to vector<12x24xi32>
    %17 = arith.addi %14, %16 : vector<12x24xi32>
    %18 = tpu.iota {dimensions = array<i32: 1>} : vector<12x24xi32>
    %c2_i32 = arith.constant 2 : i32
    %19 = vector.broadcast %c2_i32 : i32 to vector<12x24xi32>
    %20 = arith.cmpi sge, %17, %19 : vector<12x24xi32>
    %c18_i32 = arith.constant 18 : i32
    %21 = vector.broadcast %c18_i32 : i32 to vector<12x24xi32>
    %22 = arith.cmpi slt, %17, %21 : vector<12x24xi32>
    %23 = arith.andi %20, %22 : vector<12x24xi1>
    %c2_i32_10 = arith.constant 2 : i32
    %24 = vector.broadcast %c2_i32_10 : i32 to vector<12x24xi32>
    %25 = arith.cmpi sge, %18, %24 : vector<12x24xi32>
    %26 = arith.andi %23, %25 : vector<12x24xi1>
    %c18_i32_11 = arith.constant 18 : i32
    %27 = vector.broadcast %c18_i32_11 : i32 to vector<12x24xi32>
    %28 = arith.cmpi slt, %18, %27 : vector<12x24xi32>
    %29 = arith.andi %26, %28 : vector<12x24xi1>
    %30 = arith.extui %29 : vector<12x24xi1> to vector<12x24xi32>
    %31 = arith.sitofp %30 : vector<12x24xi32> to vector<12x24xf32>
    %32 = vector.shape_cast %31 : vector<12x24xf32> to vector<12x24x1xf32>
    %33 = vector.broadcast %32 : vector<12x24x1xf32> to vector<12x24x128xf32>
    %34 = arith.mulf %13, %33 : vector<12x24x128xf32>
    %c0_12 = arith.constant 0 : index
    %c0_13 = arith.constant 0 : index
    %c0_14 = arith.constant 0 : index
    %35 = vector.load %arg10[%c0_12, %c0_13, %c0_14] : memref<12x24x128xf32, #tpu.memory_space<vmem>>, vector<12x24x128xf32>
    tpu.vector_store %arg10[%c0_12, %c0_13, %c0_14], %34 {strides = array<i32>} : memref<12x24x128xf32, #tpu.memory_space<vmem>>, vector<12x24x128xf32>,
    %cst_15 = arith.constant 0.000000e+00 : f32
    %36 = vector.broadcast %cst_15 : f32 to vector<8x16x128xf32>
    %c0_16 = arith.constant 0 : index
    %c0_17 = arith.constant 0 : index
    %c0_18 = arith.constant 0 : index
    %37 = vector.load %arg5[%c0_16, %c0_17, %c0_18] : memref<5x5x128xf32, #tpu.memory_space<vmem>>, vector<1x1x128xf32>
    %38 = vector.shape_cast %37 : vector<1x1x128xf32> to vector<128xf32>
    %39 = vector.shape_cast %38 : vector<128xf32> to vector<1x1x128xf32>
    %c0_19 = arith.constant 0 : index
    %c0_20 = arith.constant 0 : index
    %c0_21 = arith.constant 0 : index
    %40 = vector.load %arg10[%c0_19, %c0_20, %c0_21] : memref<12x24x128xf32, #tpu.memory_space<vmem>>, vector<8x16x128xf32>
    %41 = vector.broadcast %39 : vector<1x1x128xf32> to vector<8x16x128xf32>
    %42 = arith.mulf %40, %41 : vector<8x16x128xf32>
    %43 = arith.addf %36, %42 : vector<8x16x128xf32>
    %c0_22 = arith.constant 0 : index
    %c1 = arith.constant 1 : index
    %c0_23 = arith.constant 0 : index
    %44 = vector.load %arg5[%c0_22, %c1, %c0_23] : memref<5x5x128xf32, #tpu.memory_space<vmem>>, vector<1x1x128xf32>
    %45 = vector.shape_cast %44 : vector<1x1x128xf32> to vector<128xf32>
    %46 = vector.shape_cast %45 : vector<128xf32> to vector<1x1x128xf32>
    %c0_24 = arith.constant 0 : index
    %c1_25 = arith.constant 1 : index
    %c0_26 = arith.constant 0 : index
    %47 = vector.load %arg10[%c0_24, %c1_25, %c0_26] : memref<12x24x128xf32, #tpu.memory_space<vmem>>, vector<8x16x128xf32>
    %48 = vector.broadcast %46 : vector<1x1x128xf32> to vector<8x16x128xf32>
    %49 = arith.mulf %47, %48 : vector<8x16x128xf32>
    %50 = arith.addf %43, %49 : vector<8x16x128xf32>
    %c0_27 = arith.constant 0 : index
    %c2 = arith.constant 2 : index
    %c0_28 = arith.constant 0 : index
    %51 = vector.load %arg5[%c0_27, %c2, %c0_28] : memref<5x5x128xf32, #tpu.memory_space<vmem>>, vector<1x1x128xf32>
    %52 = vector.shape_cast %51 : vector<1x1x128xf32> to vector<128xf32>
    %53 = vector.shape_cast %52 : vector<128xf32> to vector<1x1x128xf32>
    %c0_29 = arith.constant 0 : index
    %c2_30 = arith.constant 2 : index
    %c0_31 = arith.constant 0 : index
    %54 = vector.load %arg10[%c0_29, %c2_30, %c0_31] : memref<12x24x128xf32, #tpu.memory_space<vmem>>, vector<8x16x128xf32>
    %55 = vector.broadcast %53 : vector<1x1x128xf32> to vector<8x16x128xf32>
    %56 = arith.mulf %54, %55 : vector<8x16x128xf32>
    %57 = arith.addf %50, %56 : vector<8x16x128xf32>
    %c0_32 = arith.constant 0 : index
    %c3 = arith.constant 3 : index
    %c0_33 = arith.constant 0 : index
    %58 = vector.load %arg5[%c0_32, %c3, %c0_33] : memref<5x5x128xf32, #tpu.memory_space<vmem>>, vector<1x1x128xf32>
    %59 = vector.shape_cast %58 : vector<1x1x128xf32> to vector<128xf32>
    %60 = vector.shape_cast %59 : vector<128xf32> to vector<1x1x128xf32>
    %c0_34 = arith.constant 0 : index
    %c3_35 = arith.constant 3 : index
    %c0_36 = arith.constant 0 : index
    %61 = vector.load %arg10[%c0_34, %c3_35, %c0_36] : memref<12x24x128xf32, #tpu.memory_space<vmem>>, vector<8x16x128xf32>
    %62 = vector.broadcast %60 : vector<1x1x128xf32> to vector<8x16x128xf32>
    %63 = arith.mulf %61, %62 : vector<8x16x128xf32>
    %64 = arith.addf %57, %63 : vector<8x16x128xf32>
    %c0_37 = arith.constant 0 : index
    %c4 = arith.constant 4 : index
    %c0_38 = arith.constant 0 : index
    %65 = vector.load %arg5[%c0_37, %c4, %c0_38] : memref<5x5x128xf32, #tpu.memory_space<vmem>>, vector<1x1x128xf32>
    %66 = vector.shape_cast %65 : vector<1x1x128xf32> to vector<128xf32>
    %67 = vector.shape_cast %66 : vector<128xf32> to vector<1x1x128xf32>
    %c0_39 = arith.constant 0 : index
    %c4_40 = arith.constant 4 : index
    %c0_41 = arith.constant 0 : index
    %68 = vector.load %arg10[%c0_39, %c4_40, %c0_41] : memref<12x24x128xf32, #tpu.memory_space<vmem>>, vector<8x16x128xf32>
    %69 = vector.broadcast %67 : vector<1x1x128xf32> to vector<8x16x128xf32>
    %70 = arith.mulf %68, %69 : vector<8x16x128xf32>
    %71 = arith.addf %64, %70 : vector<8x16x128xf32>
    %c1_42 = arith.constant 1 : index
    %c0_43 = arith.constant 0 : index
    %c0_44 = arith.constant 0 : index
    %72 = vector.load %arg5[%c1_42, %c0_43, %c0_44] : memref<5x5x128xf32, #tpu.memory_space<vmem>>, vector<1x1x128xf32>
    %73 = vector.shape_cast %72 : vector<1x1x128xf32> to vector<128xf32>
    %74 = vector.shape_cast %73 : vector<128xf32> to vector<1x1x128xf32>
    %c1_45 = arith.constant 1 : index
    %c0_46 = arith.constant 0 : index
    %c0_47 = arith.constant 0 : index
    %75 = vector.load %arg10[%c1_45, %c0_46, %c0_47] : memref<12x24x128xf32, #tpu.memory_space<vmem>>, vector<8x16x128xf32>
    %76 = vector.broadcast %74 : vector<1x1x128xf32> to vector<8x16x128xf32>
    %77 = arith.mulf %75, %76 : vector<8x16x128xf32>
    %78 = arith.addf %71, %77 : vector<8x16x128xf32>
    %c1_48 = arith.constant 1 : index
    %c1_49 = arith.constant 1 : index
    %c0_50 = arith.constant 0 : index
    %79 = vector.load %arg5[%c1_48, %c1_49, %c0_50] : memref<5x5x128xf32, #tpu.memory_space<vmem>>, vector<1x1x128xf32>
    %80 = vector.shape_cast %79 : vector<1x1x128xf32> to vector<128xf32>
    %81 = vector.shape_cast %80 : vector<128xf32> to vector<1x1x128xf32>
    %c1_51 = arith.constant 1 : index
    %c1_52 = arith.constant 1 : index
    %c0_53 = arith.constant 0 : index
    %82 = vector.load %arg10[%c1_51, %c1_52, %c0_53] : memref<12x24x128xf32, #tpu.memory_space<vmem>>, vector<8x16x128xf32>
    %83 = vector.broadcast %81 : vector<1x1x128xf32> to vector<8x16x128xf32>
    %84 = arith.mulf %82, %83 : vector<8x16x128xf32>
    %85 = arith.addf %78, %84 : vector<8x16x128xf32>
    %c1_54 = arith.constant 1 : index
    %c2_55 = arith.constant 2 : index
    %c0_56 = arith.constant 0 : index
    %86 = vector.load %arg5[%c1_54, %c2_55, %c0_56] : memref<5x5x128xf32, #tpu.memory_space<vmem>>, vector<1x1x128xf32>
    %87 = vector.shape_cast %86 : vector<1x1x128xf32> to vector<128xf32>
    %88 = vector.shape_cast %87 : vector<128xf32> to vector<1x1x128xf32>
    %c1_57 = arith.constant 1 : index
    %c2_58 = arith.constant 2 : index
    %c0_59 = arith.constant 0 : index
    %89 = vector.load %arg10[%c1_57, %c2_58, %c0_59] : memref<12x24x128xf32, #tpu.memory_space<vmem>>, vector<8x16x128xf32>
    %90 = vector.broadcast %88 : vector<1x1x128xf32> to vector<8x16x128xf32>
    %91 = arith.mulf %89, %90 : vector<8x16x128xf32>
    %92 = arith.addf %85, %91 : vector<8x16x128xf32>
    %c1_60 = arith.constant 1 : index
    %c3_61 = arith.constant 3 : index
    %c0_62 = arith.constant 0 : index
    %93 = vector.load %arg5[%c1_60, %c3_61, %c0_62] : memref<5x5x128xf32, #tpu.memory_space<vmem>>, vector<1x1x128xf32>
    %94 = vector.shape_cast %93 : vector<1x1x128xf32> to vector<128xf32>
    %95 = vector.shape_cast %94 : vector<128xf32> to vector<1x1x128xf32>
    %c1_63 = arith.constant 1 : index
    %c3_64 = arith.constant 3 : index
    %c0_65 = arith.constant 0 : index
    %96 = vector.load %arg10[%c1_63, %c3_64, %c0_65] : memref<12x24x128xf32, #tpu.memory_space<vmem>>, vector<8x16x128xf32>
    %97 = vector.broadcast %95 : vector<1x1x128xf32> to vector<8x16x128xf32>
    %98 = arith.mulf %96, %97 : vector<8x16x128xf32>
    %99 = arith.addf %92, %98 : vector<8x16x128xf32>
    %c1_66 = arith.constant 1 : index
    %c4_67 = arith.constant 4 : index
    %c0_68 = arith.constant 0 : index
    %100 = vector.load %arg5[%c1_66, %c4_67, %c0_68] : memref<5x5x128xf32, #tpu.memory_space<vmem>>, vector<1x1x128xf32>
    %101 = vector.shape_cast %100 : vector<1x1x128xf32> to vector<128xf32>
    %102 = vector.shape_cast %101 : vector<128xf32> to vector<1x1x128xf32>
    %c1_69 = arith.constant 1 : index
    %c4_70 = arith.constant 4 : index
    %c0_71 = arith.constant 0 : index
    %103 = vector.load %arg10[%c1_69, %c4_70, %c0_71] : memref<12x24x128xf32, #tpu.memory_space<vmem>>, vector<8x16x128xf32>
    %104 = vector.broadcast %102 : vector<1x1x128xf32> to vector<8x16x128xf32>
    %105 = arith.mulf %103, %104 : vector<8x16x128xf32>
    %106 = arith.addf %99, %105 : vector<8x16x128xf32>
    %c2_72 = arith.constant 2 : index
    %c0_73 = arith.constant 0 : index
    %c0_74 = arith.constant 0 : index
    %107 = vector.load %arg5[%c2_72, %c0_73, %c0_74] : memref<5x5x128xf32, #tpu.memory_space<vmem>>, vector<1x1x128xf32>
    %108 = vector.shape_cast %107 : vector<1x1x128xf32> to vector<128xf32>
    %109 = vector.shape_cast %108 : vector<128xf32> to vector<1x1x128xf32>
    %c2_75 = arith.constant 2 : index
    %c0_76 = arith.constant 0 : index
    %c0_77 = arith.constant 0 : index
    %110 = vector.load %arg10[%c2_75, %c0_76, %c0_77] : memref<12x24x128xf32, #tpu.memory_space<vmem>>, vector<8x16x128xf32>
    %111 = vector.broadcast %109 : vector<1x1x128xf32> to vector<8x16x128xf32>
    %112 = arith.mulf %110, %111 : vector<8x16x128xf32>
    %113 = arith.addf %106, %112 : vector<8x16x128xf32>
    %c2_78 = arith.constant 2 : index
    %c1_79 = arith.constant 1 : index
    %c0_80 = arith.constant 0 : index
    %114 = vector.load %arg5[%c2_78, %c1_79, %c0_80] : memref<5x5x128xf32, #tpu.memory_space<vmem>>, vector<1x1x128xf32>
    %115 = vector.shape_cast %114 : vector<1x1x128xf32> to vector<128xf32>
    %116 = vector.shape_cast %115 : vector<128xf32> to vector<1x1x128xf32>
    %c2_81 = arith.constant 2 : index
    %c1_82 = arith.constant 1 : index
    %c0_83 = arith.constant 0 : index
    %117 = vector.load %arg10[%c2_81, %c1_82, %c0_83] : memref<12x24x128xf32, #tpu.memory_space<vmem>>, vector<8x16x128xf32>
    %118 = vector.broadcast %116 : vector<1x1x128xf32> to vector<8x16x128xf32>
    %119 = arith.mulf %117, %118 : vector<8x16x128xf32>
    %120 = arith.addf %113, %119 : vector<8x16x128xf32>
    %c2_84 = arith.constant 2 : index
    %c2_85 = arith.constant 2 : index
    %c0_86 = arith.constant 0 : index
    %121 = vector.load %arg5[%c2_84, %c2_85, %c0_86] : memref<5x5x128xf32, #tpu.memory_space<vmem>>, vector<1x1x128xf32>
    %122 = vector.shape_cast %121 : vector<1x1x128xf32> to vector<128xf32>
    %123 = vector.shape_cast %122 : vector<128xf32> to vector<1x1x128xf32>
    %c2_87 = arith.constant 2 : index
    %c2_88 = arith.constant 2 : index
    %c0_89 = arith.constant 0 : index
    %124 = vector.load %arg10[%c2_87, %c2_88, %c0_89] : memref<12x24x128xf32, #tpu.memory_space<vmem>>, vector<8x16x128xf32>
    %125 = vector.broadcast %123 : vector<1x1x128xf32> to vector<8x16x128xf32>
    %126 = arith.mulf %124, %125 : vector<8x16x128xf32>
    %127 = arith.addf %120, %126 : vector<8x16x128xf32>
    %c2_90 = arith.constant 2 : index
    %c3_91 = arith.constant 3 : index
    %c0_92 = arith.constant 0 : index
    %128 = vector.load %arg5[%c2_90, %c3_91, %c0_92] : memref<5x5x128xf32, #tpu.memory_space<vmem>>, vector<1x1x128xf32>
    %129 = vector.shape_cast %128 : vector<1x1x128xf32> to vector<128xf32>
    %130 = vector.shape_cast %129 : vector<128xf32> to vector<1x1x128xf32>
    %c2_93 = arith.constant 2 : index
    %c3_94 = arith.constant 3 : index
    %c0_95 = arith.constant 0 : index
    %131 = vector.load %arg10[%c2_93, %c3_94, %c0_95] : memref<12x24x128xf32, #tpu.memory_space<vmem>>, vector<8x16x128xf32>
    %132 = vector.broadcast %130 : vector<1x1x128xf32> to vector<8x16x128xf32>
    %133 = arith.mulf %131, %132 : vector<8x16x128xf32>
    %134 = arith.addf %127, %133 : vector<8x16x128xf32>
    %c2_96 = arith.constant 2 : index
    %c4_97 = arith.constant 4 : index
    %c0_98 = arith.constant 0 : index
    %135 = vector.load %arg5[%c2_96, %c4_97, %c0_98] : memref<5x5x128xf32, #tpu.memory_space<vmem>>, vector<1x1x128xf32>
    %136 = vector.shape_cast %135 : vector<1x1x128xf32> to vector<128xf32>
    %137 = vector.shape_cast %136 : vector<128xf32> to vector<1x1x128xf32>
    %c2_99 = arith.constant 2 : index
    %c4_100 = arith.constant 4 : index
    %c0_101 = arith.constant 0 : index
    %138 = vector.load %arg10[%c2_99, %c4_100, %c0_101] : memref<12x24x128xf32, #tpu.memory_space<vmem>>, vector<8x16x128xf32>
    %139 = vector.broadcast %137 : vector<1x1x128xf32> to vector<8x16x128xf32>
    %140 = arith.mulf %138, %139 : vector<8x16x128xf32>
    %141 = arith.addf %134, %140 : vector<8x16x128xf32>
    %c3_102 = arith.constant 3 : index
    %c0_103 = arith.constant 0 : index
    %c0_104 = arith.constant 0 : index
    %142 = vector.load %arg5[%c3_102, %c0_103, %c0_104] : memref<5x5x128xf32, #tpu.memory_space<vmem>>, vector<1x1x128xf32>
    %143 = vector.shape_cast %142 : vector<1x1x128xf32> to vector<128xf32>
    %144 = vector.shape_cast %143 : vector<128xf32> to vector<1x1x128xf32>
    %c3_105 = arith.constant 3 : index
    %c0_106 = arith.constant 0 : index
    %c0_107 = arith.constant 0 : index
    %145 = vector.load %arg10[%c3_105, %c0_106, %c0_107] : memref<12x24x128xf32, #tpu.memory_space<vmem>>, vector<8x16x128xf32>
    %146 = vector.broadcast %144 : vector<1x1x128xf32> to vector<8x16x128xf32>
    %147 = arith.mulf %145, %146 : vector<8x16x128xf32>
    %148 = arith.addf %141, %147 : vector<8x16x128xf32>
    %c3_108 = arith.constant 3 : index
    %c1_109 = arith.constant 1 : index
    %c0_110 = arith.constant 0 : index
    %149 = vector.load %arg5[%c3_108, %c1_109, %c0_110] : memref<5x5x128xf32, #tpu.memory_space<vmem>>, vector<1x1x128xf32>
    %150 = vector.shape_cast %149 : vector<1x1x128xf32> to vector<128xf32>
    %151 = vector.shape_cast %150 : vector<128xf32> to vector<1x1x128xf32>
    %c3_111 = arith.constant 3 : index
    %c1_112 = arith.constant 1 : index
    %c0_113 = arith.constant 0 : index
    %152 = vector.load %arg10[%c3_111, %c1_112, %c0_113] : memref<12x24x128xf32, #tpu.memory_space<vmem>>, vector<8x16x128xf32>
    %153 = vector.broadcast %151 : vector<1x1x128xf32> to vector<8x16x128xf32>
    %154 = arith.mulf %152, %153 : vector<8x16x128xf32>
    %155 = arith.addf %148, %154 : vector<8x16x128xf32>
    %c3_114 = arith.constant 3 : index
    %c2_115 = arith.constant 2 : index
    %c0_116 = arith.constant 0 : index
    %156 = vector.load %arg5[%c3_114, %c2_115, %c0_116] : memref<5x5x128xf32, #tpu.memory_space<vmem>>, vector<1x1x128xf32>
    %157 = vector.shape_cast %156 : vector<1x1x128xf32> to vector<128xf32>
    %158 = vector.shape_cast %157 : vector<128xf32> to vector<1x1x128xf32>
    %c3_117 = arith.constant 3 : index
    %c2_118 = arith.constant 2 : index
    %c0_119 = arith.constant 0 : index
    %159 = vector.load %arg10[%c3_117, %c2_118, %c0_119] : memref<12x24x128xf32, #tpu.memory_space<vmem>>, vector<8x16x128xf32>
    %160 = vector.broadcast %158 : vector<1x1x128xf32> to vector<8x16x128xf32>
    %161 = arith.mulf %159, %160 : vector<8x16x128xf32>
    %162 = arith.addf %155, %161 : vector<8x16x128xf32>
    %c3_120 = arith.constant 3 : index
    %c3_121 = arith.constant 3 : index
    %c0_122 = arith.constant 0 : index
    %163 = vector.load %arg5[%c3_120, %c3_121, %c0_122] : memref<5x5x128xf32, #tpu.memory_space<vmem>>, vector<1x1x128xf32>
    %164 = vector.shape_cast %163 : vector<1x1x128xf32> to vector<128xf32>
    %165 = vector.shape_cast %164 : vector<128xf32> to vector<1x1x128xf32>
    %c3_123 = arith.constant 3 : index
    %c3_124 = arith.constant 3 : index
    %c0_125 = arith.constant 0 : index
    %166 = vector.load %arg10[%c3_123, %c3_124, %c0_125] : memref<12x24x128xf32, #tpu.memory_space<vmem>>, vector<8x16x128xf32>
    %167 = vector.broadcast %165 : vector<1x1x128xf32> to vector<8x16x128xf32>
    %168 = arith.mulf %166, %167 : vector<8x16x128xf32>
    %169 = arith.addf %162, %168 : vector<8x16x128xf32>
    %c3_126 = arith.constant 3 : index
    %c4_127 = arith.constant 4 : index
    %c0_128 = arith.constant 0 : index
    %170 = vector.load %arg5[%c3_126, %c4_127, %c0_128] : memref<5x5x128xf32, #tpu.memory_space<vmem>>, vector<1x1x128xf32>
    %171 = vector.shape_cast %170 : vector<1x1x128xf32> to vector<128xf32>
    %172 = vector.shape_cast %171 : vector<128xf32> to vector<1x1x128xf32>
    %c3_129 = arith.constant 3 : index
    %c4_130 = arith.constant 4 : index
    %c0_131 = arith.constant 0 : index
    %173 = vector.load %arg10[%c3_129, %c4_130, %c0_131] : memref<12x24x128xf32, #tpu.memory_space<vmem>>, vector<8x16x128xf32>
    %174 = vector.broadcast %172 : vector<1x1x128xf32> to vector<8x16x128xf32>
    %175 = arith.mulf %173, %174 : vector<8x16x128xf32>
    %176 = arith.addf %169, %175 : vector<8x16x128xf32>
    %c4_132 = arith.constant 4 : index
    %c0_133 = arith.constant 0 : index
    %c0_134 = arith.constant 0 : index
    %177 = vector.load %arg5[%c4_132, %c0_133, %c0_134] : memref<5x5x128xf32, #tpu.memory_space<vmem>>, vector<1x1x128xf32>
    %178 = vector.shape_cast %177 : vector<1x1x128xf32> to vector<128xf32>
    %179 = vector.shape_cast %178 : vector<128xf32> to vector<1x1x128xf32>
    %c4_135 = arith.constant 4 : index
    %c0_136 = arith.constant 0 : index
    %c0_137 = arith.constant 0 : index
    %180 = vector.load %arg10[%c4_135, %c0_136, %c0_137] : memref<12x24x128xf32, #tpu.memory_space<vmem>>, vector<8x16x128xf32>
    %181 = vector.broadcast %179 : vector<1x1x128xf32> to vector<8x16x128xf32>
    %182 = arith.mulf %180, %181 : vector<8x16x128xf32>
    %183 = arith.addf %176, %182 : vector<8x16x128xf32>
    %c4_138 = arith.constant 4 : index
    %c1_139 = arith.constant 1 : index
    %c0_140 = arith.constant 0 : index
    %184 = vector.load %arg5[%c4_138, %c1_139, %c0_140] : memref<5x5x128xf32, #tpu.memory_space<vmem>>, vector<1x1x128xf32>
    %185 = vector.shape_cast %184 : vector<1x1x128xf32> to vector<128xf32>
    %186 = vector.shape_cast %185 : vector<128xf32> to vector<1x1x128xf32>
    %c4_141 = arith.constant 4 : index
    %c1_142 = arith.constant 1 : index
    %c0_143 = arith.constant 0 : index
    %187 = vector.load %arg10[%c4_141, %c1_142, %c0_143] : memref<12x24x128xf32, #tpu.memory_space<vmem>>, vector<8x16x128xf32>
    %188 = vector.broadcast %186 : vector<1x1x128xf32> to vector<8x16x128xf32>
    %189 = arith.mulf %187, %188 : vector<8x16x128xf32>
    %190 = arith.addf %183, %189 : vector<8x16x128xf32>
    %c4_144 = arith.constant 4 : index
    %c2_145 = arith.constant 2 : index
    %c0_146 = arith.constant 0 : index
    %191 = vector.load %arg5[%c4_144, %c2_145, %c0_146] : memref<5x5x128xf32, #tpu.memory_space<vmem>>, vector<1x1x128xf32>
    %192 = vector.shape_cast %191 : vector<1x1x128xf32> to vector<128xf32>
    %193 = vector.shape_cast %192 : vector<128xf32> to vector<1x1x128xf32>
    %c4_147 = arith.constant 4 : index
    %c2_148 = arith.constant 2 : index
    %c0_149 = arith.constant 0 : index
    %194 = vector.load %arg10[%c4_147, %c2_148, %c0_149] : memref<12x24x128xf32, #tpu.memory_space<vmem>>, vector<8x16x128xf32>
    %195 = vector.broadcast %193 : vector<1x1x128xf32> to vector<8x16x128xf32>
    %196 = arith.mulf %194, %195 : vector<8x16x128xf32>
    %197 = arith.addf %190, %196 : vector<8x16x128xf32>
    %c4_150 = arith.constant 4 : index
    %c3_151 = arith.constant 3 : index
    %c0_152 = arith.constant 0 : index
    %198 = vector.load %arg5[%c4_150, %c3_151, %c0_152] : memref<5x5x128xf32, #tpu.memory_space<vmem>>, vector<1x1x128xf32>
    %199 = vector.shape_cast %198 : vector<1x1x128xf32> to vector<128xf32>
    %200 = vector.shape_cast %199 : vector<128xf32> to vector<1x1x128xf32>
    %c4_153 = arith.constant 4 : index
    %c3_154 = arith.constant 3 : index
    %c0_155 = arith.constant 0 : index
    %201 = vector.load %arg10[%c4_153, %c3_154, %c0_155] : memref<12x24x128xf32, #tpu.memory_space<vmem>>, vector<8x16x128xf32>
    %202 = vector.broadcast %200 : vector<1x1x128xf32> to vector<8x16x128xf32>
    %203 = arith.mulf %201, %202 : vector<8x16x128xf32>
    %204 = arith.addf %197, %203 : vector<8x16x128xf32>
    %c4_156 = arith.constant 4 : index
    %c4_157 = arith.constant 4 : index
    %c0_158 = arith.constant 0 : index
    %205 = vector.load %arg5[%c4_156, %c4_157, %c0_158] : memref<5x5x128xf32, #tpu.memory_space<vmem>>, vector<1x1x128xf32>
    %206 = vector.shape_cast %205 : vector<1x1x128xf32> to vector<128xf32>
    %207 = vector.shape_cast %206 : vector<128xf32> to vector<1x1x128xf32>
    %c4_159 = arith.constant 4 : index
    %c4_160 = arith.constant 4 : index
    %c0_161 = arith.constant 0 : index
    %208 = vector.load %arg10[%c4_159, %c4_160, %c0_161] : memref<12x24x128xf32, #tpu.memory_space<vmem>>, vector<8x16x128xf32>
    %209 = vector.broadcast %207 : vector<1x1x128xf32> to vector<8x16x128xf32>
    %210 = arith.mulf %208, %209 : vector<8x16x128xf32>
    %211 = arith.addf %204, %210 : vector<8x16x128xf32>
    %c0_162 = arith.constant 0 : index
    %c0_163 = arith.constant 0 : index
    %c0_164 = arith.constant 0 : index
    %212 = vector.load %arg6[%c0_162, %c0_163, %c0_164] : memref<1x1x128xf32, #tpu.memory_space<vmem>>, vector<1x1x128xf32>
    %213 = vector.broadcast %212 : vector<1x1x128xf32> to vector<8x16x128xf32>
    %214 = arith.addf %211, %213 : vector<8x16x128xf32>
    %cst_165 = arith.constant 0.000000e+00 : f32
    %cst_166 = arith.constant 6.000000e+00 : f32
    %215 = vector.broadcast %cst_165 : f32 to vector<8x16x128xf32>
    %216 = arith.maximumf %215, %214 : vector<8x16x128xf32>
    %217 = vector.broadcast %cst_166 : f32 to vector<8x16x128xf32>
    %218 = arith.minimumf %217, %216 : vector<8x16x128xf32>
    %219 = vector.shape_cast %218 : vector<8x16x128xf32> to vector<128x128xf32>
    %220 = arith.truncf %219 : vector<128x128xf32> to vector<128x128xbf16>
    %c0_167 = arith.constant 0 : index
    %c0_168 = arith.constant 0 : index
    %221 = vector.load %arg7[%c0_167, %c0_168] : memref<128x128xbf16, #tpu.memory_space<vmem>>, vector<128x128xbf16>
    %cst_169 = arith.constant dense<0.000000e+00> : vector<128x128xf32>
    %222 = tpu.matmul %220, %221, %cst_169 {dimension_numbers = #tpu.dot_dimension_numbers<[1], [0], [0], [1], [0, 0, 1, 1], [], []>} : vector<128x128xbf16>, vector<128x128xbf16>, vector<128x128xf32> -> vector<128x128xf32>
    %c0_170 = arith.constant 0 : index
    %c0_171 = arith.constant 0 : index
    %223 = vector.load %arg8[%c0_170, %c0_171] : memref<1x128xf32, #tpu.memory_space<vmem>>, vector<1x128xf32>
    %224 = vector.broadcast %223 : vector<1x128xf32> to vector<128x128xf32>
    %225 = arith.addf %222, %224 : vector<128x128xf32>
    %226 = vector.shape_cast %225 : vector<128x128xf32> to vector<8x16x128xf32>
    %227 = vector.extract_strided_slice %1 {offsets = [2, 2, 0], sizes = [8, 16, 128], strides = [1, 1, 1]} : vector<12x24x128xf32> to vector<8x16x128xf32>
    %228 = arith.addf %226, %227 : vector<8x16x128xf32>
    %c0_172 = arith.constant 0 : index
    %c0_173 = arith.constant 0 : index
    %c0_174 = arith.constant 0 : index
    %c0_175 = arith.constant 0 : index
    %229 = vector.load %arg9[%c0_172, %c0_173, %c0_174, %c0_175] : memref<1x8x16x128xf32, #tpu.memory_space<vmem>>, vector<1x8x16x128xf32>
    %230 = vector.shape_cast %229 : vector<1x8x16x128xf32> to vector<8x16x128xf32>
    %231 = vector.shape_cast %228 : vector<8x16x128xf32> to vector<1x8x16x128xf32>
    tpu.vector_store %arg9[%c0_172, %c0_173, %c0_174, %c0_175], %231 {strides = array<i32>} : memref<1x8x16x128xf32, #tpu.memory_space<vmem>>, vector<1x8x16x128xf32>,
    return
  }
  func.func @transform_0(%arg0: i32, %arg1: i32) -> (i32, i32, i32, i32, i32) {
    %c0_i32 = arith.constant 0 : i32
    %c0_i32_0 = arith.constant 0 : i32
    %c0_i32_1 = arith.constant 0 : i32
    %c0_i32_2 = arith.constant 0 : i32
    return %arg0, %arg1, %c0_i32, %c0_i32_0, %c0_i32_1 : i32, i32, i32, i32, i32
  }
  func.func @transform_1(%arg0: i32, %arg1: i32) -> (i32, i32) {
    %c0_i32 = arith.constant 0 : i32
    %c0_i32_0 = arith.constant 0 : i32
    %c0_i32_1 = arith.constant 0 : i32
    return %c0_i32, %c0_i32_0 : i32, i32
  }
  func.func @transform_2(%arg0: i32, %arg1: i32) -> (i32, i32) {
    %c0_i32 = arith.constant 0 : i32
    %c0_i32_0 = arith.constant 0 : i32
    %c0_i32_1 = arith.constant 0 : i32
    return %c0_i32, %c0_i32_0 : i32, i32
  }
  func.func @transform_3(%arg0: i32, %arg1: i32) -> (i32, i32, i32) {
    %c0_i32 = arith.constant 0 : i32
    %c0_i32_0 = arith.constant 0 : i32
    %c0_i32_1 = arith.constant 0 : i32
    %c0_i32_2 = arith.constant 0 : i32
    return %c0_i32, %c0_i32_0, %c0_i32_1 : i32, i32, i32
  }
  func.func @transform_4(%arg0: i32, %arg1: i32) -> (i32, i32, i32) {
    %c0_i32 = arith.constant 0 : i32
    %c0_i32_0 = arith.constant 0 : i32
    %c0_i32_1 = arith.constant 0 : i32
    %c0_i32_2 = arith.constant 0 : i32
    return %c0_i32, %c0_i32_0, %c0_i32_1 : i32, i32, i32
  }
  func.func @transform_5(%arg0: i32, %arg1: i32) -> (i32, i32) {
    %c0_i32 = arith.constant 0 : i32
    %c0_i32_0 = arith.constant 0 : i32
    %c0_i32_1 = arith.constant 0 : i32
    return %c0_i32, %c0_i32_0 : i32, i32
  }
  func.func @transform_6(%arg0: i32, %arg1: i32) -> (i32, i32) {
    %c0_i32 = arith.constant 0 : i32
    %c0_i32_0 = arith.constant 0 : i32
    %c0_i32_1 = arith.constant 0 : i32
    return %c0_i32, %c0_i32_0 : i32, i32
  }
  func.func @transform_7(%arg0: i32, %arg1: i32) -> (i32, i32, i32, i32) {
    %c0_i32 = arith.constant 0 : i32
    %c0_i32_0 = arith.constant 0 : i32
    %c0_i32_1 = arith.constant 0 : i32
    return %arg0, %arg1, %c0_i32, %c0_i32_0 : i32, i32, i32, i32
  }
}

</mosaic_0001>

<llo_original>
// kernel: tpu_custom_call.1
$region0: #{tpu_custom_call.1}
  #allocation0 [shape = 'u32[]', space=smem, size = 0x4, offset = 0x4, fixed_abs, tag = 'smem constant byte address 0x4 - core index']
  #allocation1 [shape = 'u32[144,128]{1,0:T(1,128)}', space=vmem, size = 0x12000, scoped, tag = 'internal scratch']
  #allocation2 [shape = 'f32[12,24,128]{2,1,0:T(8,128)}', space=vmem, size = 0x24000, scoped, tag = 'scratch operand']
  %s0 = inlined_call_operand.hbm [shape: f32[2,2,12,24,128], index: 0, kind: input, shape index: {}]
  %s1 = inlined_call_operand.hbm [shape: bf16[128,128], index: 1, kind: input, shape index: {}]
  %s2 = inlined_call_operand.vmem [shape: f32[1,128], index: 2, kind: input, shape index: {}]
  %s3 = inlined_call_operand.hbm [shape: f32[5,5,128], index: 3, kind: input, shape index: {}]
  %s4 = inlined_call_operand.vmem [shape: f32[1,1,128], index: 4, kind: input, shape index: {}]
  %s5 = inlined_call_operand.hbm [shape: bf16[128,128], index: 5, kind: input, shape index: {}]
  %s6 = inlined_call_operand.vmem [shape: f32[1,128], index: 6, kind: input, shape index: {}]
  %s7 = inlined_call_operand.hbm [shape: f32[2,16,16,128], index: 7, kind: output, shape index: {}]
  %s8 = sld [smem:[#allocation0]]
  $region77: #{tpu_custom_call.1} parent=0
    _
  %s10 = ssub.s32 1, %s8
  %s11 = scalar_select 0, %s10, %s8
  $region1: #{tpu_custom_call.1} parent=0
    #allocation3 [shape = 'u8[294912]{0}', space=vmem, size = 0x48000, scoped, tag = 'input window, operand 0']
    #allocation4 [shape = 's32[2]{0}', space=sflag, size = 0x8, scoped, tag = 'scoped memory for tpu_custom_call.1']
    #allocation5 [shape = 's32[2]{0}', space=sflag, size = 0x8, scoped, tag = 'scoped memory for tpu_custom_call.1']
    #allocation6 [shape = 'u8[32768]{0}', space=vmem, size = 0x8000, scoped, tag = 'input window, operand 1, single buffered']
    #allocation7 [shape = 's32[1]{0}', space=sflag, size = 0x4, scoped, tag = 'scoped memory for tpu_custom_call.1']
    #allocation8 [shape = 'u8[20480]{0}', space=vmem, size = 0x5000, scoped, tag = 'input window, operand 3, single buffered']
    #allocation9 [shape = 'u8[32768]{0}', space=vmem, size = 0x8000, scoped, tag = 'input window, operand 5, single buffered']
    #allocation10 [shape = 's32[1]{0}', space=sflag, size = 0x4, scoped, tag = 'scoped memory for tpu_custom_call.1']
    #allocation11 [shape = 'u8[131072]{0}', space=vmem, size = 0x20000, scoped, tag = 'output window, operand 0']
    %12 = vsyncpa [#allocation4], 0
    %s13 = scalar_lea.sflag [#allocation4], 1
    %14 = vsyncpa %s13, 0
    %15 = vsyncpa [#allocation7], 0
    %16 = vsyncpa [#allocation10], 0
    %17 = vsyncpa [#allocation5], 0
    %s18 = scalar_lea.sflag [#allocation5], 1
    %19 = vsyncpa %s18, 0
    loop: start=0, step=1, limit=6
    $region2: #{tpu_custom_call.1} parent=1 // loop_pre_header
      _
    $region3: #{tpu_custom_call.1} parent=1 // loop_header
      %s21 = sphi 0, %s25
      %p22 = scmp.ge.s32.totalorder %s21, 6
      %s28 = sphi 0, %s40
      %s29 = sphi 0, %s36
      %s30 = sphi 0, %s28
      %s31 = sphi 0, %s29
      %s32 = sphi 0, %s30
      %s33 = sphi 0, %s31
      %s45 = sphi 0, %s47
      %s48 = sphi 0, %s45
      %s49 = sphi 0, %s48
      %s65 = sphi 0, %s49
      %s69 = sphi 0, %s69
      %s71 = sphi 0, %s69
      %s72 = sphi 0, %s71
      %s86 = sphi 0, %s72
      %s90 = sphi 0, %s90
      %s92 = sphi 0, %s90
      %s93 = sphi 0, %s92
      %s107 = sphi 0, %s93
      %s111 = sphi 0, %s111
      %s113 = sphi 0, %s111
      %s114 = sphi 0, %s113
      %s128 = sphi 0, %s114
      %s132 = sphi 0, %s132
      %s134 = sphi 0, %s132
      %s135 = sphi 0, %s134
      %s149 = sphi 0, %s135
      %s153 = sphi 0, %s153
      %s155 = sphi 0, %s153
      %s156 = sphi 0, %s155
      %s170 = sphi 0, %s156
      %s174 = sphi 0, %s174
      %s176 = sphi 0, %s174
      %s177 = sphi 0, %s176
      %s191 = sphi 0, %s177
      %s199 = sphi 0, %s201
      %s202 = sphi 0, %s199
      %s203 = sphi 0, %s202
      %s219 = sphi 0, %s203
    $region4: #{tpu_custom_call.1} parent=1 // loop_header_branch
      %24 = sbr.rel (%p22) target = $region8
    $region5: #{tpu_custom_call.1} parent=1 // loop_body
      %s26 = ssub.s32 %s21, 1
      %s27 = ssub.s32 %s21, 2
      %s34 = sadd.s32 1, %s29
      %p35 = scmp.ge.s32.totalorder %s34, 2
      %s36 = scalar_select %p35, 0, %s34
      %s37 = sadd.s32 1, %s28
      %s38 = scalar_select %p35, %s37, %s28
      %p39 = scmp.ge.s32.totalorder %s38, 2
      %s40 = scalar_select %p39, 0, %s38
      %s41 = ssub.s32 %s28, %s40
      %s42 = ssub.s32 %s29, %s36
      %s43 = sor.u32 %s41, %s42
      %p44 = scmp.eq.s32.totalorder %s43, 0
      %s46 = sadd.s32 %s45, 1
      %s47 = scalar_select %p44, %s45, %s46
      %p50 = pneg %p44
      %p51 = scmp.eq.s32.totalorder %s21, 3
      %p52 = por %p50, %p51
      %p53 = scmp.ne.s32.totalorder %s45, %s48
      %p54 = scmp.eq.s32.totalorder %s21, 0
      %p55 = por %p53, %p54
      %p56 = scmp.ne.s32.totalorder %s45, %s48
      %p57 = scmp.eq.s32.totalorder %s26, 3
      %p58 = por %p56, %p57
      %p59 = scmp.ne.s32.totalorder %s48, %s49
      %p60 = scmp.eq.s32.totalorder %s26, 0
      %p61 = por %p59, %p60
      %p62 = scmp.ne.s32.totalorder %s48, %s49
      %p63 = scmp.eq.s32.totalorder %s27, 3
      %p64 = por %p62, %p63
      %p66 = scmp.ne.s32.totalorder %s49, %s65
      %p67 = scmp.eq.s32.totalorder %s27, 0
      %p68 = por %p66, %p67
      %s70 = sadd.s32 %s69, 1
      %p73 = scmp.eq.s32.totalorder %s21, 3
      %p74 = scmp.ne.s32.totalorder %s69, %s71
      %p75 = scmp.eq.s32.totalorder %s21, 0
      %p76 = por %p74, %p75
      %p77 = scmp.ne.s32.totalorder %s69, %s71
      %p78 = scmp.eq.s32.totalorder %s26, 3
      %p79 = por %p77, %p78
      %p80 = scmp.ne.s32.totalorder %s71, %s72
      %p81 = scmp.eq.s32.totalorder %s26, 0
      %p82 = por %p80, %p81
      %p83 = scmp.ne.s32.totalorder %s71, %s72
      %p84 = scmp.eq.s32.totalorder %s27, 3
      %p85 = por %p83, %p84
      %p87 = scmp.ne.s32.totalorder %s72, %s86
      %p88 = scmp.eq.s32.totalorder %s27, 0
      %p89 = por %p87, %p88
      %s91 = sadd.s32 %s90, 1
      %p94 = scmp.eq.s32.totalorder %s21, 3
      %p95 = scmp.ne.s32.totalorder %s90, %s92
      %p96 = scmp.eq.s32.totalorder %s21, 0
      %p97 = por %p95, %p96
      %p98 = scmp.ne.s32.totalorder %s90, %s92
      %p99 = scmp.eq.s32.totalorder %s26, 3
      %p100 = por %p98, %p99
      %p101 = scmp.ne.s32.totalorder %s92, %s93
      %p102 = scmp.eq.s32.totalorder %s26, 0
      %p103 = por %p101, %p102
      %p104 = scmp.ne.s32.totalorder %s92, %s93
      %p105 = scmp.eq.s32.totalorder %s27, 3
      %p106 = por %p104, %p105
      %p108 = scmp.ne.s32.totalorder %s93, %s107
      %p109 = scmp.eq.s32.totalorder %s27, 0
      %p110 = por %p108, %p109
      %s112 = sadd.s32 %s111, 1
      %p115 = scmp.eq.s32.totalorder %s21, 3
      %p116 = scmp.ne.s32.totalorder %s111, %s113
      %p117 = scmp.eq.s32.totalorder %s21, 0
      %p118 = por %p116, %p117
      %p119 = scmp.ne.s32.totalorder %s111, %s113
      %p120 = scmp.eq.s32.totalorder %s26, 3
      %p121 = por %p119, %p120
      %p122 = scmp.ne.s32.totalorder %s113, %s114
      %p123 = scmp.eq.s32.totalorder %s26, 0
      %p124 = por %p122, %p123
      %p125 = scmp.ne.s32.totalorder %s113, %s114
      %p126 = scmp.eq.s32.totalorder %s27, 3
      %p127 = por %p125, %p126
      %p129 = scmp.ne.s32.totalorder %s114, %s128
      %p130 = scmp.eq.s32.totalorder %s27, 0
      %p131 = por %p129, %p130
      %s133 = sadd.s32 %s132, 1
      %p136 = scmp.eq.s32.totalorder %s21, 3
      %p137 = scmp.ne.s32.totalorder %s132, %s134
      %p138 = scmp.eq.s32.totalorder %s21, 0
      %p139 = por %p137, %p138
      %p140 = scmp.ne.s32.totalorder %s132, %s134
      %p141 = scmp.eq.s32.totalorder %s26, 3
      %p142 = por %p140, %p141
      %p143 = scmp.ne.s32.totalorder %s134, %s135
      %p144 = scmp.eq.s32.totalorder %s26, 0
      %p145 = por %p143, %p144
      %p146 = scmp.ne.s32.totalorder %s134, %s135
      %p147 = scmp.eq.s32.totalorder %s27, 3
      %p148 = por %p146, %p147
      %p150 = scmp.ne.s32.totalorder %s135, %s149
      %p151 = scmp.eq.s32.totalorder %s27, 0
      %p152 = por %p150, %p151
      %s154 = sadd.s32 %s153, 1
      %p157 = scmp.eq.s32.totalorder %s21, 3
      %p158 = scmp.ne.s32.totalorder %s153, %s155
      %p159 = scmp.eq.s32.totalorder %s21, 0
      %p160 = por %p158, %p159
      %p161 = scmp.ne.s32.totalorder %s153, %s155
      %p162 = scmp.eq.s32.totalorder %s26, 3
      %p163 = por %p161, %p162
      %p164 = scmp.ne.s32.totalorder %s155, %s156
      %p165 = scmp.eq.s32.totalorder %s26, 0
      %p166 = por %p164, %p165
      %p167 = scmp.ne.s32.totalorder %s155, %s156
      %p168 = scmp.eq.s32.totalorder %s27, 3
      %p169 = por %p167, %p168
      %p171 = scmp.ne.s32.totalorder %s156, %s170
      %p172 = scmp.eq.s32.totalorder %s27, 0
      %p173 = por %p171, %p172
      %s175 = sadd.s32 %s174, 1
      %p178 = scmp.eq.s32.totalorder %s21, 3
      %p179 = scmp.ne.s32.totalorder %s174, %s176
      %p180 = scmp.eq.s32.totalorder %s21, 0
      %p181 = por %p179, %p180
      %p182 = scmp.ne.s32.totalorder %s174, %s176
      %p183 = scmp.eq.s32.totalorder %s26, 3
      %p184 = por %p182, %p183
      %p185 = scmp.ne.s32.totalorder %s176, %s177
      %p186 = scmp.eq.s32.totalorder %s26, 0
      %p187 = por %p185, %p186
      %p188 = scmp.ne.s32.totalorder %s176, %s177
      %p189 = scmp.eq.s32.totalorder %s27, 3
      %p190 = por %p188, %p189
      %p192 = scmp.ne.s32.totalorder %s177, %s191
      %p193 = scmp.eq.s32.totalorder %s27, 0
      %p194 = por %p192, %p193
      %s195 = ssub.s32 %s28, %s40
      %s196 = ssub.s32 %s29, %s36
      %s197 = sor.u32 %s195, %s196
      %p198 = scmp.eq.s32.totalorder %s197, 0
      %s200 = sadd.s32 %s199, 1
      %s201 = scalar_select %p198, %s199, %s200
      %p204 = pneg %p198
      %p205 = scmp.eq.s32.totalorder %s21, 3
      %p206 = por %p204, %p205
      %p207 = scmp.ne.s32.totalorder %s199, %s202
      %p208 = scmp.eq.s32.totalorder %s21, 0
      %p209 = por %p207, %p208
      %p210 = scmp.ne.s32.totalorder %s199, %s202
      %p211 = scmp.eq.s32.totalorder %s26, 3
      %p212 = por %p210, %p211
      %p213 = scmp.ne.s32.totalorder %s202, %s203
      %p214 = scmp.eq.s32.totalorder %s26, 0
      %p215 = por %p213, %p214
      %p216 = scmp.ne.s32.totalorder %s202, %s203
      %p217 = scmp.eq.s32.totalorder %s27, 3
      %p218 = por %p216, %p217
      %p220 = scmp.ne.s32.totalorder %s203, %s219
      %p221 = scmp.eq.s32.totalorder %s27, 0
      %p222 = por %p220, %p221
      %p223 = scmp.le.s32.totalorder 1, %s21
      %p224 = scmp.lt.s32.totalorder %s21, 5
      %p225 = pnand %p223, %p224
      %p226 = pneg %p225
      // Predicated region
      $region9: #{tpu_custom_call.1} parent=5 // pred_check
        _
      $region10: #{tpu_custom_call.1} parent=5 // pred_check_branch
        %228 = sbr.rel (%p225) target = $region12
      $region11: #{tpu_custom_call.1} parent=5 // pred_region
        %s229 = ssub.s32 %s21, 1
        // Predicated region
        $region13: #{tpu_custom_call.1} parent=11 // pred_check
          %p230 = pneg %p82
        $region14: #{tpu_custom_call.1} parent=11 // pred_check_branch
          %232 = sbr.rel (%p230) target = $region16
        $region15: #{tpu_custom_call.1} parent=11 // pred_region
          %s234 = ssub.s32 1024, 1024
          %235 = vsyncadd [#allocation7], %s234
          %s236 = sshll.u32 [#allocation6], 4
          %s237 = int_to_ptr.vmem [resolvable:$true] %s236
          %242 = dma.hbm_to_vmem [thread:$0]  %s1, 1024, %s237, [#allocation7], 64, 64, 4
        $region16: #{tpu_custom_call.1} parent=11 // pred_fallthru
          _
        // Predicated region
        $region17: #{tpu_custom_call.1} parent=11 // pred_check
          %p243 = pneg %p103
        $region18: #{tpu_custom_call.1} parent=11 // pred_check_branch
          %245 = sbr.rel (%p243) target = $region20
        $region19: #{tpu_custom_call.1} parent=11 // pred_region
          _
        $region20: #{tpu_custom_call.1} parent=11 // pred_fallthru
          _
        // Predicated region
        $region21: #{tpu_custom_call.1} parent=11 // pred_check
          %p246 = pneg %p124
        $region22: #{tpu_custom_call.1} parent=11 // pred_check_branch
          %248 = sbr.rel (%p246) target = $region24
        $region23: #{tpu_custom_call.1} parent=11 // pred_region
          %s250 = ssub.s32 640, 640
          %251 = vsyncadd [#allocation7], %s250
          %s252 = sshll.u32 [#allocation8], 4
          %s253 = int_to_ptr.vmem [resolvable:$true] %s252
          %258 = dma.hbm_to_vmem [thread:$0]  %s3, 640, %s253, [#allocation7], 128, 128, 8
        $region24: #{tpu_custom_call.1} parent=11 // pred_fallthru
          _
        // Predicated region
        $region25: #{tpu_custom_call.1} parent=11 // pred_check
          %p259 = pneg %p145
        $region26: #{tpu_custom_call.1} parent=11 // pred_check_branch
          %261 = sbr.rel (%p259) target = $region28
        $region27: #{tpu_custom_call.1} parent=11 // pred_region
          _
        $region28: #{tpu_custom_call.1} parent=11 // pred_fallthru
          _
        // Predicated region
        $region29: #{tpu_custom_call.1} parent=11 // pred_check
          %p262 = pneg %p166
        $region30: #{tpu_custom_call.1} parent=11 // pred_check_branch
          %264 = sbr.rel (%p262) target = $region32
        $region31: #{tpu_custom_call.1} parent=11 // pred_region
          %s266 = ssub.s32 1024, 1024
          %267 = vsyncadd [#allocation10], %s266
          %s268 = sshll.u32 [#allocation9], 4
          %s269 = int_to_ptr.vmem [resolvable:$true] %s268
          %274 = dma.hbm_to_vmem [thread:$0]  %s5, 1024, %s269, [#allocation10], 64, 64, 4
        $region32: #{tpu_custom_call.1} parent=11 // pred_fallthru
          _
        // Predicated region
        $region33: #{tpu_custom_call.1} parent=11 // pred_check
          %p275 = pneg %p187
        $region34: #{tpu_custom_call.1} parent=11 // pred_check_branch
          %277 = sbr.rel (%p275) target = $region36
        $region35: #{tpu_custom_call.1} parent=11 // pred_region
          _
        $region36: #{tpu_custom_call.1} parent=11 // pred_fallthru
          _
      $region12: #{tpu_custom_call.1} parent=5 // pred_fallthru
        _
      %p278 = scmp.lt.s32.totalorder %s21, 4
      // Predicated region
      $region37: #{tpu_custom_call.1} parent=5 // pred_check
        %p279 = pneg %p278
      $region38: #{tpu_custom_call.1} parent=5 // pred_check_branch
        %281 = sbr.rel (%p279) target = $region40
      $region39: #{tpu_custom_call.1} parent=5 // pred_region
        // Predicated region
        $region41: #{tpu_custom_call.1} parent=39 // pred_check
          %p282 = pneg %p55
        $region42: #{tpu_custom_call.1} parent=39 // pred_check_branch
          %284 = sbr.rel (%p282) target = $region44
        $region43: #{tpu_custom_call.1} parent=39 // pred_region
          %s285 = sand.u32 %s45, 1
          %s286 = scalar_lea.sflag [#allocation4], %s285
          %s287 = sand.u32 %s45, 1
          %s288 = smul.addr %s287, 288
          %s289 = scalar_lea.vmem [#allocation3], %s288
          %s291 = ssub.s32 4608, 4608
          %292 = vsyncadd %s286, %s291
          %s293 = smul.addr %s29, 36
          %s294 = smul.addr %s28, 72
          %s295 = sadd.s32 %s293, %s294
          %s296 = smul.addr %s295, 128
          %s297 = scalar_lea.hbm %s0, %s296
          %s298 = sshll.u32 %s289, 4
          %s299 = int_to_ptr.vmem [resolvable:$true] %s298
          %304 = dma.hbm_to_vmem [thread:$0]  %s297, 4608, %s299, %s286, 128, 128, 8
        $region44: #{tpu_custom_call.1} parent=39 // pred_fallthru
          _
      $region40: #{tpu_custom_call.1} parent=5 // pred_fallthru
        _
      %p305 = scmp.le.s32.totalorder 1, %s21
      %p306 = scmp.lt.s32.totalorder %s21, 5
      %p307 = pnand %p305, %p306
      %p308 = pneg %p307
      // Predicated region
      $region45: #{tpu_custom_call.1} parent=5 // pred_check
        _
      $region46: #{tpu_custom_call.1} parent=5 // pred_check_branch
        %310 = sbr.rel (%p307) target = $region48
      $region47: #{tpu_custom_call.1} parent=5 // pred_region
        %s311 = ssub.s32 %s21, 1
        %s312 = sand.u32 %s48, 1
        %s313 = scalar_lea.sflag [#allocation4], %s312
        %s314 = sand.u32 %s48, 1
        %s315 = smul.addr %s314, 288
        %s316 = scalar_lea.vmem [#allocation3], %s315
        // Predicated region
        $region49: #{tpu_custom_call.1} parent=47 // pred_check
          %p317 = pneg %p61
        $region50: #{tpu_custom_call.1} parent=47 // pred_check_branch
          %319 = sbr.rel (%p317) target = $region52
        $region51: #{tpu_custom_call.1} parent=47 // pred_region
          %320 = dma.done %s313, 4608
        $region52: #{tpu_custom_call.1} parent=47 // pred_fallthru
          _
        // Predicated region
        $region53: #{tpu_custom_call.1} parent=47 // pred_check
          %p321 = pneg %p82
        $region54: #{tpu_custom_call.1} parent=47 // pred_check_branch
          %323 = sbr.rel (%p321) target = $region56
        $region55: #{tpu_custom_call.1} parent=47 // pred_region
          %324 = dma.done [#allocation7], 1024
        $region56: #{tpu_custom_call.1} parent=47 // pred_fallthru
          _
        // Predicated region
        $region57: #{tpu_custom_call.1} parent=47 // pred_check
          %p325 = pneg %p124
        $region58: #{tpu_custom_call.1} parent=47 // pred_check_branch
          %327 = sbr.rel (%p325) target = $region60
        $region59: #{tpu_custom_call.1} parent=47 // pred_region
          %328 = dma.done [#allocation7], 640
        $region60: #{tpu_custom_call.1} parent=47 // pred_fallthru
          _
        // Predicated region
        $region61: #{tpu_custom_call.1} parent=47 // pred_check
          %p329 = pneg %p166
        $region62: #{tpu_custom_call.1} parent=47 // pred_check_branch
          %331 = sbr.rel (%p329) target = $region64
        $region63: #{tpu_custom_call.1} parent=47 // pred_region
          %332 = dma.done [#allocation10], 1024
        $region64: #{tpu_custom_call.1} parent=47 // pred_fallthru
          _
        %s333 = sand.u32 %s48, 1
        %s334 = scalar_lea.sflag [#allocation4], %s333
        %s335 = sand.u32 %s48, 1
        %s336 = smul.addr %s335, 288
        %s337 = scalar_lea.vmem [#allocation3], %s336
        %p338 = pneg %p61
        %p339 = pneg %p58
        %p340 = pneg %p82
        %p341 = pneg %p79
        %p342 = pneg %p103
        %p343 = pneg %p100
        %p344 = pneg %p124
        %p345 = pneg %p121
        %p346 = pneg %p145
        %p347 = pneg %p142
        %p348 = pneg %p166
        %p349 = pneg %p163
        %p350 = pneg %p187
        %p351 = pneg %p184
        %p352 = pneg %p215
        %p353 = pneg %p212
        %s354 = sand.u32 %s202, 1
        %s355 = scalar_lea.sflag [#allocation5], %s354
        %s356 = sand.u32 %s202, 1
        %s357 = smul.addr %s356, 128
        %s358 = scalar_lea.vmem [#allocation11], %s357
        %s359 = smul.u32 8, %s31
        %v361 = vld [vmem:[%s316] sm:$0xff]
        %v362 = vld [vmem:[%s316 + $0x8] sm:$0xff]
        %v363 = vld [vmem:[%s316 + $0x10] sm:$0xff]
        %v364 = vld [vmem:[%s316 + $0x18] sm:$0xff]
        %v365 = vld [vmem:[%s316 + $0x20] sm:$0xff]
        %v366 = vld [vmem:[%s316 + $0x28] sm:$0xff]
        %v367 = vld [vmem:[%s316 + $0x30] sm:$0xff]
        %v368 = vld [vmem:[%s316 + $0x38] sm:$0xff]
        %v369 = vld [vmem:[%s316 + $0x40] sm:$0xff]
        %v370 = vld [vmem:[%s316 + $0x48] sm:$0xff]
        %v371 = vld [vmem:[%s316 + $0x50] sm:$0xff]
        %v372 = vld [vmem:[%s316 + $0x58] sm:$0xff]
        %v373 = vld [vmem:[%s316 + $0x60] sm:$0xff]
        %v374 = vld [vmem:[%s316 + $0x68] sm:$0xff]
        %v375 = vld [vmem:[%s316 + $0x70] sm:$0xff]
        %v376 = vld [vmem:[%s316 + $0x78] sm:$0xff]
        %v377 = vld [vmem:[%s316 + $0x80] sm:$0xff]
        %v378 = vld [vmem:[%s316 + $0x88] sm:$0xff]
        %v379 = vld [vmem:[%s316 + $0x90] sm:$0xff]
        %v380 = vld [vmem:[%s316 + $0x98] sm:$0xff]
        %v381 = vld [vmem:[%s316 + $0xa0] sm:$0xff]
        %v382 = vld [vmem:[%s316 + $0xa8] sm:$0xff]
        %v383 = vld [vmem:[%s316 + $0xb0] sm:$0xff]
        %v384 = vld [vmem:[%s316 + $0xb8] sm:$0xff]
        %v385 = vld [vmem:[%s316 + $0xc0] sm:$0xff]
        %v386 = vld [vmem:[%s316 + $0xc8] sm:$0xff]
        %v387 = vld [vmem:[%s316 + $0xd0] sm:$0xff]
        %v388 = vld [vmem:[%s316 + $0xd8] sm:$0xff]
        %v389 = vld [vmem:[%s316 + $0xe0] sm:$0xff]
        %v390 = vld [vmem:[%s316 + $0xe8] sm:$0xff]
        %v391 = vld [vmem:[%s316 + $0xf0] sm:$0xff]
        %v392 = vld [vmem:[%s316 + $0xf8] sm:$0xff]
        %v393 = vld [vmem:[%s316 + $0x100] sm:$0xff]
        %v394 = vld [vmem:[%s316 + $0x108] sm:$0xff]
        %v395 = vld [vmem:[%s316 + $0x110] sm:$0xff]
        %v396 = vld [vmem:[%s316 + $0x118] sm:$0xff]
        %v397 = vpack.c.bf16 %v362, %v361
        %v398 = vpack.c.bf16 %v364, %v363
        %v399 = vpack.c.bf16 %v366, %v365
        %v400 = vpack.c.bf16 %v368, %v367
        %v401 = vpack.c.bf16 %v370, %v369
        %v402 = vpack.c.bf16 %v372, %v371
        %v403 = vpack.c.bf16 %v374, %v373
        %v404 = vpack.c.bf16 %v376, %v375
        %v405 = vpack.c.bf16 %v378, %v377
        %v406 = vpack.c.bf16 %v380, %v379
        %v407 = vpack.c.bf16 %v382, %v381
        %v408 = vpack.c.bf16 %v384, %v383
        %v409 = vpack.c.bf16 %v386, %v385
        %v410 = vpack.c.bf16 %v388, %v387
        %v411 = vpack.c.bf16 %v390, %v389
        %v412 = vpack.c.bf16 %v392, %v391
        %v413 = vpack.c.bf16 %v394, %v393
        %v414 = vpack.c.bf16 %v396, %v395
        %v415 = vld [vmem:[#allocation6] sm:$0xf]
        %v416 = vld [vmem:[#allocation6 + $0x4] sm:$0xf]
        %v417 = vld [vmem:[#allocation6 + $0x8] sm:$0xf]
        %v418 = vld [vmem:[#allocation6 + $0xc] sm:$0xf]
        %v419 = vld [vmem:[#allocation6 + $0x10] sm:$0xf]
        %v420 = vld [vmem:[#allocation6 + $0x14] sm:$0xf]
        %v421 = vld [vmem:[#allocation6 + $0x18] sm:$0xf]
        %v422 = vld [vmem:[#allocation6 + $0x1c] sm:$0xf]
        %v423 = vld [vmem:[#allocation6 + $0x20] sm:$0xf]
        %v424 = vld [vmem:[#allocation6 + $0x24] sm:$0xf]
        %v425 = vld [vmem:[#allocation6 + $0x28] sm:$0xf]
        %v426 = vld [vmem:[#allocation6 + $0x2c] sm:$0xf]
        %v427 = vld [vmem:[#allocation6 + $0x30] sm:$0xf]
        %v428 = vld [vmem:[#allocation6 + $0x34] sm:$0xf]
        %v429 = vld [vmem:[#allocation6 + $0x38] sm:$0xf]
        %v430 = vld [vmem:[#allocation6 + $0x3c] sm:$0xf]
        %v431 = vld [vmem:[%s2] sm:$0x1]
        %v433 = vlaneseq
        %v434 = vshrl.u32 %v433, 7
        %v435 = vsub.s32 0, %v434
        %v436 = vrot.slane %v431, %v435
        %v454 = vunpack.c.l.b16 %v415
        %v455 = vunpack.c.l.b16 %v416
        %v456 = vunpack.c.l.b16 %v417
        %v457 = vunpack.c.l.b16 %v418
        %v458 = vunpack.c.l.b16 %v419
        %v459 = vunpack.c.l.b16 %v420
        %v460 = vunpack.c.l.b16 %v421
        %v461 = vunpack.c.l.b16 %v422
        %v462 = vunpack.c.l.b16 %v423
        %v463 = vunpack.c.l.b16 %v424
        %v464 = vunpack.c.l.b16 %v425
        %v465 = vunpack.c.l.b16 %v426
        %v466 = vunpack.c.l.b16 %v427
        %v467 = vunpack.c.l.b16 %v428
        %v468 = vunpack.c.l.b16 %v429
        %v469 = vunpack.c.l.b16 %v430
        %v470 = vpack.c.b16 %v455, %v454
        %v471 = vpack.c.b16 %v457, %v456
        %v472 = vpack.c.b16 %v459, %v458
        %v473 = vpack.c.b16 %v461, %v460
        %v474 = vpack.c.b16 %v463, %v462
        %v475 = vpack.c.b16 %v465, %v464
        %v476 = vpack.c.b16 %v467, %v466
        %v477 = vpack.c.b16 %v469, %v468
        %486 = vmatprep.subr.bf16.mxu0 0
        %487 = vmatpush1.bf16.msra.mxu0 %v470
        %488 = vmatprep.subr.bf16.mxu0 0
        %489 = vmatpush1.bf16.msra.mxu0 %v471
        %490 = vmatprep.subr.bf16.mxu0 0
        %491 = vmatpush1.bf16.msra.mxu0 %v472
        %492 = vmatprep.subr.bf16.mxu0 0
        %493 = vmatpush1.bf16.msra.mxu0 %v473
        %494 = vmatprep.subr.bf16.mxu0 0
        %495 = vmatpush1.bf16.msra.mxu0 %v474
        %496 = vmatprep.subr.bf16.mxu0 0
        %497 = vmatpush1.bf16.msra.mxu0 %v475
        %498 = vmatprep.subr.bf16.mxu0 0
        %499 = vmatpush1.bf16.msra.mxu0 %v476
        %500 = vmatprep.subr.bf16.mxu0 0
        %501 = vmatpush1.bf16.msra.mxu0 %v477
        %502 = vmatprep.subr.bf16.mxu0 0
        %503 = vmatpush1.bf16.msra.mxu0 0
        %504 = vmatprep.subr.bf16.mxu0 0
        %505 = vmatpush1.bf16.msra.mxu0 0
        %506 = vmatprep.subr.bf16.mxu0 0
        %507 = vmatpush1.bf16.msra.mxu0 0
        %508 = vmatprep.subr.bf16.mxu0 0
        %509 = vmatpush1.bf16.msra.mxu0 0
        %510 = vmatprep.subr.bf16.mxu0 0
        %511 = vmatpush1.bf16.msra.mxu0 0
        %512 = vmatprep.subr.bf16.mxu0 0
        %513 = vmatpush1.bf16.msra.mxu0 0
        %514 = vmatprep.subr.bf16.mxu0 0
        %515 = vmatpush1.bf16.msra.mxu0 0
        %516 = vmatprep.subr.bf16.mxu0 0
        %517 = vmatpush1.bf16.msra.mxu0 0
        %518 = vmatprep.mubr.bf16.mxu0 0
        %519 = vmatmul.mubr.bf16.gmra.mrb[0].mxu0 %v397
        %v520 = vpop.f32.mrb[0].mxu0
        %v521 = vadd.f32 %v436, %v520
        %v522 = vpop.f32.mrb[0].mxu0
        %v523 = vpop.f32.mrb[0].mxu0
        %v524 = vadd.f32 %v436, %v523
        %v525 = vpop.f32.mrb[0].mxu0
        %526 = vmatprep.mubr.bf16.mxu0 0
        %527 = vmatmul.mubr.bf16.gmra.mrb[0].mxu0 %v398
        %v528 = vpop.f32.mrb[0].mxu0
        %v529 = vadd.f32 %v436, %v528
        %v530 = vpop.f32.mrb[0].mxu0
        %v531 = vpop.f32.mrb[0].mxu0
        %v532 = vadd.f32 %v436, %v531
        %v533 = vpop.f32.mrb[0].mxu0
        %534 = vmatprep.mubr.bf16.mxu0 0
        %535 = vmatmul.mubr.bf16.gmra.mrb[0].mxu0 %v399
        %v536 = vpop.f32.mrb[0].mxu0
        %v537 = vadd.f32 %v436, %v536
        %v538 = vpop.f32.mrb[0].mxu0
        %v539 = vpop.f32.mrb[0].mxu0
        %v540 = vadd.f32 %v436, %v539
        %v541 = vpop.f32.mrb[0].mxu0
        %542 = vmatprep.mubr.bf16.mxu0 0
        %543 = vmatmul.mubr.bf16.gmra.mrb[0].mxu0 %v400
        %v544 = vpop.f32.mrb[0].mxu0
        %v545 = vadd.f32 %v436, %v544
        %v546 = vpop.f32.mrb[0].mxu0
        %v547 = vpop.f32.mrb[0].mxu0
        %v548 = vadd.f32 %v436, %v547
        %v549 = vpop.f32.mrb[0].mxu0
        %550 = vmatprep.mubr.bf16.mxu0 0
        %551 = vmatmul.mubr.bf16.gmra.mrb[0].mxu0 %v401
        %v552 = vpop.f32.mrb[0].mxu0
        %v553 = vadd.f32 %v436, %v552
        %v554 = vpop.f32.mrb[0].mxu0
        %v555 = vpop.f32.mrb[0].mxu0
        %v556 = vadd.f32 %v436, %v555
        %v557 = vpop.f32.mrb[0].mxu0
        %558 = vmatprep.mubr.bf16.mxu0 0
        %559 = vmatmul.mubr.bf16.gmra.mrb[0].mxu0 %v402
        %v560 = vpop.f32.mrb[0].mxu0
        %v561 = vadd.f32 %v436, %v560
        %v562 = vpop.f32.mrb[0].mxu0
        %v563 = vpop.f32.mrb[0].mxu0
        %v564 = vadd.f32 %v436, %v563
        %v565 = vpop.f32.mrb[0].mxu0
        %566 = vmatprep.mubr.bf16.mxu0 0
        %567 = vmatmul.mubr.bf16.gmra.mrb[0].mxu0 %v403
        %v568 = vpop.f32.mrb[0].mxu0
        %v569 = vadd.f32 %v436, %v568
        %v570 = vpop.f32.mrb[0].mxu0
        %v571 = vpop.f32.mrb[0].mxu0
        %v572 = vadd.f32 %v436, %v571
        %v573 = vpop.f32.mrb[0].mxu0
        %574 = vmatprep.mubr.bf16.mxu0 0
        %575 = vmatmul.mubr.bf16.gmra.mrb[0].mxu0 %v404
        %v576 = vpop.f32.mrb[0].mxu0
        %v577 = vadd.f32 %v436, %v576
        %v578 = vpop.f32.mrb[0].mxu0
        %v579 = vpop.f32.mrb[0].mxu0
        %v580 = vadd.f32 %v436, %v579
        %v581 = vpop.f32.mrb[0].mxu0
        %582 = vmatprep.mubr.bf16.mxu0 0
        %583 = vmatmul.mubr.bf16.gmra.mrb[0].mxu0 %v405
        %v584 = vpop.f32.mrb[0].mxu0
        %v585 = vadd.f32 %v436, %v584
        %v586 = vpop.f32.mrb[0].mxu0
        %v587 = vpop.f32.mrb[0].mxu0
        %v588 = vadd.f32 %v436, %v587
        %v589 = vpop.f32.mrb[0].mxu0
        %590 = vmatprep.mubr.bf16.mxu0 0
        %591 = vmatmul.mubr.bf16.gmra.mrb[0].mxu0 %v406
        %v592 = vpop.f32.mrb[0].mxu0
        %v593 = vadd.f32 %v436, %v592
        %v594 = vpop.f32.mrb[0].mxu0
        %v595 = vpop.f32.mrb[0].mxu0
        %v596 = vadd.f32 %v436, %v595
        %v597 = vpop.f32.mrb[0].mxu0
        %598 = vmatprep.mubr.bf16.mxu0 0
        %599 = vmatmul.mubr.bf16.gmra.mrb[0].mxu0 %v407
        %v600 = vpop.f32.mrb[0].mxu0
        %v601 = vadd.f32 %v436, %v600
        %v602 = vpop.f32.mrb[0].mxu0
        %v603 = vpop.f32.mrb[0].mxu0
        %v604 = vadd.f32 %v436, %v603
        %v605 = vpop.f32.mrb[0].mxu0
        %606 = vmatprep.mubr.bf16.mxu0 0
        %607 = vmatmul.mubr.bf16.gmra.mrb[0].mxu0 %v408
        %v608 = vpop.f32.mrb[0].mxu0
        %v609 = vadd.f32 %v436, %v608
        %v610 = vpop.f32.mrb[0].mxu0
        %v611 = vpop.f32.mrb[0].mxu0
        %v612 = vadd.f32 %v436, %v611
        %v613 = vpop.f32.mrb[0].mxu0
        %614 = vmatprep.mubr.bf16.mxu0 0
        %615 = vmatmul.mubr.bf16.gmra.mrb[0].mxu0 %v409
        %v616 = vpop.f32.mrb[0].mxu0
        %v617 = vadd.f32 %v436, %v616
        %v618 = vpop.f32.mrb[0].mxu0
        %v619 = vpop.f32.mrb[0].mxu0
        %v620 = vadd.f32 %v436, %v619
        %v621 = vpop.f32.mrb[0].mxu0
        %622 = vmatprep.mubr.bf16.mxu0 0
        %623 = vmatmul.mubr.bf16.gmra.mrb[0].mxu0 %v410
        %v624 = vpop.f32.mrb[0].mxu0
        %v625 = vadd.f32 %v436, %v624
        %v626 = vpop.f32.mrb[0].mxu0
        %v627 = vpop.f32.mrb[0].mxu0
        %v628 = vadd.f32 %v436, %v627
        %v629 = vpop.f32.mrb[0].mxu0
        %630 = vmatprep.mubr.bf16.mxu0 0
        %631 = vmatmul.mubr.bf16.gmra.mrb[0].mxu0 %v411
        %v632 = vpop.f32.mrb[0].mxu0
        %v633 = vadd.f32 %v436, %v632
        %v634 = vpop.f32.mrb[0].mxu0
        %v635 = vpop.f32.mrb[0].mxu0
        %v636 = vadd.f32 %v436, %v635
        %v637 = vpop.f32.mrb[0].mxu0
        %638 = vmatprep.mubr.bf16.mxu0 0
        %639 = vmatmul.mubr.bf16.gmra.mrb[0].mxu0 %v412
        %v640 = vpop.f32.mrb[0].mxu0
        %v641 = vadd.f32 %v436, %v640
        %v642 = vpop.f32.mrb[0].mxu0
        %v643 = vpop.f32.mrb[0].mxu0
        %v644 = vadd.f32 %v436, %v643
        %v645 = vpop.f32.mrb[0].mxu0
        %646 = vmatprep.mubr.bf16.mxu0 0
        %647 = vmatmul.mubr.bf16.gmra.mrb[0].mxu0 %v413
        %v648 = vpop.f32.mrb[0].mxu0
        %v649 = vadd.f32 %v436, %v648
        %v650 = vpop.f32.mrb[0].mxu0
        %v651 = vpop.f32.mrb[0].mxu0
        %v652 = vadd.f32 %v436, %v651
        %v653 = vpop.f32.mrb[0].mxu0
        %654 = vmatprep.mubr.bf16.mxu0 0
        %655 = vmatmul.mubr.bf16.gmra.mrb[0].mxu0 %v414
        %v656 = vpop.f32.mrb[0].mxu0
        %v657 = vadd.f32 %v436, %v656
        %v658 = vpop.f32.mrb[0].mxu0
        %v659 = vpop.f32.mrb[0].mxu0
        %v660 = vadd.f32 %v436, %v659
        %v661 = vpop.f32.mrb[0].mxu0
        %662 = vdwg.mxu0
        %v663 = vmax.f32 %v521, 0.0
        %v664 = vmax.f32 %v524, 0.0
        %v665 = vmax.f32 %v529, 0.0
        %v666 = vmax.f32 %v532, 0.0
        %v667 = vmax.f32 %v537, 0.0
        %v668 = vmax.f32 %v540, 0.0
        %v669 = vmax.f32 %v545, 0.0
        %v670 = vmax.f32 %v548, 0.0
        %v671 = vmax.f32 %v553, 0.0
        %v672 = vmax.f32 %v556, 0.0
        %v673 = vmax.f32 %v561, 0.0
        %v674 = vmax.f32 %v564, 0.0
        %v675 = vmax.f32 %v569, 0.0
        %v676 = vmax.f32 %v572, 0.0
        %v677 = vmax.f32 %v577, 0.0
        %v678 = vmax.f32 %v580, 0.0
        %v679 = vmax.f32 %v585, 0.0
        %v680 = vmax.f32 %v588, 0.0
        %v681 = vmax.f32 %v593, 0.0
        %v682 = vmax.f32 %v596, 0.0
        %v683 = vmax.f32 %v601, 0.0
        %v684 = vmax.f32 %v604, 0.0
        %v685 = vmax.f32 %v609, 0.0
        %v686 = vmax.f32 %v612, 0.0
        %v687 = vmax.f32 %v617, 0.0
        %v688 = vmax.f32 %v620, 0.0
        %v689 = vmax.f32 %v625, 0.0
        %v690 = vmax.f32 %v628, 0.0
        %v691 = vmax.f32 %v633, 0.0
        %v692 = vmax.f32 %v636, 0.0
        %v693 = vmax.f32 %v641, 0.0
        %v694 = vmax.f32 %v644, 0.0
        %v695 = vmax.f32 %v649, 0.0
        %v696 = vmax.f32 %v652, 0.0
        %v697 = vmax.f32 %v657, 0.0
        %v698 = vmax.f32 %v660, 0.0
        %v699 = vmin.f32 %v663, 6.0
        %v700 = vmin.f32 %v664, 6.0
        %v701 = vmin.f32 %v665, 6.0
        %v702 = vmin.f32 %v666, 6.0
        %v703 = vmin.f32 %v667, 6.0
        %v704 = vmin.f32 %v668, 6.0
        %v705 = vmin.f32 %v669, 6.0
        %v706 = vmin.f32 %v670, 6.0
        %v707 = vmin.f32 %v671, 6.0
        %v708 = vmin.f32 %v672, 6.0
        %v709 = vmin.f32 %v673, 6.0
        %v710 = vmin.f32 %v674, 6.0
        %v711 = vmin.f32 %v675, 6.0
        %v712 = vmin.f32 %v676, 6.0
        %v713 = vmin.f32 %v677, 6.0
        %v714 = vmin.f32 %v678, 6.0
        %v715 = vmin.f32 %v679, 6.0
        %v716 = vmin.f32 %v680, 6.0
        %v717 = vmin.f32 %v681, 6.0
        %v718 = vmin.f32 %v682, 6.0
        %v719 = vmin.f32 %v683, 6.0
        %v720 = vmin.f32 %v684, 6.0
        %v721 = vmin.f32 %v685, 6.0
        %v722 = vmin.f32 %v686, 6.0
        %v723 = vmin.f32 %v687, 6.0
        %v724 = vmin.f32 %v688, 6.0
        %v725 = vmin.f32 %v689, 6.0
        %v726 = vmin.f32 %v690, 6.0
        %v727 = vmin.f32 %v691, 6.0
        %v728 = vmin.f32 %v692, 6.0
        %v729 = vmin.f32 %v693, 6.0
        %v730 = vmin.f32 %v694, 6.0
        %v731 = vmin.f32 %v695, 6.0
        %v732 = vmin.f32 %v696, 6.0
        %v733 = vmin.f32 %v697, 6.0
        %v734 = vmin.f32 %v698, 6.0
        %v735 = vlaneseq
        %v736 = vshrl.u32 %v735, 7
        %v737 = vadd.s32 %v736, 8
        %s738 = smul.u32 %s31, 8
        %v739 = vstv %s738
        %v740 = vadd.s32 %v736, %v739
        %v741 = vadd.s32 %v737, %v739
        %v742 = vlaneseq
        %v743 = vand.u32 %v742, 127
        %vm744 = vcmp.ge.s32.totalorder %v740, 2
        %vm745 = vcmp.ge.s32.totalorder %v741, 2
        %vm746 = vcmp.lt.s32.totalorder %v740, 18
        %vm747 = vcmp.lt.s32.totalorder %v741, 18
        %vm748 = vmand %vm744, %vm746
        %vm749 = vmand %vm745, %vm747
        %vm750 = vcmp.ge.s32.totalorder %v743, 2
        %vm751 = vmand %vm748, %vm750
        %vm752 = vmand %vm749, %vm750
        %vm753 = vcmp.lt.s32.totalorder %v743, 18
        %vm754 = vmand %vm751, %vm753
        %vm755 = vmand %vm752, %vm753
        %v756 = vsel %vm754, 1, 0
        %v757 = vsel %vm755, 1, 0
        %v758 = vcvt.s32.f32 %v756
        %v759 = vcvt.s32.f32 %v757
        %v760 = vlaneseq
        %v761 = vshrl.u32 %v760, 7
        %v762 = vsub.s32 0, %v761
        %v763 = vrot.slane %v758, %v762
        %765 = vbcast.lane.b32.xlu0 %v763, 256
        %v766 = vpop.permute.xlu0 %765
        %s768 = sor.u32 256, 8
        %769 = vbcast.lane.b32.xlu0 %v763, %s768
        %v770 = vpop.permute.xlu0 %769
        %s772 = sor.u32 256, 16
        %773 = vbcast.lane.b32.xlu0 %v763, %s772
        %v774 = vpop.permute.xlu0 %773
        %v775 = vlaneseq
        %v776 = vshrl.u32 %v775, 7
        %v777 = vsub.s32 1, %v776
        %v778 = vrot.slane %v758, %v777
        %780 = vbcast.lane.b32.xlu0 %v778, 256
        %v781 = vpop.permute.xlu0 %780
        %s783 = sor.u32 256, 8
        %784 = vbcast.lane.b32.xlu0 %v778, %s783
        %v785 = vpop.permute.xlu0 %784
        %s787 = sor.u32 256, 16
        %788 = vbcast.lane.b32.xlu0 %v778, %s787
        %v789 = vpop.permute.xlu0 %788
        %v790 = vlaneseq
        %v791 = vshrl.u32 %v790, 7
        %v792 = vsub.s32 2, %v791
        %v793 = vrot.slane %v758, %v792
        %795 = vbcast.lane.b32.xlu0 %v793, 256
        %v796 = vpop.permute.xlu0 %795
        %s798 = sor.u32 256, 8
        %799 = vbcast.lane.b32.xlu0 %v793, %s798
        %v800 = vpop.permute.xlu0 %799
        %s802 = sor.u32 256, 16
        %803 = vbcast.lane.b32.xlu0 %v793, %s802
        %v804 = vpop.permute.xlu0 %803
        %v805 = vlaneseq
        %v806 = vshrl.u32 %v805, 7
        %v807 = vsub.s32 3, %v806
        %v808 = vrot.slane %v758, %v807
        %810 = vbcast.lane.b32.xlu0 %v808, 256
        %v811 = vpop.permute.xlu0 %810
        %s813 = sor.u32 256, 8
        %814 = vbcast.lane.b32.xlu0 %v808, %s813
        %v815 = vpop.permute.xlu0 %814
        %s817 = sor.u32 256, 16
        %818 = vbcast.lane.b32.xlu0 %v808, %s817
        %v819 = vpop.permute.xlu0 %818
        %v820 = vlaneseq
        %v821 = vshrl.u32 %v820, 7
        %v822 = vsub.s32 4, %v821
        %v823 = vrot.slane %v758, %v822
        %825 = vbcast.lane.b32.xlu0 %v823, 256
        %v826 = vpop.permute.xlu0 %825
        %s828 = sor.u32 256, 8
        %829 = vbcast.lane.b32.xlu0 %v823, %s828
        %v830 = vpop.permute.xlu0 %829
        %s832 = sor.u32 256, 16
        %833 = vbcast.lane.b32.xlu0 %v823, %s832
        %v834 = vpop.permute.xlu0 %833
        %v835 = vlaneseq
        %v836 = vshrl.u32 %v835, 7
        %v837 = vsub.s32 5, %v836
        %v838 = vrot.slane %v758, %v837
        %840 = vbcast.lane.b32.xlu0 %v838, 256
        %v841 = vpop.permute.xlu0 %840
        %s843 = sor.u32 256, 8
        %844 = vbcast.lane.b32.xlu0 %v838, %s843
        %v845 = vpop.permute.xlu0 %844
        %s847 = sor.u32 256, 16
        %848 = vbcast.lane.b32.xlu0 %v838, %s847
        %v849 = vpop.permute.xlu0 %848
        %v850 = vlaneseq
        %v851 = vshrl.u32 %v850, 7
        %v852 = vsub.s32 6, %v851
        %v853 = vrot.slane %v758, %v852
        %855 = vbcast.lane.b32.xlu0 %v853, 256
        %v856 = vpop.permute.xlu0 %855
        %s858 = sor.u32 256, 8
        %859 = vbcast.lane.b32.xlu0 %v853, %s858
        %v860 = vpop.permute.xlu0 %859
        %s862 = sor.u32 256, 16
        %863 = vbcast.lane.b32.xlu0 %v853, %s862
        %v864 = vpop.permute.xlu0 %863
        %v865 = vlaneseq
        %v866 = vshrl.u32 %v865, 7
        %v867 = vsub.s32 7, %v866
        %v868 = vrot.slane %v758, %v867
        %870 = vbcast.lane.b32.xlu0 %v868, 256
        %v871 = vpop.permute.xlu0 %870
        %s873 = sor.u32 256, 8
        %874 = vbcast.lane.b32.xlu0 %v868, %s873
        %v875 = vpop.permute.xlu0 %874
        %s877 = sor.u32 256, 16
        %878 = vbcast.lane.b32.xlu0 %v868, %s877
        %v879 = vpop.permute.xlu0 %878
        %v880 = vlaneseq
        %v881 = vshrl.u32 %v880, 7
        %v882 = vsub.s32 0, %v881
        %v883 = vrot.slane %v759, %v882
        %885 = vbcast.lane.b32.xlu0 %v883, 256
        %v886 = vpop.permute.xlu0 %885
        %s888 = sor.u32 256, 8
        %889 = vbcast.lane.b32.xlu0 %v883, %s888
        %v890 = vpop.permute.xlu0 %889
        %s892 = sor.u32 256, 16
        %893 = vbcast.lane.b32.xlu0 %v883, %s892
        %v894 = vpop.permute.xlu0 %893
        %v895 = vlaneseq
        %v896 = vshrl.u32 %v895, 7
        %v897 = vsub.s32 1, %v896
        %v898 = vrot.slane %v759, %v897
        %900 = vbcast.lane.b32.xlu0 %v898, 256
        %v901 = vpop.permute.xlu0 %900
        %s903 = sor.u32 256, 8
        %904 = vbcast.lane.b32.xlu0 %v898, %s903
        %v905 = vpop.permute.xlu0 %904
        %s907 = sor.u32 256, 16
        %908 = vbcast.lane.b32.xlu0 %v898, %s907
        %v909 = vpop.permute.xlu0 %908
        %v910 = vlaneseq
        %v911 = vshrl.u32 %v910, 7
        %v912 = vsub.s32 2, %v911
        %v913 = vrot.slane %v759, %v912
        %915 = vbcast.lane.b32.xlu0 %v913, 256
        %v916 = vpop.permute.xlu0 %915
        %s918 = sor.u32 256, 8
        %919 = vbcast.lane.b32.xlu0 %v913, %s918
        %v920 = vpop.permute.xlu0 %919
        %s922 = sor.u32 256, 16
        %923 = vbcast.lane.b32.xlu0 %v913, %s922
        %v924 = vpop.permute.xlu0 %923
        %v925 = vlaneseq
        %v926 = vshrl.u32 %v925, 7
        %v927 = vsub.s32 3, %v926
        %v928 = vrot.slane %v759, %v927
        %930 = vbcast.lane.b32.xlu0 %v928, 256
        %v931 = vpop.permute.xlu0 %930
        %s933 = sor.u32 256, 8
        %934 = vbcast.lane.b32.xlu0 %v928, %s933
        %v935 = vpop.permute.xlu0 %934
        %s937 = sor.u32 256, 16
        %938 = vbcast.lane.b32.xlu0 %v928, %s937
        %v939 = vpop.permute.xlu0 %938
        %v940 = vmul.f32 %v699, %v766
        %v941 = vmul.f32 %v700, %v770
        %v942 = vmul.f32 %v701, %v774
        %v943 = vmul.f32 %v702, %v781
        %v944 = vmul.f32 %v703, %v785
        %v945 = vmul.f32 %v704, %v789
        %v946 = vmul.f32 %v705, %v796
        %v947 = vmul.f32 %v706, %v800
        %v948 = vmul.f32 %v707, %v804
        %v949 = vmul.f32 %v708, %v811
        %v950 = vmul.f32 %v709, %v815
        %v951 = vmul.f32 %v710, %v819
        %v952 = vmul.f32 %v711, %v826
        %v953 = vmul.f32 %v712, %v830
        %v954 = vmul.f32 %v713, %v834
        %v955 = vmul.f32 %v714, %v841
        %v956 = vmul.f32 %v715, %v845
        %v957 = vmul.f32 %v716, %v849
        %v958 = vmul.f32 %v717, %v856
        %v959 = vmul.f32 %v718, %v860
        %v960 = vmul.f32 %v719, %v864
        %v961 = vmul.f32 %v720, %v871
        %v962 = vmul.f32 %v721, %v875
        %v963 = vmul.f32 %v722, %v879
        %v964 = vmul.f32 %v723, %v886
        %v965 = vmul.f32 %v724, %v890
        %v966 = vmul.f32 %v725, %v894
        %v967 = vmul.f32 %v726, %v901
        %v968 = vmul.f32 %v727, %v905
        %v969 = vmul.f32 %v728, %v909
        %v970 = vmul.f32 %v729, %v916
        %v971 = vmul.f32 %v730, %v920
        %v972 = vmul.f32 %v731, %v924
        %v973 = vmul.f32 %v732, %v931
        %v974 = vmul.f32 %v733, %v935
        %v975 = vmul.f32 %v734, %v939
        %976 = vst [vmem:[#allocation2] sm:$0xff] %v940
        %977 = vst [vmem:[#allocation2 + $0x8] sm:$0xff] %v941
        %978 = vst [vmem:[#allocation2 + $0x10] sm:$0xff] %v942
        %979 = vst [vmem:[#allocation2 + $0x18] sm:$0xff] %v943
        %980 = vst [vmem:[#allocation2 + $0x20] sm:$0xff] %v944
        %981 = vst [vmem:[#allocation2 + $0x28] sm:$0xff] %v945
        %982 = vst [vmem:[#allocation2 + $0x30] sm:$0xff] %v946
        %983 = vst [vmem:[#allocation2 + $0x38] sm:$0xff] %v947
        %984 = vst [vmem:[#allocation2 + $0x40] sm:$0xff] %v948
        %985 = vst [vmem:[#allocation2 + $0x48] sm:$0xff] %v949
        %986 = vst [vmem:[#allocation2 + $0x50] sm:$0xff] %v950
        %987 = vst [vmem:[#allocation2 + $0x58] sm:$0xff] %v951
        %988 = vst [vmem:[#allocation2 + $0x60] sm:$0xff] %v952
        %989 = vst [vmem:[#allocation2 + $0x68] sm:$0xff] %v953
        %990 = vst [vmem:[#allocation2 + $0x70] sm:$0xff] %v954
        %991 = vst [vmem:[#allocation2 + $0x78] sm:$0xff] %v955
        %992 = vst [vmem:[#allocation2 + $0x80] sm:$0xff] %v956
        %993 = vst [vmem:[#allocation2 + $0x88] sm:$0xff] %v957
        %994 = vst [vmem:[#allocation2 + $0x90] sm:$0xff] %v958
        %995 = vst [vmem:[#allocation2 + $0x98] sm:$0xff] %v959
        %996 = vst [vmem:[#allocation2 + $0xa0] sm:$0xff] %v960
        %997 = vst [vmem:[#allocation2 + $0xa8] sm:$0xff] %v961
        %998 = vst [vmem:[#allocation2 + $0xb0] sm:$0xff] %v962
        %999 = vst [vmem:[#allocation2 + $0xb8] sm:$0xff] %v963
        %1000 = vst [vmem:[#allocation2 + $0xc0] sm:$0xff] %v964
        %1001 = vst [vmem:[#allocation2 + $0xc8] sm:$0xff] %v965
        %1002 = vst [vmem:[#allocation2 + $0xd0] sm:$0xff] %v966
        %1003 = vst [vmem:[#allocation2 + $0xd8] sm:$0xff] %v967
        %1004 = vst [vmem:[#allocation2 + $0xe0] sm:$0xff] %v968
        %1005 = vst [vmem:[#allocation2 + $0xe8] sm:$0xff] %v969
        %1006 = vst [vmem:[#allocation2 + $0xf0] sm:$0xff] %v970
        %1007 = vst [vmem:[#allocation2 + $0xf8] sm:$0xff] %v971
        %1008 = vst [vmem:[#allocation2 + $0x100] sm:$0xff] %v972
        %1009 = vst [vmem:[#allocation2 + $0x108] sm:$0xff] %v973
        %1010 = vst [vmem:[#allocation2 + $0x110] sm:$0xff] %v974
        %1011 = vst [vmem:[#allocation2 + $0x118] sm:$0xff] %v975
        %v1012 = vld [vmem:[#allocation8] sm:$0x1]
        %v1013 = vld [vmem:[#allocation2] sm:$0xff]
        %v1014 = vld [vmem:[#allocation2 + $0x8] sm:$0xff]
        %v1015 = vld [vmem:[#allocation2 + $0x18] sm:$0xff]
        %v1016 = vld [vmem:[#allocation2 + $0x20] sm:$0xff]
        %v1017 = vld [vmem:[#allocation2 + $0x30] sm:$0xff]
        %v1018 = vld [vmem:[#allocation2 + $0x38] sm:$0xff]
        %v1019 = vld [vmem:[#allocation2 + $0x48] sm:$0xff]
        %v1020 = vld [vmem:[#allocation2 + $0x50] sm:$0xff]
        %v1021 = vld [vmem:[#allocation2 + $0x60] sm:$0xff]
        %v1022 = vld [vmem:[#allocation2 + $0x68] sm:$0xff]
        %v1023 = vld [vmem:[#allocation2 + $0x78] sm:$0xff]
        %v1024 = vld [vmem:[#allocation2 + $0x80] sm:$0xff]
        %v1025 = vld [vmem:[#allocation2 + $0x90] sm:$0xff]
        %v1026 = vld [vmem:[#allocation2 + $0x98] sm:$0xff]
        %v1027 = vld [vmem:[#allocation2 + $0xa8] sm:$0xff]
        %v1028 = vld [vmem:[#allocation2 + $0xb0] sm:$0xff]
        %v1029 = vlaneseq
        %v1030 = vshrl.u32 %v1029, 7
        %v1031 = vsub.s32 0, %v1030
        %v1032 = vrot.slane %v1012, %v1031
        %v1033 = vmul.f32 %v1013, %v1032
        %v1034 = vmul.f32 %v1014, %v1032
        %v1035 = vmul.f32 %v1015, %v1032
        %v1036 = vmul.f32 %v1016, %v1032
        %v1037 = vmul.f32 %v1017, %v1032
        %v1038 = vmul.f32 %v1018, %v1032
        %v1039 = vmul.f32 %v1019, %v1032
        %v1040 = vmul.f32 %v1020, %v1032
        %v1041 = vmul.f32 %v1021, %v1032
        %v1042 = vmul.f32 %v1022, %v1032
        %v1043 = vmul.f32 %v1023, %v1032
        %v1044 = vmul.f32 %v1024, %v1032
        %v1045 = vmul.f32 %v1025, %v1032
        %v1046 = vmul.f32 %v1026, %v1032
        %v1047 = vmul.f32 %v1027, %v1032
        %v1048 = vmul.f32 %v1028, %v1032
        %v1049 = vadd.f32 %v1033, 0.0
        %v1050 = vadd.f32 %v1034, 0.0
        %v1051 = vadd.f32 %v1035, 0.0
        %v1052 = vadd.f32 %v1036, 0.0
        %v1053 = vadd.f32 %v1037, 0.0
        %v1054 = vadd.f32 %v1038, 0.0
        %v1055 = vadd.f32 %v1039, 0.0
        %v1056 = vadd.f32 %v1040, 0.0
        %v1057 = vadd.f32 %v1041, 0.0
        %v1058 = vadd.f32 %v1042, 0.0
        %v1059 = vadd.f32 %v1043, 0.0
        %v1060 = vadd.f32 %v1044, 0.0
        %v1061 = vadd.f32 %v1045, 0.0
        %v1062 = vadd.f32 %v1046, 0.0
        %v1063 = vadd.f32 %v1047, 0.0
        %v1064 = vadd.f32 %v1048, 0.0
        %v1065 = vld [vmem:[#allocation8 + $0x1] sm:$0x1]
        %v1066 = vld [vmem:[#allocation2 + $0x1] sm:$0xff]
        %v1067 = vld [vmem:[#allocation2 + $0x9] sm:$0xff]
        %v1068 = vld [vmem:[#allocation2 + $0x19] sm:$0xff]
        %v1069 = vld [vmem:[#allocation2 + $0x21] sm:$0xff]
        %v1070 = vld [vmem:[#allocation2 + $0x31] sm:$0xff]
        %v1071 = vld [vmem:[#allocation2 + $0x39] sm:$0xff]
        %v1072 = vld [vmem:[#allocation2 + $0x49] sm:$0xff]
        %v1073 = vld [vmem:[#allocation2 + $0x51] sm:$0xff]
        %v1074 = vld [vmem:[#allocation2 + $0x61] sm:$0xff]
        %v1075 = vld [vmem:[#allocation2 + $0x69] sm:$0xff]
        %v1076 = vld [vmem:[#allocation2 + $0x79] sm:$0xff]
        %v1077 = vld [vmem:[#allocation2 + $0x81] sm:$0xff]
        %v1078 = vld [vmem:[#allocation2 + $0x91] sm:$0xff]
        %v1079 = vld [vmem:[#allocation2 + $0x99] sm:$0xff]
        %v1080 = vld [vmem:[#allocation2 + $0xa9] sm:$0xff]
        %v1081 = vld [vmem:[#allocation2 + $0xb1] sm:$0xff]
        %v1082 = vlaneseq
        %v1083 = vshrl.u32 %v1082, 7
        %v1084 = vsub.s32 0, %v1083
        %v1085 = vrot.slane %v1065, %v1084
        %v1086 = vmul.f32 %v1066, %v1085
        %v1087 = vmul.f32 %v1067, %v1085
        %v1088 = vmul.f32 %v1068, %v1085
        %v1089 = vmul.f32 %v1069, %v1085
        %v1090 = vmul.f32 %v1070, %v1085
        %v1091 = vmul.f32 %v1071, %v1085
        %v1092 = vmul.f32 %v1072, %v1085
        %v1093 = vmul.f32 %v1073, %v1085
        %v1094 = vmul.f32 %v1074, %v1085
        %v1095 = vmul.f32 %v1075, %v1085
        %v1096 = vmul.f32 %v1076, %v1085
        %v1097 = vmul.f32 %v1077, %v1085
        %v1098 = vmul.f32 %v1078, %v1085
        %v1099 = vmul.f32 %v1079, %v1085
        %v1100 = vmul.f32 %v1080, %v1085
        %v1101 = vmul.f32 %v1081, %v1085
        %v1102 = vadd.f32 %v1049, %v1086
        %v1103 = vadd.f32 %v1050, %v1087
        %v1104 = vadd.f32 %v1051, %v1088
        %v1105 = vadd.f32 %v1052, %v1089
        %v1106 = vadd.f32 %v1053, %v1090
        %v1107 = vadd.f32 %v1054, %v1091
        %v1108 = vadd.f32 %v1055, %v1092
        %v1109 = vadd.f32 %v1056, %v1093
        %v1110 = vadd.f32 %v1057, %v1094
        %v1111 = vadd.f32 %v1058, %v1095
        %v1112 = vadd.f32 %v1059, %v1096
        %v1113 = vadd.f32 %v1060, %v1097
        %v1114 = vadd.f32 %v1061, %v1098
        %v1115 = vadd.f32 %v1062, %v1099
        %v1116 = vadd.f32 %v1063, %v1100
        %v1117 = vadd.f32 %v1064, %v1101
        %v1118 = vld [vmem:[#allocation8 + $0x2] sm:$0x1]
        %v1119 = vld [vmem:[#allocation2 + $0x2] sm:$0xff]
        %v1120 = vld [vmem:[#allocation2 + $0xa] sm:$0xff]
        %v1121 = vld [vmem:[#allocation2 + $0x1a] sm:$0xff]
        %v1122 = vld [vmem:[#allocation2 + $0x22] sm:$0xff]
        %v1123 = vld [vmem:[#allocation2 + $0x32] sm:$0xff]
        %v1124 = vld [vmem:[#allocation2 + $0x3a] sm:$0xff]
        %v1125 = vld [vmem:[#allocation2 + $0x4a] sm:$0xff]
        %v1126 = vld [vmem:[#allocation2 + $0x52] sm:$0xff]
        %v1127 = vld [vmem:[#allocation2 + $0x62] sm:$0xff]
        %v1128 = vld [vmem:[#allocation2 + $0x6a] sm:$0xff]
        %v1129 = vld [vmem:[#allocation2 + $0x7a] sm:$0xff]
        %v1130 = vld [vmem:[#allocation2 + $0x82] sm:$0xff]
        %v1131 = vld [vmem:[#allocation2 + $0x92] sm:$0xff]
        %v1132 = vld [vmem:[#allocation2 + $0x9a] sm:$0xff]
        %v1133 = vld [vmem:[#allocation2 + $0xaa] sm:$0xff]
        %v1134 = vld [vmem:[#allocation2 + $0xb2] sm:$0xff]
        %v1135 = vlaneseq
        %v1136 = vshrl.u32 %v1135, 7
        %v1137 = vsub.s32 0, %v1136
        %v1138 = vrot.slane %v1118, %v1137
        %v1139 = vmul.f32 %v1119, %v1138
        %v1140 = vmul.f32 %v1120, %v1138
        %v1141 = vmul.f32 %v1121, %v1138
        %v1142 = vmul.f32 %v1122, %v1138
        %v1143 = vmul.f32 %v1123, %v1138
        %v1144 = vmul.f32 %v1124, %v1138
        %v1145 = vmul.f32 %v1125, %v1138
        %v1146 = vmul.f32 %v1126, %v1138
        %v1147 = vmul.f32 %v1127, %v1138
        %v1148 = vmul.f32 %v1128, %v1138
        %v1149 = vmul.f32 %v1129, %v1138
        %v1150 = vmul.f32 %v1130, %v1138
        %v1151 = vmul.f32 %v1131, %v1138
        %v1152 = vmul.f32 %v1132, %v1138
        %v1153 = vmul.f32 %v1133, %v1138
        %v1154 = vmul.f32 %v1134, %v1138
        %v1155 = vadd.f32 %v1102, %v1139
        %v1156 = vadd.f32 %v1103, %v1140
        %v1157 = vadd.f32 %v1104, %v1141
        %v1158 = vadd.f32 %v1105, %v1142
        %v1159 = vadd.f32 %v1106, %v1143
        %v1160 = vadd.f32 %v1107, %v1144
        %v1161 = vadd.f32 %v1108, %v1145
        %v1162 = vadd.f32 %v1109, %v1146
        %v1163 = vadd.f32 %v1110, %v1147
        %v1164 = vadd.f32 %v1111, %v1148
        %v1165 = vadd.f32 %v1112, %v1149
        %v1166 = vadd.f32 %v1113, %v1150
        %v1167 = vadd.f32 %v1114, %v1151
        %v1168 = vadd.f32 %v1115, %v1152
        %v1169 = vadd.f32 %v1116, %v1153
        %v1170 = vadd.f32 %v1117, %v1154
        %v1171 = vld [vmem:[#allocation8 + $0x3] sm:$0x1]
        %v1172 = vld [vmem:[#allocation2 + $0x3] sm:$0xff]
        %v1173 = vld [vmem:[#allocation2 + $0xb] sm:$0xff]
        %v1174 = vld [vmem:[#allocation2 + $0x1b] sm:$0xff]
        %v1175 = vld [vmem:[#allocation2 + $0x23] sm:$0xff]
        %v1176 = vld [vmem:[#allocation2 + $0x33] sm:$0xff]
        %v1177 = vld [vmem:[#allocation2 + $0x3b] sm:$0xff]
        %v1178 = vld [vmem:[#allocation2 + $0x4b] sm:$0xff]
        %v1179 = vld [vmem:[#allocation2 + $0x53] sm:$0xff]
        %v1180 = vld [vmem:[#allocation2 + $0x63] sm:$0xff]
        %v1181 = vld [vmem:[#allocation2 + $0x6b] sm:$0xff]
        %v1182 = vld [vmem:[#allocation2 + $0x7b] sm:$0xff]
        %v1183 = vld [vmem:[#allocation2 + $0x83] sm:$0xff]
        %v1184 = vld [vmem:[#allocation2 + $0x93] sm:$0xff]
        %v1185 = vld [vmem:[#allocation2 + $0x9b] sm:$0xff]
        %v1186 = vld [vmem:[#allocation2 + $0xab] sm:$0xff]
        %v1187 = vld [vmem:[#allocation2 + $0xb3] sm:$0xff]
        %v1188 = vlaneseq
        %v1189 = vshrl.u32 %v1188, 7
        %v1190 = vsub.s32 0, %v1189
        %v1191 = vrot.slane %v1171, %v1190
        %v1192 = vmul.f32 %v1172, %v1191
        %v1193 = vmul.f32 %v1173, %v1191
        %v1194 = vmul.f32 %v1174, %v1191
        %v1195 = vmul.f32 %v1175, %v1191
        %v1196 = vmul.f32 %v1176, %v1191
        %v1197 = vmul.f32 %v1177, %v1191
        %v1198 = vmul.f32 %v1178, %v1191
        %v1199 = vmul.f32 %v1179, %v1191
        %v1200 = vmul.f32 %v1180, %v1191
        %v1201 = vmul.f32 %v1181, %v1191
        %v1202 = vmul.f32 %v1182, %v1191
        %v1203 = vmul.f32 %v1183, %v1191
        %v1204 = vmul.f32 %v1184, %v1191
        %v1205 = vmul.f32 %v1185, %v1191
        %v1206 = vmul.f32 %v1186, %v1191
        %v1207 = vmul.f32 %v1187, %v1191
        %v1208 = vadd.f32 %v1155, %v1192
        %v1209 = vadd.f32 %v1156, %v1193
        %v1210 = vadd.f32 %v1157, %v1194
        %v1211 = vadd.f32 %v1158, %v1195
        %v1212 = vadd.f32 %v1159, %v1196
        %v1213 = vadd.f32 %v1160, %v1197
        %v1214 = vadd.f32 %v1161, %v1198
        %v1215 = vadd.f32 %v1162, %v1199
        %v1216 = vadd.f32 %v1163, %v1200
        %v1217 = vadd.f32 %v1164, %v1201
        %v1218 = vadd.f32 %v1165, %v1202
        %v1219 = vadd.f32 %v1166, %v1203
        %v1220 = vadd.f32 %v1167, %v1204
        %v1221 = vadd.f32 %v1168, %v1205
        %v1222 = vadd.f32 %v1169, %v1206
        %v1223 = vadd.f32 %v1170, %v1207
        %v1224 = vld [vmem:[#allocation8 + $0x4] sm:$0x1]
        %v1225 = vld [vmem:[#allocation2 + $0x4] sm:$0xff]
        %v1226 = vld [vmem:[#allocation2 + $0xc] sm:$0xff]
        %v1227 = vld [vmem:[#allocation2 + $0x1c] sm:$0xff]
        %v1228 = vld [vmem:[#allocation2 + $0x24] sm:$0xff]
        %v1229 = vld [vmem:[#allocation2 + $0x34] sm:$0xff]
        %v1230 = vld [vmem:[#allocation2 + $0x3c] sm:$0xff]
        %v1231 = vld [vmem:[#allocation2 + $0x4c] sm:$0xff]
        %v1232 = vld [vmem:[#allocation2 + $0x54] sm:$0xff]
        %v1233 = vld [vmem:[#allocation2 + $0x64] sm:$0xff]
        %v1234 = vld [vmem:[#allocation2 + $0x6c] sm:$0xff]
        %v1235 = vld [vmem:[#allocation2 + $0x7c] sm:$0xff]
        %v1236 = vld [vmem:[#allocation2 + $0x84] sm:$0xff]
        %v1237 = vld [vmem:[#allocation2 + $0x94] sm:$0xff]
        %v1238 = vld [vmem:[#allocation2 + $0x9c] sm:$0xff]
        %v1239 = vld [vmem:[#allocation2 + $0xac] sm:$0xff]
        %v1240 = vld [vmem:[#allocation2 + $0xb4] sm:$0xff]
        %v1241 = vlaneseq
        %v1242 = vshrl.u32 %v1241, 7
        %v1243 = vsub.s32 0, %v1242
        %v1244 = vrot.slane %v1224, %v1243
        %v1245 = vmul.f32 %v1225, %v1244
        %v1246 = vmul.f32 %v1226, %v1244
        %v1247 = vmul.f32 %v1227, %v1244
        %v1248 = vmul.f32 %v1228, %v1244
        %v1249 = vmul.f32 %v1229, %v1244
        %v1250 = vmul.f32 %v1230, %v1244
        %v1251 = vmul.f32 %v1231, %v1244
        %v1252 = vmul.f32 %v1232, %v1244
        %v1253 = vmul.f32 %v1233, %v1244
        %v1254 = vmul.f32 %v1234, %v1244
        %v1255 = vmul.f32 %v1235, %v1244
        %v1256 = vmul.f32 %v1236, %v1244
        %v1257 = vmul.f32 %v1237, %v1244
        %v1258 = vmul.f32 %v1238, %v1244
        %v1259 = vmul.f32 %v1239, %v1244
        %v1260 = vmul.f32 %v1240, %v1244
        %v1261 = vadd.f32 %v1208, %v1245
        %v1262 = vadd.f32 %v1209, %v1246
        %v1263 = vadd.f32 %v1210, %v1247
        %v1264 = vadd.f32 %v1211, %v1248
        %v1265 = vadd.f32 %v1212, %v1249
        %v1266 = vadd.f32 %v1213, %v1250
        %v1267 = vadd.f32 %v1214, %v1251
        %v1268 = vadd.f32 %v1215, %v1252
        %v1269 = vadd.f32 %v1216, %v1253
        %v1270 = vadd.f32 %v1217, %v1254
        %v1271 = vadd.f32 %v1218, %v1255
        %v1272 = vadd.f32 %v1219, %v1256
        %v1273 = vadd.f32 %v1220, %v1257
        %v1274 = vadd.f32 %v1221, %v1258
        %v1275 = vadd.f32 %v1222, %v1259
        %v1276 = vadd.f32 %v1223, %v1260
        %s1277 = scalar_lea.vmem [#allocation8], 8
        %v1278 = vld [vmem:[%s1277] sm:$0x1]
        %s1279 = scalar_lea.vmem [#allocation2], 24
        %v1280 = vld [vmem:[%s1279] sm:$0xff]
        %v1281 = vld [vmem:[%s1279 + $0x8] sm:$0xff]
        %v1282 = vld [vmem:[%s1279 + $0x18] sm:$0xff]
        %v1283 = vld [vmem:[%s1279 + $0x20] sm:$0xff]
        %v1284 = vld [vmem:[%s1279 + $0x30] sm:$0xff]
        %v1285 = vld [vmem:[%s1279 + $0x38] sm:$0xff]
        %v1286 = vld [vmem:[%s1279 + $0x48] sm:$0xff]
        %v1287 = vld [vmem:[%s1279 + $0x50] sm:$0xff]
        %v1288 = vld [vmem:[%s1279 + $0x60] sm:$0xff]
        %v1289 = vld [vmem:[%s1279 + $0x68] sm:$0xff]
        %v1290 = vld [vmem:[%s1279 + $0x78] sm:$0xff]
        %v1291 = vld [vmem:[%s1279 + $0x80] sm:$0xff]
        %v1292 = vld [vmem:[%s1279 + $0x90] sm:$0xff]
        %v1293 = vld [vmem:[%s1279 + $0x98] sm:$0xff]
        %v1294 = vld [vmem:[%s1279 + $0xa8] sm:$0xff]
        %v1295 = vld [vmem:[%s1279 + $0xb0] sm:$0xff]
        %v1296 = vlaneseq
        %v1297 = vshrl.u32 %v1296, 7
        %v1298 = vsub.s32 0, %v1297
        %v1299 = vrot.slane %v1278, %v1298
        %v1300 = vmul.f32 %v1280, %v1299
        %v1301 = vmul.f32 %v1281, %v1299
        %v1302 = vmul.f32 %v1282, %v1299
        %v1303 = vmul.f32 %v1283, %v1299
        %v1304 = vmul.f32 %v1284, %v1299
        %v1305 = vmul.f32 %v1285, %v1299
        %v1306 = vmul.f32 %v1286, %v1299
        %v1307 = vmul.f32 %v1287, %v1299
        %v1308 = vmul.f32 %v1288, %v1299
        %v1309 = vmul.f32 %v1289, %v1299
        %v1310 = vmul.f32 %v1290, %v1299
        %v1311 = vmul.f32 %v1291, %v1299
        %v1312 = vmul.f32 %v1292, %v1299
        %v1313 = vmul.f32 %v1293, %v1299
        %v1314 = vmul.f32 %v1294, %v1299
        %v1315 = vmul.f32 %v1295, %v1299
        %v1316 = vadd.f32 %v1261, %v1300
        %v1317 = vadd.f32 %v1262, %v1301
        %v1318 = vadd.f32 %v1263, %v1302
        %v1319 = vadd.f32 %v1264, %v1303
        %v1320 = vadd.f32 %v1265, %v1304
        %v1321 = vadd.f32 %v1266, %v1305
        %v1322 = vadd.f32 %v1267, %v1306
        %v1323 = vadd.f32 %v1268, %v1307
        %v1324 = vadd.f32 %v1269, %v1308
        %v1325 = vadd.f32 %v1270, %v1309
        %v1326 = vadd.f32 %v1271, %v1310
        %v1327 = vadd.f32 %v1272, %v1311
        %v1328 = vadd.f32 %v1273, %v1312
        %v1329 = vadd.f32 %v1274, %v1313
        %v1330 = vadd.f32 %v1275, %v1314
        %v1331 = vadd.f32 %v1276, %v1315
        %v1332 = vld [vmem:[%s1277 + $0x1] sm:$0x1]
        %v1333 = vld [vmem:[%s1279 + $0x1] sm:$0xff]
        %v1334 = vld [vmem:[%s1279 + $0x9] sm:$0xff]
        %v1335 = vld [vmem:[%s1279 + $0x19] sm:$0xff]
        %v1336 = vld [vmem:[%s1279 + $0x21] sm:$0xff]
        %v1337 = vld [vmem:[%s1279 + $0x31] sm:$0xff]
        %v1338 = vld [vmem:[%s1279 + $0x39] sm:$0xff]
        %v1339 = vld [vmem:[%s1279 + $0x49] sm:$0xff]
        %v1340 = vld [vmem:[%s1279 + $0x51] sm:$0xff]
        %v1341 = vld [vmem:[%s1279 + $0x61] sm:$0xff]
        %v1342 = vld [vmem:[%s1279 + $0x69] sm:$0xff]
        %v1343 = vld [vmem:[%s1279 + $0x79] sm:$0xff]
        %v1344 = vld [vmem:[%s1279 + $0x81] sm:$0xff]
        %v1345 = vld [vmem:[%s1279 + $0x91] sm:$0xff]
        %v1346 = vld [vmem:[%s1279 + $0x99] sm:$0xff]
        %v1347 = vld [vmem:[%s1279 + $0xa9] sm:$0xff]
        %v1348 = vld [vmem:[%s1279 + $0xb1] sm:$0xff]
        %v1349 = vlaneseq
        %v1350 = vshrl.u32 %v1349, 7
        %v1351 = vsub.s32 0, %v1350
        %v1352 = vrot.slane %v1332, %v1351
        %v1353 = vmul.f32 %v1333, %v1352
        %v1354 = vmul.f32 %v1334, %v1352
        %v1355 = vmul.f32 %v1335, %v1352
        %v1356 = vmul.f32 %v1336, %v1352
        %v1357 = vmul.f32 %v1337, %v1352
        %v1358 = vmul.f32 %v1338, %v1352
        %v1359 = vmul.f32 %v1339, %v1352
        %v1360 = vmul.f32 %v1340, %v1352
        %v1361 = vmul.f32 %v1341, %v1352
        %v1362 = vmul.f32 %v1342, %v1352
        %v1363 = vmul.f32 %v1343, %v1352
        %v1364 = vmul.f32 %v1344, %v1352
        %v1365 = vmul.f32 %v1345, %v1352
        %v1366 = vmul.f32 %v1346, %v1352
        %v1367 = vmul.f32 %v1347, %v1352
        %v1368 = vmul.f32 %v1348, %v1352
        %v1369 = vadd.f32 %v1316, %v1353
        %v1370 = vadd.f32 %v1317, %v1354
        %v1371 = vadd.f32 %v1318, %v1355
        %v1372 = vadd.f32 %v1319, %v1356
        %v1373 = vadd.f32 %v1320, %v1357
        %v1374 = vadd.f32 %v1321, %v1358
        %v1375 = vadd.f32 %v1322, %v1359
        %v1376 = vadd.f32 %v1323, %v1360
        %v1377 = vadd.f32 %v1324, %v1361
        %v1378 = vadd.f32 %v1325, %v1362
        %v1379 = vadd.f32 %v1326, %v1363
        %v1380 = vadd.f32 %v1327, %v1364
        %v1381 = vadd.f32 %v1328, %v1365
        %v1382 = vadd.f32 %v1329, %v1366
        %v1383 = vadd.f32 %v1330, %v1367
        %v1384 = vadd.f32 %v1331, %v1368
        %v1385 = vld [vmem:[%s1277 + $0x2] sm:$0x1]
        %v1386 = vld [vmem:[%s1279 + $0x2] sm:$0xff]
        %v1387 = vld [vmem:[%s1279 + $0xa] sm:$0xff]
        %v1388 = vld [vmem:[%s1279 + $0x1a] sm:$0xff]
        %v1389 = vld [vmem:[%s1279 + $0x22] sm:$0xff]
        %v1390 = vld [vmem:[%s1279 + $0x32] sm:$0xff]
        %v1391 = vld [vmem:[%s1279 + $0x3a] sm:$0xff]
        %v1392 = vld [vmem:[%s1279 + $0x4a] sm:$0xff]
        %v1393 = vld [vmem:[%s1279 + $0x52] sm:$0xff]
        %v1394 = vld [vmem:[%s1279 + $0x62] sm:$0xff]
        %v1395 = vld [vmem:[%s1279 + $0x6a] sm:$0xff]
        %v1396 = vld [vmem:[%s1279 + $0x7a] sm:$0xff]
        %v1397 = vld [vmem:[%s1279 + $0x82] sm:$0xff]
        %v1398 = vld [vmem:[%s1279 + $0x92] sm:$0xff]
        %v1399 = vld [vmem:[%s1279 + $0x9a] sm:$0xff]
        %v1400 = vld [vmem:[%s1279 + $0xaa] sm:$0xff]
        %v1401 = vld [vmem:[%s1279 + $0xb2] sm:$0xff]
        %v1402 = vlaneseq
        %v1403 = vshrl.u32 %v1402, 7
        %v1404 = vsub.s32 0, %v1403
        %v1405 = vrot.slane %v1385, %v1404
        %v1406 = vmul.f32 %v1386, %v1405
        %v1407 = vmul.f32 %v1387, %v1405
        %v1408 = vmul.f32 %v1388, %v1405
        %v1409 = vmul.f32 %v1389, %v1405
        %v1410 = vmul.f32 %v1390, %v1405
        %v1411 = vmul.f32 %v1391, %v1405
        %v1412 = vmul.f32 %v1392, %v1405
        %v1413 = vmul.f32 %v1393, %v1405
        %v1414 = vmul.f32 %v1394, %v1405
        %v1415 = vmul.f32 %v1395, %v1405
        %v1416 = vmul.f32 %v1396, %v1405
        %v1417 = vmul.f32 %v1397, %v1405
        %v1418 = vmul.f32 %v1398, %v1405
        %v1419 = vmul.f32 %v1399, %v1405
        %v1420 = vmul.f32 %v1400, %v1405
        %v1421 = vmul.f32 %v1401, %v1405
        %v1422 = vadd.f32 %v1369, %v1406
        %v1423 = vadd.f32 %v1370, %v1407
        %v1424 = vadd.f32 %v1371, %v1408
        %v1425 = vadd.f32 %v1372, %v1409
        %v1426 = vadd.f32 %v1373, %v1410
        %v1427 = vadd.f32 %v1374, %v1411
        %v1428 = vadd.f32 %v1375, %v1412
        %v1429 = vadd.f32 %v1376, %v1413
        %v1430 = vadd.f32 %v1377, %v1414
        %v1431 = vadd.f32 %v1378, %v1415
        %v1432 = vadd.f32 %v1379, %v1416
        %v1433 = vadd.f32 %v1380, %v1417
        %v1434 = vadd.f32 %v1381, %v1418
        %v1435 = vadd.f32 %v1382, %v1419
        %v1436 = vadd.f32 %v1383, %v1420
        %v1437 = vadd.f32 %v1384, %v1421
        %v1438 = vld [vmem:[%s1277 + $0x3] sm:$0x1]
        %v1439 = vld [vmem:[%s1279 + $0x3] sm:$0xff]
        %v1440 = vld [vmem:[%s1279 + $0xb] sm:$0xff]
        %v1441 = vld [vmem:[%s1279 + $0x1b] sm:$0xff]
        %v1442 = vld [vmem:[%s1279 + $0x23] sm:$0xff]
        %v1443 = vld [vmem:[%s1279 + $0x33] sm:$0xff]
        %v1444 = vld [vmem:[%s1279 + $0x3b] sm:$0xff]
        %v1445 = vld [vmem:[%s1279 + $0x4b] sm:$0xff]
        %v1446 = vld [vmem:[%s1279 + $0x53] sm:$0xff]
        %v1447 = vld [vmem:[%s1279 + $0x63] sm:$0xff]
        %v1448 = vld [vmem:[%s1279 + $0x6b] sm:$0xff]
        %v1449 = vld [vmem:[%s1279 + $0x7b] sm:$0xff]
        %v1450 = vld [vmem:[%s1279 + $0x83] sm:$0xff]
        %v1451 = vld [vmem:[%s1279 + $0x93] sm:$0xff]
        %v1452 = vld [vmem:[%s1279 + $0x9b] sm:$0xff]
        %v1453 = vld [vmem:[%s1279 + $0xab] sm:$0xff]
        %v1454 = vld [vmem:[%s1279 + $0xb3] sm:$0xff]
        %v1455 = vlaneseq
        %v1456 = vshrl.u32 %v1455, 7
        %v1457 = vsub.s32 0, %v1456
        %v1458 = vrot.slane %v1438, %v1457
        %v1459 = vmul.f32 %v1439, %v1458
        %v1460 = vmul.f32 %v1440, %v1458
        %v1461 = vmul.f32 %v1441, %v1458
        %v1462 = vmul.f32 %v1442, %v1458
        %v1463 = vmul.f32 %v1443, %v1458
        %v1464 = vmul.f32 %v1444, %v1458
        %v1465 = vmul.f32 %v1445, %v1458
        %v1466 = vmul.f32 %v1446, %v1458
        %v1467 = vmul.f32 %v1447, %v1458
        %v1468 = vmul.f32 %v1448, %v1458
        %v1469 = vmul.f32 %v1449, %v1458
        %v1470 = vmul.f32 %v1450, %v1458
        %v1471 = vmul.f32 %v1451, %v1458
        %v1472 = vmul.f32 %v1452, %v1458
        %v1473 = vmul.f32 %v1453, %v1458
        %v1474 = vmul.f32 %v1454, %v1458
        %v1475 = vadd.f32 %v1422, %v1459
        %v1476 = vadd.f32 %v1423, %v1460
        %v1477 = vadd.f32 %v1424, %v1461
        %v1478 = vadd.f32 %v1425, %v1462
        %v1479 = vadd.f32 %v1426, %v1463
        %v1480 = vadd.f32 %v1427, %v1464
        %v1481 = vadd.f32 %v1428, %v1465
        %v1482 = vadd.f32 %v1429, %v1466
        %v1483 = vadd.f32 %v1430, %v1467
        %v1484 = vadd.f32 %v1431, %v1468
        %v1485 = vadd.f32 %v1432, %v1469
        %v1486 = vadd.f32 %v1433, %v1470
        %v1487 = vadd.f32 %v1434, %v1471
        %v1488 = vadd.f32 %v1435, %v1472
        %v1489 = vadd.f32 %v1436, %v1473
        %v1490 = vadd.f32 %v1437, %v1474
        %v1491 = vld [vmem:[%s1277 + $0x4] sm:$0x1]
        %v1492 = vld [vmem:[%s1279 + $0x4] sm:$0xff]
        %v1493 = vld [vmem:[%s1279 + $0xc] sm:$0xff]
        %v1494 = vld [vmem:[%s1279 + $0x1c] sm:$0xff]
        %v1495 = vld [vmem:[%s1279 + $0x24] sm:$0xff]
        %v1496 = vld [vmem:[%s1279 + $0x34] sm:$0xff]
        %v1497 = vld [vmem:[%s1279 + $0x3c] sm:$0xff]
        %v1498 = vld [vmem:[%s1279 + $0x4c] sm:$0xff]
        %v1499 = vld [vmem:[%s1279 + $0x54] sm:$0xff]
        %v1500 = vld [vmem:[%s1279 + $0x64] sm:$0xff]
        %v1501 = vld [vmem:[%s1279 + $0x6c] sm:$0xff]
        %v1502 = vld [vmem:[%s1279 + $0x7c] sm:$0xff]
        %v1503 = vld [vmem:[%s1279 + $0x84] sm:$0xff]
        %v1504 = vld [vmem:[%s1279 + $0x94] sm:$0xff]
        %v1505 = vld [vmem:[%s1279 + $0x9c] sm:$0xff]
        %v1506 = vld [vmem:[%s1279 + $0xac] sm:$0xff]
        %v1507 = vld [vmem:[%s1279 + $0xb4] sm:$0xff]
        %v1508 = vlaneseq
        %v1509 = vshrl.u32 %v1508, 7
        %v1510 = vsub.s32 0, %v1509
        %v1511 = vrot.slane %v1491, %v1510
        %v1512 = vmul.f32 %v1492, %v1511
        %v1513 = vmul.f32 %v1493, %v1511
        %v1514 = vmul.f32 %v1494, %v1511
        %v1515 = vmul.f32 %v1495, %v1511
        %v1516 = vmul.f32 %v1496, %v1511
        %v1517 = vmul.f32 %v1497, %v1511
        %v1518 = vmul.f32 %v1498, %v1511
        %v1519 = vmul.f32 %v1499, %v1511
        %v1520 = vmul.f32 %v1500, %v1511
        %v1521 = vmul.f32 %v1501, %v1511
        %v1522 = vmul.f32 %v1502, %v1511
        %v1523 = vmul.f32 %v1503, %v1511
        %v1524 = vmul.f32 %v1504, %v1511
        %v1525 = vmul.f32 %v1505, %v1511
        %v1526 = vmul.f32 %v1506, %v1511
        %v1527 = vmul.f32 %v1507, %v1511
        %v1528 = vadd.f32 %v1475, %v1512
        %v1529 = vadd.f32 %v1476, %v1513
        %v1530 = vadd.f32 %v1477, %v1514
        %v1531 = vadd.f32 %v1478, %v1515
        %v1532 = vadd.f32 %v1479, %v1516
        %v1533 = vadd.f32 %v1480, %v1517
        %v1534 = vadd.f32 %v1481, %v1518
        %v1535 = vadd.f32 %v1482, %v1519
        %v1536 = vadd.f32 %v1483, %v1520
        %v1537 = vadd.f32 %v1484, %v1521
        %v1538 = vadd.f32 %v1485, %v1522
        %v1539 = vadd.f32 %v1486, %v1523
        %v1540 = vadd.f32 %v1487, %v1524
        %v1541 = vadd.f32 %v1488, %v1525
        %v1542 = vadd.f32 %v1489, %v1526
        %v1543 = vadd.f32 %v1490, %v1527
        %s1544 = scalar_lea.vmem [#allocation8], 16
        %v1545 = vld [vmem:[%s1544] sm:$0x1]
        %s1546 = scalar_lea.vmem [#allocation2], 48
        %v1547 = vld [vmem:[%s1546] sm:$0xff]
        %v1548 = vld [vmem:[%s1546 + $0x8] sm:$0xff]
        %v1549 = vld [vmem:[%s1546 + $0x18] sm:$0xff]
        %v1550 = vld [vmem:[%s1546 + $0x20] sm:$0xff]
        %v1551 = vld [vmem:[%s1546 + $0x30] sm:$0xff]
        %v1552 = vld [vmem:[%s1546 + $0x38] sm:$0xff]
        %v1553 = vld [vmem:[%s1546 + $0x48] sm:$0xff]
        %v1554 = vld [vmem:[%s1546 + $0x50] sm:$0xff]
        %v1555 = vld [vmem:[%s1546 + $0x60] sm:$0xff]
        %v1556 = vld [vmem:[%s1546 + $0x68] sm:$0xff]
        %v1557 = vld [vmem:[%s1546 + $0x78] sm:$0xff]
        %v1558 = vld [vmem:[%s1546 + $0x80] sm:$0xff]
        %v1559 = vld [vmem:[%s1546 + $0x90] sm:$0xff]
        %v1560 = vld [vmem:[%s1546 + $0x98] sm:$0xff]
        %v1561 = vld [vmem:[%s1546 + $0xa8] sm:$0xff]
        %v1562 = vld [vmem:[%s1546 + $0xb0] sm:$0xff]
        %v1563 = vlaneseq
        %v1564 = vshrl.u32 %v1563, 7
        %v1565 = vsub.s32 0, %v1564
        %v1566 = vrot.slane %v1545, %v1565
        %v1567 = vmul.f32 %v1547, %v1566
        %v1568 = vmul.f32 %v1548, %v1566
        %v1569 = vmul.f32 %v1549, %v1566
        %v1570 = vmul.f32 %v1550, %v1566
        %v1571 = vmul.f32 %v1551, %v1566
        %v1572 = vmul.f32 %v1552, %v1566
        %v1573 = vmul.f32 %v1553, %v1566
        %v1574 = vmul.f32 %v1554, %v1566
        %v1575 = vmul.f32 %v1555, %v1566
        %v1576 = vmul.f32 %v1556, %v1566
        %v1577 = vmul.f32 %v1557, %v1566
        %v1578 = vmul.f32 %v1558, %v1566
        %v1579 = vmul.f32 %v1559, %v1566
        %v1580 = vmul.f32 %v1560, %v1566
        %v1581 = vmul.f32 %v1561, %v1566
        %v1582 = vmul.f32 %v1562, %v1566
        %v1583 = vadd.f32 %v1528, %v1567
        %v1584 = vadd.f32 %v1529, %v1568
        %v1585 = vadd.f32 %v1530, %v1569
        %v1586 = vadd.f32 %v1531, %v1570
        %v1587 = vadd.f32 %v1532, %v1571
        %v1588 = vadd.f32 %v1533, %v1572
        %v1589 = vadd.f32 %v1534, %v1573
        %v1590 = vadd.f32 %v1535, %v1574
        %v1591 = vadd.f32 %v1536, %v1575
        %v1592 = vadd.f32 %v1537, %v1576
        %v1593 = vadd.f32 %v1538, %v1577
        %v1594 = vadd.f32 %v1539, %v1578
        %v1595 = vadd.f32 %v1540, %v1579
        %v1596 = vadd.f32 %v1541, %v1580
        %v1597 = vadd.f32 %v1542, %v1581
        %v1598 = vadd.f32 %v1543, %v1582
        %v1599 = vld [vmem:[%s1544 + $0x1] sm:$0x1]
        %v1600 = vld [vmem:[%s1546 + $0x1] sm:$0xff]
        %v1601 = vld [vmem:[%s1546 + $0x9] sm:$0xff]
        %v1602 = vld [vmem:[%s1546 + $0x19] sm:$0xff]
        %v1603 = vld [vmem:[%s1546 + $0x21] sm:$0xff]
        %v1604 = vld [vmem:[%s1546 + $0x31] sm:$0xff]
        %v1605 = vld [vmem:[%s1546 + $0x39] sm:$0xff]
        %v1606 = vld [vmem:[%s1546 + $0x49] sm:$0xff]
        %v1607 = vld [vmem:[%s1546 + $0x51] sm:$0xff]
        %v1608 = vld [vmem:[%s1546 + $0x61] sm:$0xff]
        %v1609 = vld [vmem:[%s1546 + $0x69] sm:$0xff]
        %v1610 = vld [vmem:[%s1546 + $0x79] sm:$0xff]
        %v1611 = vld [vmem:[%s1546 + $0x81] sm:$0xff]
        %v1612 = vld [vmem:[%s1546 + $0x91] sm:$0xff]
        %v1613 = vld [vmem:[%s1546 + $0x99] sm:$0xff]
        %v1614 = vld [vmem:[%s1546 + $0xa9] sm:$0xff]
        %v1615 = vld [vmem:[%s1546 + $0xb1] sm:$0xff]
        %v1616 = vlaneseq
        %v1617 = vshrl.u32 %v1616, 7
        %v1618 = vsub.s32 0, %v1617
        %v1619 = vrot.slane %v1599, %v1618
        %v1620 = vmul.f32 %v1600, %v1619
        %v1621 = vmul.f32 %v1601, %v1619
        %v1622 = vmul.f32 %v1602, %v1619
        %v1623 = vmul.f32 %v1603, %v1619
        %v1624 = vmul.f32 %v1604, %v1619
        %v1625 = vmul.f32 %v1605, %v1619
        %v1626 = vmul.f32 %v1606, %v1619
        %v1627 = vmul.f32 %v1607, %v1619
        %v1628 = vmul.f32 %v1608, %v1619
        %v1629 = vmul.f32 %v1609, %v1619
        %v1630 = vmul.f32 %v1610, %v1619
        %v1631 = vmul.f32 %v1611, %v1619
        %v1632 = vmul.f32 %v1612, %v1619
        %v1633 = vmul.f32 %v1613, %v1619
        %v1634 = vmul.f32 %v1614, %v1619
        %v1635 = vmul.f32 %v1615, %v1619
        %v1636 = vadd.f32 %v1583, %v1620
        %v1637 = vadd.f32 %v1584, %v1621
        %v1638 = vadd.f32 %v1585, %v1622
        %v1639 = vadd.f32 %v1586, %v1623
        %v1640 = vadd.f32 %v1587, %v1624
        %v1641 = vadd.f32 %v1588, %v1625
        %v1642 = vadd.f32 %v1589, %v1626
        %v1643 = vadd.f32 %v1590, %v1627
        %v1644 = vadd.f32 %v1591, %v1628
        %v1645 = vadd.f32 %v1592, %v1629
        %v1646 = vadd.f32 %v1593, %v1630
        %v1647 = vadd.f32 %v1594, %v1631
        %v1648 = vadd.f32 %v1595, %v1632
        %v1649 = vadd.f32 %v1596, %v1633
        %v1650 = vadd.f32 %v1597, %v1634
        %v1651 = vadd.f32 %v1598, %v1635
        %v1652 = vld [vmem:[%s1544 + $0x2] sm:$0x1]
        %v1653 = vld [vmem:[%s1546 + $0x2] sm:$0xff]
        %v1654 = vld [vmem:[%s1546 + $0xa] sm:$0xff]
        %v1655 = vld [vmem:[%s1546 + $0x1a] sm:$0xff]
        %v1656 = vld [vmem:[%s1546 + $0x22] sm:$0xff]
        %v1657 = vld [vmem:[%s1546 + $0x32] sm:$0xff]
        %v1658 = vld [vmem:[%s1546 + $0x3a] sm:$0xff]
        %v1659 = vld [vmem:[%s1546 + $0x4a] sm:$0xff]
        %v1660 = vld [vmem:[%s1546 + $0x52] sm:$0xff]
        %v1661 = vld [vmem:[%s1546 + $0x62] sm:$0xff]
        %v1662 = vld [vmem:[%s1546 + $0x6a] sm:$0xff]
        %v1663 = vld [vmem:[%s1546 + $0x7a] sm:$0xff]
        %v1664 = vld [vmem:[%s1546 + $0x82] sm:$0xff]
        %v1665 = vld [vmem:[%s1546 + $0x92] sm:$0xff]
        %v1666 = vld [vmem:[%s1546 + $0x9a] sm:$0xff]
        %v1667 = vld [vmem:[%s1546 + $0xaa] sm:$0xff]
        %v1668 = vld [vmem:[%s1546 + $0xb2] sm:$0xff]
        %v1669 = vlaneseq
        %v1670 = vshrl.u32 %v1669, 7
        %v1671 = vsub.s32 0, %v1670
        %v1672 = vrot.slane %v1652, %v1671
        %v1673 = vmul.f32 %v1653, %v1672
        %v1674 = vmul.f32 %v1654, %v1672
        %v1675 = vmul.f32 %v1655, %v1672
        %v1676 = vmul.f32 %v1656, %v1672
        %v1677 = vmul.f32 %v1657, %v1672
        %v1678 = vmul.f32 %v1658, %v1672
        %v1679 = vmul.f32 %v1659, %v1672
        %v1680 = vmul.f32 %v1660, %v1672
        %v1681 = vmul.f32 %v1661, %v1672
        %v1682 = vmul.f32 %v1662, %v1672
        %v1683 = vmul.f32 %v1663, %v1672
        %v1684 = vmul.f32 %v1664, %v1672
        %v1685 = vmul.f32 %v1665, %v1672
        %v1686 = vmul.f32 %v1666, %v1672
        %v1687 = vmul.f32 %v1667, %v1672
        %v1688 = vmul.f32 %v1668, %v1672
        %v1689 = vadd.f32 %v1636, %v1673
        %v1690 = vadd.f32 %v1637, %v1674
        %v1691 = vadd.f32 %v1638, %v1675
        %v1692 = vadd.f32 %v1639, %v1676
        %v1693 = vadd.f32 %v1640, %v1677
        %v1694 = vadd.f32 %v1641, %v1678
        %v1695 = vadd.f32 %v1642, %v1679
        %v1696 = vadd.f32 %v1643, %v1680
        %v1697 = vadd.f32 %v1644, %v1681
        %v1698 = vadd.f32 %v1645, %v1682
        %v1699 = vadd.f32 %v1646, %v1683
        %v1700 = vadd.f32 %v1647, %v1684
        %v1701 = vadd.f32 %v1648, %v1685
        %v1702 = vadd.f32 %v1649, %v1686
        %v1703 = vadd.f32 %v1650, %v1687
        %v1704 = vadd.f32 %v1651, %v1688
        %v1705 = vld [vmem:[%s1544 + $0x3] sm:$0x1]
        %v1706 = vld [vmem:[%s1546 + $0x3] sm:$0xff]
        %v1707 = vld [vmem:[%s1546 + $0xb] sm:$0xff]
        %v1708 = vld [vmem:[%s1546 + $0x1b] sm:$0xff]
        %v1709 = vld [vmem:[%s1546 + $0x23] sm:$0xff]
        %v1710 = vld [vmem:[%s1546 + $0x33] sm:$0xff]
        %v1711 = vld [vmem:[%s1546 + $0x3b] sm:$0xff]
        %v1712 = vld [vmem:[%s1546 + $0x4b] sm:$0xff]
        %v1713 = vld [vmem:[%s1546 + $0x53] sm:$0xff]
        %v1714 = vld [vmem:[%s1546 + $0x63] sm:$0xff]
        %v1715 = vld [vmem:[%s1546 + $0x6b] sm:$0xff]
        %v1716 = vld [vmem:[%s1546 + $0x7b] sm:$0xff]
        %v1717 = vld [vmem:[%s1546 + $0x83] sm:$0xff]
        %v1718 = vld [vmem:[%s1546 + $0x93] sm:$0xff]
        %v1719 = vld [vmem:[%s1546 + $0x9b] sm:$0xff]
        %v1720 = vld [vmem:[%s1546 + $0xab] sm:$0xff]
        %v1721 = vld [vmem:[%s1546 + $0xb3] sm:$0xff]
        %v1722 = vlaneseq
        %v1723 = vshrl.u32 %v1722, 7
        %v1724 = vsub.s32 0, %v1723
        %v1725 = vrot.slane %v1705, %v1724
        %v1726 = vmul.f32 %v1706, %v1725
        %v1727 = vmul.f32 %v1707, %v1725
        %v1728 = vmul.f32 %v1708, %v1725
        %v1729 = vmul.f32 %v1709, %v1725
        %v1730 = vmul.f32 %v1710, %v1725
        %v1731 = vmul.f32 %v1711, %v1725
        %v1732 = vmul.f32 %v1712, %v1725
        %v1733 = vmul.f32 %v1713, %v1725
        %v1734 = vmul.f32 %v1714, %v1725
        %v1735 = vmul.f32 %v1715, %v1725
        %v1736 = vmul.f32 %v1716, %v1725
        %v1737 = vmul.f32 %v1717, %v1725
        %v1738 = vmul.f32 %v1718, %v1725
        %v1739 = vmul.f32 %v1719, %v1725
        %v1740 = vmul.f32 %v1720, %v1725
        %v1741 = vmul.f32 %v1721, %v1725
        %v1742 = vadd.f32 %v1689, %v1726
        %v1743 = vadd.f32 %v1690, %v1727
        %v1744 = vadd.f32 %v1691, %v1728
        %v1745 = vadd.f32 %v1692, %v1729
        %v1746 = vadd.f32 %v1693, %v1730
        %v1747 = vadd.f32 %v1694, %v1731
        %v1748 = vadd.f32 %v1695, %v1732
        %v1749 = vadd.f32 %v1696, %v1733
        %v1750 = vadd.f32 %v1697, %v1734
        %v1751 = vadd.f32 %v1698, %v1735
        %v1752 = vadd.f32 %v1699, %v1736
        %v1753 = vadd.f32 %v1700, %v1737
        %v1754 = vadd.f32 %v1701, %v1738
        %v1755 = vadd.f32 %v1702, %v1739
        %v1756 = vadd.f32 %v1703, %v1740
        %v1757 = vadd.f32 %v1704, %v1741
        %v1758 = vld [vmem:[%s1544 + $0x4] sm:$0x1]
        %v1759 = vld [vmem:[%s1546 + $0x4] sm:$0xff]
        %v1760 = vld [vmem:[%s1546 + $0xc] sm:$0xff]
        %v1761 = vld [vmem:[%s1546 + $0x1c] sm:$0xff]
        %v1762 = vld [vmem:[%s1546 + $0x24] sm:$0xff]
        %v1763 = vld [vmem:[%s1546 + $0x34] sm:$0xff]
        %v1764 = vld [vmem:[%s1546 + $0x3c] sm:$0xff]
        %v1765 = vld [vmem:[%s1546 + $0x4c] sm:$0xff]
        %v1766 = vld [vmem:[%s1546 + $0x54] sm:$0xff]
        %v1767 = vld [vmem:[%s1546 + $0x64] sm:$0xff]
        %v1768 = vld [vmem:[%s1546 + $0x6c] sm:$0xff]
        %v1769 = vld [vmem:[%s1546 + $0x7c] sm:$0xff]
        %v1770 = vld [vmem:[%s1546 + $0x84] sm:$0xff]
        %v1771 = vld [vmem:[%s1546 + $0x94] sm:$0xff]
        %v1772 = vld [vmem:[%s1546 + $0x9c] sm:$0xff]
        %v1773 = vld [vmem:[%s1546 + $0xac] sm:$0xff]
        %v1774 = vld [vmem:[%s1546 + $0xb4] sm:$0xff]
        %v1775 = vlaneseq
        %v1776 = vshrl.u32 %v1775, 7
        %v1777 = vsub.s32 0, %v1776
        %v1778 = vrot.slane %v1758, %v1777
        %v1779 = vmul.f32 %v1759, %v1778
        %v1780 = vmul.f32 %v1760, %v1778
        %v1781 = vmul.f32 %v1761, %v1778
        %v1782 = vmul.f32 %v1762, %v1778
        %v1783 = vmul.f32 %v1763, %v1778
        %v1784 = vmul.f32 %v1764, %v1778
        %v1785 = vmul.f32 %v1765, %v1778
        %v1786 = vmul.f32 %v1766, %v1778
        %v1787 = vmul.f32 %v1767, %v1778
        %v1788 = vmul.f32 %v1768, %v1778
        %v1789 = vmul.f32 %v1769, %v1778
        %v1790 = vmul.f32 %v1770, %v1778
        %v1791 = vmul.f32 %v1771, %v1778
        %v1792 = vmul.f32 %v1772, %v1778
        %v1793 = vmul.f32 %v1773, %v1778
        %v1794 = vmul.f32 %v1774, %v1778
        %v1795 = vadd.f32 %v1742, %v1779
        %v1796 = vadd.f32 %v1743, %v1780
        %v1797 = vadd.f32 %v1744, %v1781
        %v1798 = vadd.f32 %v1745, %v1782
        %v1799 = vadd.f32 %v1746, %v1783
        %v1800 = vadd.f32 %v1747, %v1784
        %v1801 = vadd.f32 %v1748, %v1785
        %v1802 = vadd.f32 %v1749, %v1786
        %v1803 = vadd.f32 %v1750, %v1787
        %v1804 = vadd.f32 %v1751, %v1788
        %v1805 = vadd.f32 %v1752, %v1789
        %v1806 = vadd.f32 %v1753, %v1790
        %v1807 = vadd.f32 %v1754, %v1791
        %v1808 = vadd.f32 %v1755, %v1792
        %v1809 = vadd.f32 %v1756, %v1793
        %v1810 = vadd.f32 %v1757, %v1794
        %s1811 = scalar_lea.vmem [#allocation8], 24
        %v1812 = vld [vmem:[%s1811] sm:$0x1]
        %s1813 = scalar_lea.vmem [#allocation2], 72
        %v1814 = vld [vmem:[%s1813] sm:$0xff]
        %v1815 = vld [vmem:[%s1813 + $0x8] sm:$0xff]
        %v1816 = vld [vmem:[%s1813 + $0x18] sm:$0xff]
        %v1817 = vld [vmem:[%s1813 + $0x20] sm:$0xff]
        %v1818 = vld [vmem:[%s1813 + $0x30] sm:$0xff]
        %v1819 = vld [vmem:[%s1813 + $0x38] sm:$0xff]
        %v1820 = vld [vmem:[%s1813 + $0x48] sm:$0xff]
        %v1821 = vld [vmem:[%s1813 + $0x50] sm:$0xff]
        %v1822 = vld [vmem:[%s1813 + $0x60] sm:$0xff]
        %v1823 = vld [vmem:[%s1813 + $0x68] sm:$0xff]
        %v1824 = vld [vmem:[%s1813 + $0x78] sm:$0xff]
        %v1825 = vld [vmem:[%s1813 + $0x80] sm:$0xff]
        %v1826 = vld [vmem:[%s1813 + $0x90] sm:$0xff]
        %v1827 = vld [vmem:[%s1813 + $0x98] sm:$0xff]
        %v1828 = vld [vmem:[%s1813 + $0xa8] sm:$0xff]
        %v1829 = vld [vmem:[%s1813 + $0xb0] sm:$0xff]
        %v1830 = vlaneseq
        %v1831 = vshrl.u32 %v1830, 7
        %v1832 = vsub.s32 0, %v1831
        %v1833 = vrot.slane %v1812, %v1832
        %v1834 = vmul.f32 %v1814, %v1833
        %v1835 = vmul.f32 %v1815, %v1833
        %v1836 = vmul.f32 %v1816, %v1833
        %v1837 = vmul.f32 %v1817, %v1833
        %v1838 = vmul.f32 %v1818, %v1833
        %v1839 = vmul.f32 %v1819, %v1833
        %v1840 = vmul.f32 %v1820, %v1833
        %v1841 = vmul.f32 %v1821, %v1833
        %v1842 = vmul.f32 %v1822, %v1833
        %v1843 = vmul.f32 %v1823, %v1833
        %v1844 = vmul.f32 %v1824, %v1833
        %v1845 = vmul.f32 %v1825, %v1833
        %v1846 = vmul.f32 %v1826, %v1833
        %v1847 = vmul.f32 %v1827, %v1833
        %v1848 = vmul.f32 %v1828, %v1833
        %v1849 = vmul.f32 %v1829, %v1833
        %v1850 = vadd.f32 %v1795, %v1834
        %v1851 = vadd.f32 %v1796, %v1835
        %v1852 = vadd.f32 %v1797, %v1836
        %v1853 = vadd.f32 %v1798, %v1837
        %v1854 = vadd.f32 %v1799, %v1838
        %v1855 = vadd.f32 %v1800, %v1839
        %v1856 = vadd.f32 %v1801, %v1840
        %v1857 = vadd.f32 %v1802, %v1841
        %v1858 = vadd.f32 %v1803, %v1842
        %v1859 = vadd.f32 %v1804, %v1843
        %v1860 = vadd.f32 %v1805, %v1844
        %v1861 = vadd.f32 %v1806, %v1845
        %v1862 = vadd.f32 %v1807, %v1846
        %v1863 = vadd.f32 %v1808, %v1847
        %v1864 = vadd.f32 %v1809, %v1848
        %v1865 = vadd.f32 %v1810, %v1849
        %v1866 = vld [vmem:[%s1811 + $0x1] sm:$0x1]
        %v1867 = vld [vmem:[%s1813 + $0x1] sm:$0xff]
        %v1868 = vld [vmem:[%s1813 + $0x9] sm:$0xff]
        %v1869 = vld [vmem:[%s1813 + $0x19] sm:$0xff]
        %v1870 = vld [vmem:[%s1813 + $0x21] sm:$0xff]
        %v1871 = vld [vmem:[%s1813 + $0x31] sm:$0xff]
        %v1872 = vld [vmem:[%s1813 + $0x39] sm:$0xff]
        %v1873 = vld [vmem:[%s1813 + $0x49] sm:$0xff]
        %v1874 = vld [vmem:[%s1813 + $0x51] sm:$0xff]
        %v1875 = vld [vmem:[%s1813 + $0x61] sm:$0xff]
        %v1876 = vld [vmem:[%s1813 + $0x69] sm:$0xff]
        %v1877 = vld [vmem:[%s1813 + $0x79] sm:$0xff]
        %v1878 = vld [vmem:[%s1813 + $0x81] sm:$0xff]
        %v1879 = vld [vmem:[%s1813 + $0x91] sm:$0xff]
        %v1880 = vld [vmem:[%s1813 + $0x99] sm:$0xff]
        %v1881 = vld [vmem:[%s1813 + $0xa9] sm:$0xff]
        %v1882 = vld [vmem:[%s1813 + $0xb1] sm:$0xff]
        %v1883 = vlaneseq
        %v1884 = vshrl.u32 %v1883, 7
        %v1885 = vsub.s32 0, %v1884
        %v1886 = vrot.slane %v1866, %v1885
        %v1887 = vmul.f32 %v1867, %v1886
        %v1888 = vmul.f32 %v1868, %v1886
        %v1889 = vmul.f32 %v1869, %v1886
        %v1890 = vmul.f32 %v1870, %v1886
        %v1891 = vmul.f32 %v1871, %v1886
        %v1892 = vmul.f32 %v1872, %v1886
        %v1893 = vmul.f32 %v1873, %v1886
        %v1894 = vmul.f32 %v1874, %v1886
        %v1895 = vmul.f32 %v1875, %v1886
        %v1896 = vmul.f32 %v1876, %v1886
        %v1897 = vmul.f32 %v1877, %v1886
        %v1898 = vmul.f32 %v1878, %v1886
        %v1899 = vmul.f32 %v1879, %v1886
        %v1900 = vmul.f32 %v1880, %v1886
        %v1901 = vmul.f32 %v1881, %v1886
        %v1902 = vmul.f32 %v1882, %v1886
        %v1903 = vadd.f32 %v1850, %v1887
        %v1904 = vadd.f32 %v1851, %v1888
        %v1905 = vadd.f32 %v1852, %v1889
        %v1906 = vadd.f32 %v1853, %v1890
        %v1907 = vadd.f32 %v1854, %v1891
        %v1908 = vadd.f32 %v1855, %v1892
        %v1909 = vadd.f32 %v1856, %v1893
        %v1910 = vadd.f32 %v1857, %v1894
        %v1911 = vadd.f32 %v1858, %v1895
        %v1912 = vadd.f32 %v1859, %v1896
        %v1913 = vadd.f32 %v1860, %v1897
        %v1914 = vadd.f32 %v1861, %v1898
        %v1915 = vadd.f32 %v1862, %v1899
        %v1916 = vadd.f32 %v1863, %v1900
        %v1917 = vadd.f32 %v1864, %v1901
        %v1918 = vadd.f32 %v1865, %v1902
        %v1919 = vld [vmem:[%s1811 + $0x2] sm:$0x1]
        %v1920 = vld [vmem:[%s1813 + $0x2] sm:$0xff]
        %v1921 = vld [vmem:[%s1813 + $0xa] sm:$0xff]
        %v1922 = vld [vmem:[%s1813 + $0x1a] sm:$0xff]
        %v1923 = vld [vmem:[%s1813 + $0x22] sm:$0xff]
        %v1924 = vld [vmem:[%s1813 + $0x32] sm:$0xff]
        %v1925 = vld [vmem:[%s1813 + $0x3a] sm:$0xff]
        %v1926 = vld [vmem:[%s1813 + $0x4a] sm:$0xff]
        %v1927 = vld [vmem:[%s1813 + $0x52] sm:$0xff]
        %v1928 = vld [vmem:[%s1813 + $0x62] sm:$0xff]
        %v1929 = vld [vmem:[%s1813 + $0x6a] sm:$0xff]
        %v1930 = vld [vmem:[%s1813 + $0x7a] sm:$0xff]
        %v1931 = vld [vmem:[%s1813 + $0x82] sm:$0xff]
        %v1932 = vld [vmem:[%s1813 + $0x92] sm:$0xff]
        %v1933 = vld [vmem:[%s1813 + $0x9a] sm:$0xff]
        %v1934 = vld [vmem:[%s1813 + $0xaa] sm:$0xff]
        %v1935 = vld [vmem:[%s1813 + $0xb2] sm:$0xff]
        %v1936 = vlaneseq
        %v1937 = vshrl.u32 %v1936, 7
        %v1938 = vsub.s32 0, %v1937
        %v1939 = vrot.slane %v1919, %v1938
        %v1940 = vmul.f32 %v1920, %v1939
        %v1941 = vmul.f32 %v1921, %v1939
        %v1942 = vmul.f32 %v1922, %v1939
        %v1943 = vmul.f32 %v1923, %v1939
        %v1944 = vmul.f32 %v1924, %v1939
        %v1945 = vmul.f32 %v1925, %v1939
        %v1946 = vmul.f32 %v1926, %v1939
        %v1947 = vmul.f32 %v1927, %v1939
        %v1948 = vmul.f32 %v1928, %v1939
        %v1949 = vmul.f32 %v1929, %v1939
        %v1950 = vmul.f32 %v1930, %v1939
        %v1951 = vmul.f32 %v1931, %v1939
        %v1952 = vmul.f32 %v1932, %v1939
        %v1953 = vmul.f32 %v1933, %v1939
        %v1954 = vmul.f32 %v1934, %v1939
        %v1955 = vmul.f32 %v1935, %v1939
        %v1956 = vadd.f32 %v1903, %v1940
        %v1957 = vadd.f32 %v1904, %v1941
        %v1958 = vadd.f32 %v1905, %v1942
        %v1959 = vadd.f32 %v1906, %v1943
        %v1960 = vadd.f32 %v1907, %v1944
        %v1961 = vadd.f32 %v1908, %v1945
        %v1962 = vadd.f32 %v1909, %v1946
        %v1963 = vadd.f32 %v1910, %v1947
        %v1964 = vadd.f32 %v1911, %v1948
        %v1965 = vadd.f32 %v1912, %v1949
        %v1966 = vadd.f32 %v1913, %v1950
        %v1967 = vadd.f32 %v1914, %v1951
        %v1968 = vadd.f32 %v1915, %v1952
        %v1969 = vadd.f32 %v1916, %v1953
        %v1970 = vadd.f32 %v1917, %v1954
        %v1971 = vadd.f32 %v1918, %v1955
        %v1972 = vld [vmem:[%s1811 + $0x3] sm:$0x1]
        %v1973 = vld [vmem:[%s1813 + $0x3] sm:$0xff]
        %v1974 = vld [vmem:[%s1813 + $0xb] sm:$0xff]
        %v1975 = vld [vmem:[%s1813 + $0x1b] sm:$0xff]
        %v1976 = vld [vmem:[%s1813 + $0x23] sm:$0xff]
        %v1977 = vld [vmem:[%s1813 + $0x33] sm:$0xff]
        %v1978 = vld [vmem:[%s1813 + $0x3b] sm:$0xff]
        %v1979 = vld [vmem:[%s1813 + $0x4b] sm:$0xff]
        %v1980 = vld [vmem:[%s1813 + $0x53] sm:$0xff]
        %v1981 = vld [vmem:[%s1813 + $0x63] sm:$0xff]
        %v1982 = vld [vmem:[%s1813 + $0x6b] sm:$0xff]
        %v1983 = vld [vmem:[%s1813 + $0x7b] sm:$0xff]
        %v1984 = vld [vmem:[%s1813 + $0x83] sm:$0xff]
        %v1985 = vld [vmem:[%s1813 + $0x93] sm:$0xff]
        %v1986 = vld [vmem:[%s1813 + $0x9b] sm:$0xff]
        %v1987 = vld [vmem:[%s1813 + $0xab] sm:$0xff]
        %v1988 = vld [vmem:[%s1813 + $0xb3] sm:$0xff]
        %v1989 = vlaneseq
        %v1990 = vshrl.u32 %v1989, 7
        %v1991 = vsub.s32 0, %v1990
        %v1992 = vrot.slane %v1972, %v1991
        %v1993 = vmul.f32 %v1973, %v1992
        %v1994 = vmul.f32 %v1974, %v1992
        %v1995 = vmul.f32 %v1975, %v1992
        %v1996 = vmul.f32 %v1976, %v1992
        %v1997 = vmul.f32 %v1977, %v1992
        %v1998 = vmul.f32 %v1978, %v1992
        %v1999 = vmul.f32 %v1979, %v1992
        %v2000 = vmul.f32 %v1980, %v1992
        %v2001 = vmul.f32 %v1981, %v1992
        %v2002 = vmul.f32 %v1982, %v1992
        %v2003 = vmul.f32 %v1983, %v1992
        %v2004 = vmul.f32 %v1984, %v1992
        %v2005 = vmul.f32 %v1985, %v1992
        %v2006 = vmul.f32 %v1986, %v1992
        %v2007 = vmul.f32 %v1987, %v1992
        %v2008 = vmul.f32 %v1988, %v1992
        %v2009 = vadd.f32 %v1956, %v1993
        %v2010 = vadd.f32 %v1957, %v1994
        %v2011 = vadd.f32 %v1958, %v1995
        %v2012 = vadd.f32 %v1959, %v1996
        %v2013 = vadd.f32 %v1960, %v1997
        %v2014 = vadd.f32 %v1961, %v1998
        %v2015 = vadd.f32 %v1962, %v1999
        %v2016 = vadd.f32 %v1963, %v2000
        %v2017 = vadd.f32 %v1964, %v2001
        %v2018 = vadd.f32 %v1965, %v2002
        %v2019 = vadd.f32 %v1966, %v2003
        %v2020 = vadd.f32 %v1967, %v2004
        %v2021 = vadd.f32 %v1968, %v2005
        %v2022 = vadd.f32 %v1969, %v2006
        %v2023 = vadd.f32 %v1970, %v2007
        %v2024 = vadd.f32 %v1971, %v2008
        %v2025 = vld [vmem:[%s1811 + $0x4] sm:$0x1]
        %v2026 = vld [vmem:[%s1813 + $0x4] sm:$0xff]
        %v2027 = vld [vmem:[%s1813 + $0xc] sm:$0xff]
        %v2028 = vld [vmem:[%s1813 + $0x1c] sm:$0xff]
        %v2029 = vld [vmem:[%s1813 + $0x24] sm:$0xff]
        %v2030 = vld [vmem:[%s1813 + $0x34] sm:$0xff]
        %v2031 = vld [vmem:[%s1813 + $0x3c] sm:$0xff]
        %v2032 = vld [vmem:[%s1813 + $0x4c] sm:$0xff]
        %v2033 = vld [vmem:[%s1813 + $0x54] sm:$0xff]
        %v2034 = vld [vmem:[%s1813 + $0x64] sm:$0xff]
        %v2035 = vld [vmem:[%s1813 + $0x6c] sm:$0xff]
        %v2036 = vld [vmem:[%s1813 + $0x7c] sm:$0xff]
        %v2037 = vld [vmem:[%s1813 + $0x84] sm:$0xff]
        %v2038 = vld [vmem:[%s1813 + $0x94] sm:$0xff]
        %v2039 = vld [vmem:[%s1813 + $0x9c] sm:$0xff]
        %v2040 = vld [vmem:[%s1813 + $0xac] sm:$0xff]
        %v2041 = vld [vmem:[%s1813 + $0xb4] sm:$0xff]
        %v2042 = vlaneseq
        %v2043 = vshrl.u32 %v2042, 7
        %v2044 = vsub.s32 0, %v2043
        %v2045 = vrot.slane %v2025, %v2044
        %v2046 = vmul.f32 %v2026, %v2045
        %v2047 = vmul.f32 %v2027, %v2045
        %v2048 = vmul.f32 %v2028, %v2045
        %v2049 = vmul.f32 %v2029, %v2045
        %v2050 = vmul.f32 %v2030, %v2045
        %v2051 = vmul.f32 %v2031, %v2045
        %v2052 = vmul.f32 %v2032, %v2045
        %v2053 = vmul.f32 %v2033, %v2045
        %v2054 = vmul.f32 %v2034, %v2045
        %v2055 = vmul.f32 %v2035, %v2045
        %v2056 = vmul.f32 %v2036, %v2045
        %v2057 = vmul.f32 %v2037, %v2045
        %v2058 = vmul.f32 %v2038, %v2045
        %v2059 = vmul.f32 %v2039, %v2045
        %v2060 = vmul.f32 %v2040, %v2045
        %v2061 = vmul.f32 %v2041, %v2045
        %v2062 = vadd.f32 %v2009, %v2046
        %v2063 = vadd.f32 %v2010, %v2047
        %v2064 = vadd.f32 %v2011, %v2048
        %v2065 = vadd.f32 %v2012, %v2049
        %v2066 = vadd.f32 %v2013, %v2050
        %v2067 = vadd.f32 %v2014, %v2051
        %v2068 = vadd.f32 %v2015, %v2052
        %v2069 = vadd.f32 %v2016, %v2053
        %v2070 = vadd.f32 %v2017, %v2054
        %v2071 = vadd.f32 %v2018, %v2055
        %v2072 = vadd.f32 %v2019, %v2056
        %v2073 = vadd.f32 %v2020, %v2057
        %v2074 = vadd.f32 %v2021, %v2058
        %v2075 = vadd.f32 %v2022, %v2059
        %v2076 = vadd.f32 %v2023, %v2060
        %v2077 = vadd.f32 %v2024, %v2061
        %s2078 = scalar_lea.vmem [#allocation8], 32
        %v2079 = vld [vmem:[%s2078] sm:$0x1]
        %s2080 = scalar_lea.vmem [#allocation2], 96
        %v2081 = vld [vmem:[%s2080] sm:$0xff]
        %v2082 = vld [vmem:[%s2080 + $0x8] sm:$0xff]
        %v2083 = vld [vmem:[%s2080 + $0x18] sm:$0xff]
        %v2084 = vld [vmem:[%s2080 + $0x20] sm:$0xff]
        %v2085 = vld [vmem:[%s2080 + $0x30] sm:$0xff]
        %v2086 = vld [vmem:[%s2080 + $0x38] sm:$0xff]
        %v2087 = vld [vmem:[%s2080 + $0x48] sm:$0xff]
        %v2088 = vld [vmem:[%s2080 + $0x50] sm:$0xff]
        %v2089 = vld [vmem:[%s2080 + $0x60] sm:$0xff]
        %v2090 = vld [vmem:[%s2080 + $0x68] sm:$0xff]
        %v2091 = vld [vmem:[%s2080 + $0x78] sm:$0xff]
        %v2092 = vld [vmem:[%s2080 + $0x80] sm:$0xff]
        %v2093 = vld [vmem:[%s2080 + $0x90] sm:$0xff]
        %v2094 = vld [vmem:[%s2080 + $0x98] sm:$0xff]
        %v2095 = vld [vmem:[%s2080 + $0xa8] sm:$0xff]
        %v2096 = vld [vmem:[%s2080 + $0xb0] sm:$0xff]
        %v2097 = vlaneseq
        %v2098 = vshrl.u32 %v2097, 7
        %v2099 = vsub.s32 0, %v2098
        %v2100 = vrot.slane %v2079, %v2099
        %v2101 = vmul.f32 %v2081, %v2100
        %v2102 = vmul.f32 %v2082, %v2100
        %v2103 = vmul.f32 %v2083, %v2100
        %v2104 = vmul.f32 %v2084, %v2100
        %v2105 = vmul.f32 %v2085, %v2100
        %v2106 = vmul.f32 %v2086, %v2100
        %v2107 = vmul.f32 %v2087, %v2100
        %v2108 = vmul.f32 %v2088, %v2100
        %v2109 = vmul.f32 %v2089, %v2100
        %v2110 = vmul.f32 %v2090, %v2100
        %v2111 = vmul.f32 %v2091, %v2100
        %v2112 = vmul.f32 %v2092, %v2100
        %v2113 = vmul.f32 %v2093, %v2100
        %v2114 = vmul.f32 %v2094, %v2100
        %v2115 = vmul.f32 %v2095, %v2100
        %v2116 = vmul.f32 %v2096, %v2100
        %v2117 = vadd.f32 %v2062, %v2101
        %v2118 = vadd.f32 %v2063, %v2102
        %v2119 = vadd.f32 %v2064, %v2103
        %v2120 = vadd.f32 %v2065, %v2104
        %v2121 = vadd.f32 %v2066, %v2105
        %v2122 = vadd.f32 %v2067, %v2106
        %v2123 = vadd.f32 %v2068, %v2107
        %v2124 = vadd.f32 %v2069, %v2108
        %v2125 = vadd.f32 %v2070, %v2109
        %v2126 = vadd.f32 %v2071, %v2110
        %v2127 = vadd.f32 %v2072, %v2111
        %v2128 = vadd.f32 %v2073, %v2112
        %v2129 = vadd.f32 %v2074, %v2113
        %v2130 = vadd.f32 %v2075, %v2114
        %v2131 = vadd.f32 %v2076, %v2115
        %v2132 = vadd.f32 %v2077, %v2116
        %v2133 = vld [vmem:[%s2078 + $0x1] sm:$0x1]
        %v2134 = vld [vmem:[%s2080 + $0x1] sm:$0xff]
        %v2135 = vld [vmem:[%s2080 + $0x9] sm:$0xff]
        %v2136 = vld [vmem:[%s2080 + $0x19] sm:$0xff]
        %v2137 = vld [vmem:[%s2080 + $0x21] sm:$0xff]
        %v2138 = vld [vmem:[%s2080 + $0x31] sm:$0xff]
        %v2139 = vld [vmem:[%s2080 + $0x39] sm:$0xff]
        %v2140 = vld [vmem:[%s2080 + $0x49] sm:$0xff]
        %v2141 = vld [vmem:[%s2080 + $0x51] sm:$0xff]
        %v2142 = vld [vmem:[%s2080 + $0x61] sm:$0xff]
        %v2143 = vld [vmem:[%s2080 + $0x69] sm:$0xff]
        %v2144 = vld [vmem:[%s2080 + $0x79] sm:$0xff]
        %v2145 = vld [vmem:[%s2080 + $0x81] sm:$0xff]
        %v2146 = vld [vmem:[%s2080 + $0x91] sm:$0xff]
        %v2147 = vld [vmem:[%s2080 + $0x99] sm:$0xff]
        %v2148 = vld [vmem:[%s2080 + $0xa9] sm:$0xff]
        %v2149 = vld [vmem:[%s2080 + $0xb1] sm:$0xff]
        %v2150 = vlaneseq
        %v2151 = vshrl.u32 %v2150, 7
        %v2152 = vsub.s32 0, %v2151
        %v2153 = vrot.slane %v2133, %v2152
        %v2154 = vmul.f32 %v2134, %v2153
        %v2155 = vmul.f32 %v2135, %v2153
        %v2156 = vmul.f32 %v2136, %v2153
        %v2157 = vmul.f32 %v2137, %v2153
        %v2158 = vmul.f32 %v2138, %v2153
        %v2159 = vmul.f32 %v2139, %v2153
        %v2160 = vmul.f32 %v2140, %v2153
        %v2161 = vmul.f32 %v2141, %v2153
        %v2162 = vmul.f32 %v2142, %v2153
        %v2163 = vmul.f32 %v2143, %v2153
        %v2164 = vmul.f32 %v2144, %v2153
        %v2165 = vmul.f32 %v2145, %v2153
        %v2166 = vmul.f32 %v2146, %v2153
        %v2167 = vmul.f32 %v2147, %v2153
        %v2168 = vmul.f32 %v2148, %v2153
        %v2169 = vmul.f32 %v2149, %v2153
        %v2170 = vadd.f32 %v2117, %v2154
        %v2171 = vadd.f32 %v2118, %v2155
        %v2172 = vadd.f32 %v2119, %v2156
        %v2173 = vadd.f32 %v2120, %v2157
        %v2174 = vadd.f32 %v2121, %v2158
        %v2175 = vadd.f32 %v2122, %v2159
        %v2176 = vadd.f32 %v2123, %v2160
        %v2177 = vadd.f32 %v2124, %v2161
        %v2178 = vadd.f32 %v2125, %v2162
        %v2179 = vadd.f32 %v2126, %v2163
        %v2180 = vadd.f32 %v2127, %v2164
        %v2181 = vadd.f32 %v2128, %v2165
        %v2182 = vadd.f32 %v2129, %v2166
        %v2183 = vadd.f32 %v2130, %v2167
        %v2184 = vadd.f32 %v2131, %v2168
        %v2185 = vadd.f32 %v2132, %v2169
        %v2186 = vld [vmem:[%s2078 + $0x2] sm:$0x1]
        %v2187 = vld [vmem:[%s2080 + $0x2] sm:$0xff]
        %v2188 = vld [vmem:[%s2080 + $0xa] sm:$0xff]
        %v2189 = vld [vmem:[%s2080 + $0x1a] sm:$0xff]
        %v2190 = vld [vmem:[%s2080 + $0x22] sm:$0xff]
        %v2191 = vld [vmem:[%s2080 + $0x32] sm:$0xff]
        %v2192 = vld [vmem:[%s2080 + $0x3a] sm:$0xff]
        %v2193 = vld [vmem:[%s2080 + $0x4a] sm:$0xff]
        %v2194 = vld [vmem:[%s2080 + $0x52] sm:$0xff]
        %v2195 = vld [vmem:[%s2080 + $0x62] sm:$0xff]
        %v2196 = vld [vmem:[%s2080 + $0x6a] sm:$0xff]
        %v2197 = vld [vmem:[%s2080 + $0x7a] sm:$0xff]
        %v2198 = vld [vmem:[%s2080 + $0x82] sm:$0xff]
        %v2199 = vld [vmem:[%s2080 + $0x92] sm:$0xff]
        %v2200 = vld [vmem:[%s2080 + $0x9a] sm:$0xff]
        %v2201 = vld [vmem:[%s2080 + $0xaa] sm:$0xff]
        %v2202 = vld [vmem:[%s2080 + $0xb2] sm:$0xff]
        %v2203 = vlaneseq
        %v2204 = vshrl.u32 %v2203, 7
        %v2205 = vsub.s32 0, %v2204
        %v2206 = vrot.slane %v2186, %v2205
        %v2207 = vmul.f32 %v2187, %v2206
        %v2208 = vmul.f32 %v2188, %v2206
        %v2209 = vmul.f32 %v2189, %v2206
        %v2210 = vmul.f32 %v2190, %v2206
        %v2211 = vmul.f32 %v2191, %v2206
        %v2212 = vmul.f32 %v2192, %v2206
        %v2213 = vmul.f32 %v2193, %v2206
        %v2214 = vmul.f32 %v2194, %v2206
        %v2215 = vmul.f32 %v2195, %v2206
        %v2216 = vmul.f32 %v2196, %v2206
        %v2217 = vmul.f32 %v2197, %v2206
        %v2218 = vmul.f32 %v2198, %v2206
        %v2219 = vmul.f32 %v2199, %v2206
        %v2220 = vmul.f32 %v2200, %v2206
        %v2221 = vmul.f32 %v2201, %v2206
        %v2222 = vmul.f32 %v2202, %v2206
        %v2223 = vadd.f32 %v2170, %v2207
        %v2224 = vadd.f32 %v2171, %v2208
        %v2225 = vadd.f32 %v2172, %v2209
        %v2226 = vadd.f32 %v2173, %v2210
        %v2227 = vadd.f32 %v2174, %v2211
        %v2228 = vadd.f32 %v2175, %v2212
        %v2229 = vadd.f32 %v2176, %v2213
        %v2230 = vadd.f32 %v2177, %v2214
        %v2231 = vadd.f32 %v2178, %v2215
        %v2232 = vadd.f32 %v2179, %v2216
        %v2233 = vadd.f32 %v2180, %v2217
        %v2234 = vadd.f32 %v2181, %v2218
        %v2235 = vadd.f32 %v2182, %v2219
        %v2236 = vadd.f32 %v2183, %v2220
        %v2237 = vadd.f32 %v2184, %v2221
        %v2238 = vadd.f32 %v2185, %v2222
        %v2239 = vld [vmem:[%s2078 + $0x3] sm:$0x1]
        %v2240 = vld [vmem:[%s2080 + $0x3] sm:$0xff]
        %v2241 = vld [vmem:[%s2080 + $0xb] sm:$0xff]
        %v2242 = vld [vmem:[%s2080 + $0x1b] sm:$0xff]
        %v2243 = vld [vmem:[%s2080 + $0x23] sm:$0xff]
        %v2244 = vld [vmem:[%s2080 + $0x33] sm:$0xff]
        %v2245 = vld [vmem:[%s2080 + $0x3b] sm:$0xff]
        %v2246 = vld [vmem:[%s2080 + $0x4b] sm:$0xff]
        %v2247 = vld [vmem:[%s2080 + $0x53] sm:$0xff]
        %v2248 = vld [vmem:[%s2080 + $0x63] sm:$0xff]
        %v2249 = vld [vmem:[%s2080 + $0x6b] sm:$0xff]
        %v2250 = vld [vmem:[%s2080 + $0x7b] sm:$0xff]
        %v2251 = vld [vmem:[%s2080 + $0x83] sm:$0xff]
        %v2252 = vld [vmem:[%s2080 + $0x93] sm:$0xff]
        %v2253 = vld [vmem:[%s2080 + $0x9b] sm:$0xff]
        %v2254 = vld [vmem:[%s2080 + $0xab] sm:$0xff]
        %v2255 = vld [vmem:[%s2080 + $0xb3] sm:$0xff]
        %v2256 = vlaneseq
        %v2257 = vshrl.u32 %v2256, 7
        %v2258 = vsub.s32 0, %v2257
        %v2259 = vrot.slane %v2239, %v2258
        %v2260 = vmul.f32 %v2240, %v2259
        %v2261 = vmul.f32 %v2241, %v2259
        %v2262 = vmul.f32 %v2242, %v2259
        %v2263 = vmul.f32 %v2243, %v2259
        %v2264 = vmul.f32 %v2244, %v2259
        %v2265 = vmul.f32 %v2245, %v2259
        %v2266 = vmul.f32 %v2246, %v2259
        %v2267 = vmul.f32 %v2247, %v2259
        %v2268 = vmul.f32 %v2248, %v2259
        %v2269 = vmul.f32 %v2249, %v2259
        %v2270 = vmul.f32 %v2250, %v2259
        %v2271 = vmul.f32 %v2251, %v2259
        %v2272 = vmul.f32 %v2252, %v2259
        %v2273 = vmul.f32 %v2253, %v2259
        %v2274 = vmul.f32 %v2254, %v2259
        %v2275 = vmul.f32 %v2255, %v2259
        %v2276 = vadd.f32 %v2223, %v2260
        %v2277 = vadd.f32 %v2224, %v2261
        %v2278 = vadd.f32 %v2225, %v2262
        %v2279 = vadd.f32 %v2226, %v2263
        %v2280 = vadd.f32 %v2227, %v2264
        %v2281 = vadd.f32 %v2228, %v2265
        %v2282 = vadd.f32 %v2229, %v2266
        %v2283 = vadd.f32 %v2230, %v2267
        %v2284 = vadd.f32 %v2231, %v2268
        %v2285 = vadd.f32 %v2232, %v2269
        %v2286 = vadd.f32 %v2233, %v2270
        %v2287 = vadd.f32 %v2234, %v2271
        %v2288 = vadd.f32 %v2235, %v2272
        %v2289 = vadd.f32 %v2236, %v2273
        %v2290 = vadd.f32 %v2237, %v2274
        %v2291 = vadd.f32 %v2238, %v2275
        %v2292 = vld [vmem:[%s2078 + $0x4] sm:$0x1]
        %v2293 = vld [vmem:[%s2080 + $0x4] sm:$0xff]
        %v2294 = vld [vmem:[%s2080 + $0xc] sm:$0xff]
        %v2295 = vld [vmem:[%s2080 + $0x1c] sm:$0xff]
        %v2296 = vld [vmem:[%s2080 + $0x24] sm:$0xff]
        %v2297 = vld [vmem:[%s2080 + $0x34] sm:$0xff]
        %v2298 = vld [vmem:[%s2080 + $0x3c] sm:$0xff]
        %v2299 = vld [vmem:[%s2080 + $0x4c] sm:$0xff]
        %v2300 = vld [vmem:[%s2080 + $0x54] sm:$0xff]
        %v2301 = vld [vmem:[%s2080 + $0x64] sm:$0xff]
        %v2302 = vld [vmem:[%s2080 + $0x6c] sm:$0xff]
        %v2303 = vld [vmem:[%s2080 + $0x7c] sm:$0xff]
        %v2304 = vld [vmem:[%s2080 + $0x84] sm:$0xff]
        %v2305 = vld [vmem:[%s2080 + $0x94] sm:$0xff]
        %v2306 = vld [vmem:[%s2080 + $0x9c] sm:$0xff]
        %v2307 = vld [vmem:[%s2080 + $0xac] sm:$0xff]
        %v2308 = vld [vmem:[%s2080 + $0xb4] sm:$0xff]
        %v2309 = vlaneseq
        %v2310 = vshrl.u32 %v2309, 7
        %v2311 = vsub.s32 0, %v2310
        %v2312 = vrot.slane %v2292, %v2311
        %v2313 = vmul.f32 %v2293, %v2312
        %v2314 = vmul.f32 %v2294, %v2312
        %v2315 = vmul.f32 %v2295, %v2312
        %v2316 = vmul.f32 %v2296, %v2312
        %v2317 = vmul.f32 %v2297, %v2312
        %v2318 = vmul.f32 %v2298, %v2312
        %v2319 = vmul.f32 %v2299, %v2312
        %v2320 = vmul.f32 %v2300, %v2312
        %v2321 = vmul.f32 %v2301, %v2312
        %v2322 = vmul.f32 %v2302, %v2312
        %v2323 = vmul.f32 %v2303, %v2312
        %v2324 = vmul.f32 %v2304, %v2312
        %v2325 = vmul.f32 %v2305, %v2312
        %v2326 = vmul.f32 %v2306, %v2312
        %v2327 = vmul.f32 %v2307, %v2312
        %v2328 = vmul.f32 %v2308, %v2312
        %v2329 = vadd.f32 %v2276, %v2313
        %v2330 = vadd.f32 %v2277, %v2314
        %v2331 = vadd.f32 %v2278, %v2315
        %v2332 = vadd.f32 %v2279, %v2316
        %v2333 = vadd.f32 %v2280, %v2317
        %v2334 = vadd.f32 %v2281, %v2318
        %v2335 = vadd.f32 %v2282, %v2319
        %v2336 = vadd.f32 %v2283, %v2320
        %v2337 = vadd.f32 %v2284, %v2321
        %v2338 = vadd.f32 %v2285, %v2322
        %v2339 = vadd.f32 %v2286, %v2323
        %v2340 = vadd.f32 %v2287, %v2324
        %v2341 = vadd.f32 %v2288, %v2325
        %v2342 = vadd.f32 %v2289, %v2326
        %v2343 = vadd.f32 %v2290, %v2327
        %v2344 = vadd.f32 %v2291, %v2328
        %v2345 = vld [vmem:[%s4] sm:$0x1]
        %v2347 = vlaneseq
        %v2348 = vshrl.u32 %v2347, 7
        %v2349 = vsub.s32 0, %v2348
        %v2350 = vrot.slane %v2345, %v2349
        %v2352 = vadd.f32 %v2329, %v2350
        %v2353 = vadd.f32 %v2330, %v2350
        %v2354 = vadd.f32 %v2331, %v2350
        %v2355 = vadd.f32 %v2332, %v2350
        %v2356 = vadd.f32 %v2333, %v2350
        %v2357 = vadd.f32 %v2334, %v2350
        %v2358 = vadd.f32 %v2335, %v2350
        %v2359 = vadd.f32 %v2336, %v2350
        %v2360 = vadd.f32 %v2337, %v2350
        %v2361 = vadd.f32 %v2338, %v2350
        %v2362 = vadd.f32 %v2339, %v2350
        %v2363 = vadd.f32 %v2340, %v2350
        %v2364 = vadd.f32 %v2341, %v2350
        %v2365 = vadd.f32 %v2342, %v2350
        %v2366 = vadd.f32 %v2343, %v2350
        %v2367 = vadd.f32 %v2344, %v2350
        %v2368 = vmax.f32 %v2352, 0.0
        %v2369 = vmax.f32 %v2353, 0.0
        %v2370 = vmax.f32 %v2354, 0.0
        %v2371 = vmax.f32 %v2355, 0.0
        %v2372 = vmax.f32 %v2356, 0.0
        %v2373 = vmax.f32 %v2357, 0.0
        %v2374 = vmax.f32 %v2358, 0.0
        %v2375 = vmax.f32 %v2359, 0.0
        %v2376 = vmax.f32 %v2360, 0.0
        %v2377 = vmax.f32 %v2361, 0.0
        %v2378 = vmax.f32 %v2362, 0.0
        %v2379 = vmax.f32 %v2363, 0.0
        %v2380 = vmax.f32 %v2364, 0.0
        %v2381 = vmax.f32 %v2365, 0.0
        %v2382 = vmax.f32 %v2366, 0.0
        %v2383 = vmax.f32 %v2367, 0.0
        %v2384 = vmin.f32 %v2368, 6.0
        %v2385 = vmin.f32 %v2369, 6.0
        %v2386 = vmin.f32 %v2370, 6.0
        %v2387 = vmin.f32 %v2371, 6.0
        %v2388 = vmin.f32 %v2372, 6.0
        %v2389 = vmin.f32 %v2373, 6.0
        %v2390 = vmin.f32 %v2374, 6.0
        %v2391 = vmin.f32 %v2375, 6.0
        %v2392 = vmin.f32 %v2376, 6.0
        %v2393 = vmin.f32 %v2377, 6.0
        %v2394 = vmin.f32 %v2378, 6.0
        %v2395 = vmin.f32 %v2379, 6.0
        %v2396 = vmin.f32 %v2380, 6.0
        %v2397 = vmin.f32 %v2381, 6.0
        %v2398 = vmin.f32 %v2382, 6.0
        %v2399 = vmin.f32 %v2383, 6.0
        %v2400 = vpack.c.bf16 %v2385, %v2384
        %v2401 = vpack.c.bf16 %v2387, %v2386
        %v2402 = vpack.c.bf16 %v2389, %v2388
        %v2403 = vpack.c.bf16 %v2391, %v2390
        %v2404 = vpack.c.bf16 %v2393, %v2392
        %v2405 = vpack.c.bf16 %v2395, %v2394
        %v2406 = vpack.c.bf16 %v2397, %v2396
        %v2407 = vpack.c.bf16 %v2399, %v2398
        %v2408 = vld [vmem:[#allocation9] sm:$0xf]
        %v2409 = vld [vmem:[#allocation9 + $0x4] sm:$0xf]
        %v2410 = vld [vmem:[#allocation9 + $0x8] sm:$0xf]
        %v2411 = vld [vmem:[#allocation9 + $0xc] sm:$0xf]
        %v2412 = vld [vmem:[#allocation9 + $0x10] sm:$0xf]
        %v2413 = vld [vmem:[#allocation9 + $0x14] sm:$0xf]
        %v2414 = vld [vmem:[#allocation9 + $0x18] sm:$0xf]
        %v2415 = vld [vmem:[#allocation9 + $0x1c] sm:$0xf]
        %v2416 = vld [vmem:[#allocation9 + $0x20] sm:$0xf]
        %v2417 = vld [vmem:[#allocation9 + $0x24] sm:$0xf]
        %v2418 = vld [vmem:[#allocation9 + $0x28] sm:$0xf]
        %v2419 = vld [vmem:[#allocation9 + $0x2c] sm:$0xf]
        %v2420 = vld [vmem:[#allocation9 + $0x30] sm:$0xf]
        %v2421 = vld [vmem:[#allocation9 + $0x34] sm:$0xf]
        %v2422 = vld [vmem:[#allocation9 + $0x38] sm:$0xf]
        %v2423 = vld [vmem:[#allocation9 + $0x3c] sm:$0xf]
        %v2424 = vld [vmem:[%s6] sm:$0x1]
        %v2426 = vlaneseq
        %v2427 = vshrl.u32 %v2426, 7
        %v2428 = vsub.s32 0, %v2427
        %v2429 = vrot.slane %v2424, %v2428
        %v2447 = vunpack.c.l.b16 %v2408
        %v2448 = vunpack.c.l.b16 %v2409
        %v2449 = vunpack.c.l.b16 %v2410
        %v2450 = vunpack.c.l.b16 %v2411
        %v2451 = vunpack.c.l.b16 %v2412
        %v2452 = vunpack.c.l.b16 %v2413
        %v2453 = vunpack.c.l.b16 %v2414
        %v2454 = vunpack.c.l.b16 %v2415
        %v2455 = vunpack.c.l.b16 %v2416
        %v2456 = vunpack.c.l.b16 %v2417
        %v2457 = vunpack.c.l.b16 %v2418
        %v2458 = vunpack.c.l.b16 %v2419
        %v2459 = vunpack.c.l.b16 %v2420
        %v2460 = vunpack.c.l.b16 %v2421
        %v2461 = vunpack.c.l.b16 %v2422
        %v2462 = vunpack.c.l.b16 %v2423
        %v2463 = vpack.c.b16 %v2448, %v2447
        %v2464 = vpack.c.b16 %v2450, %v2449
        %v2465 = vpack.c.b16 %v2452, %v2451
        %v2466 = vpack.c.b16 %v2454, %v2453
        %v2467 = vpack.c.b16 %v2456, %v2455
        %v2468 = vpack.c.b16 %v2458, %v2457
        %v2469 = vpack.c.b16 %v2460, %v2459
        %v2470 = vpack.c.b16 %v2462, %v2461
        %2479 = vmatprep.subr.bf16.mxu0 0
        %2480 = vmatpush1.bf16.msra.mxu0 %v2463
        %2481 = vmatprep.subr.bf16.mxu0 0
        %2482 = vmatpush1.bf16.msra.mxu0 %v2464
        %2483 = vmatprep.subr.bf16.mxu0 0
        %2484 = vmatpush1.bf16.msra.mxu0 %v2465
        %2485 = vmatprep.subr.bf16.mxu0 0
        %2486 = vmatpush1.bf16.msra.mxu0 %v2466
        %2487 = vmatprep.subr.bf16.mxu0 0
        %2488 = vmatpush1.bf16.msra.mxu0 %v2467
        %2489 = vmatprep.subr.bf16.mxu0 0
        %2490 = vmatpush1.bf16.msra.mxu0 %v2468
        %2491 = vmatprep.subr.bf16.mxu0 0
        %2492 = vmatpush1.bf16.msra.mxu0 %v2469
        %2493 = vmatprep.subr.bf16.mxu0 0
        %2494 = vmatpush1.bf16.msra.mxu0 %v2470
        %2495 = vmatprep.subr.bf16.mxu0 0
        %2496 = vmatpush1.bf16.msra.mxu0 0
        %2497 = vmatprep.subr.bf16.mxu0 0
        %2498 = vmatpush1.bf16.msra.mxu0 0
        %2499 = vmatprep.subr.bf16.mxu0 0
        %2500 = vmatpush1.bf16.msra.mxu0 0
        %2501 = vmatprep.subr.bf16.mxu0 0
        %2502 = vmatpush1.bf16.msra.mxu0 0
        %2503 = vmatprep.subr.bf16.mxu0 0
        %2504 = vmatpush1.bf16.msra.mxu0 0
        %2505 = vmatprep.subr.bf16.mxu0 0
        %2506 = vmatpush1.bf16.msra.mxu0 0
        %2507 = vmatprep.subr.bf16.mxu0 0
        %2508 = vmatpush1.bf16.msra.mxu0 0
        %2509 = vmatprep.subr.bf16.mxu0 0
        %2510 = vmatpush1.bf16.msra.mxu0 0
        %2511 = vmatprep.mubr.bf16.mxu0 0
        %2512 = vmatmul.mubr.bf16.gmra.mrb[0].mxu0 %v2400
        %v2513 = vpop.f32.mrb[0].mxu0
        %v2514 = vadd.f32 %v2429, %v2513
        %v2515 = vpop.f32.mrb[0].mxu0
        %v2516 = vpop.f32.mrb[0].mxu0
        %v2517 = vadd.f32 %v2429, %v2516
        %v2518 = vpop.f32.mrb[0].mxu0
        %2519 = vmatprep.mubr.bf16.mxu0 0
        %2520 = vmatmul.mubr.bf16.gmra.mrb[0].mxu0 %v2401
        %v2521 = vpop.f32.mrb[0].mxu0
        %v2522 = vadd.f32 %v2429, %v2521
        %v2523 = vpop.f32.mrb[0].mxu0
        %v2524 = vpop.f32.mrb[0].mxu0
        %v2525 = vadd.f32 %v2429, %v2524
        %v2526 = vpop.f32.mrb[0].mxu0
        %2527 = vmatprep.mubr.bf16.mxu0 0
        %2528 = vmatmul.mubr.bf16.gmra.mrb[0].mxu0 %v2402
        %v2529 = vpop.f32.mrb[0].mxu0
        %v2530 = vadd.f32 %v2429, %v2529
        %v2531 = vpop.f32.mrb[0].mxu0
        %v2532 = vpop.f32.mrb[0].mxu0
        %v2533 = vadd.f32 %v2429, %v2532
        %v2534 = vpop.f32.mrb[0].mxu0
        %2535 = vmatprep.mubr.bf16.mxu0 0
        %2536 = vmatmul.mubr.bf16.gmra.mrb[0].mxu0 %v2403
        %v2537 = vpop.f32.mrb[0].mxu0
        %v2538 = vadd.f32 %v2429, %v2537
        %v2539 = vpop.f32.mrb[0].mxu0
        %v2540 = vpop.f32.mrb[0].mxu0
        %v2541 = vadd.f32 %v2429, %v2540
        %v2542 = vpop.f32.mrb[0].mxu0
        %2543 = vmatprep.mubr.bf16.mxu0 0
        %2544 = vmatmul.mubr.bf16.gmra.mrb[0].mxu0 %v2404
        %v2545 = vpop.f32.mrb[0].mxu0
        %v2546 = vadd.f32 %v2429, %v2545
        %v2547 = vpop.f32.mrb[0].mxu0
        %v2548 = vpop.f32.mrb[0].mxu0
        %v2549 = vadd.f32 %v2429, %v2548
        %v2550 = vpop.f32.mrb[0].mxu0
        %2551 = vmatprep.mubr.bf16.mxu0 0
        %2552 = vmatmul.mubr.bf16.gmra.mrb[0].mxu0 %v2405
        %v2553 = vpop.f32.mrb[0].mxu0
        %v2554 = vadd.f32 %v2429, %v2553
        %v2555 = vpop.f32.mrb[0].mxu0
        %v2556 = vpop.f32.mrb[0].mxu0
        %v2557 = vadd.f32 %v2429, %v2556
        %v2558 = vpop.f32.mrb[0].mxu0
        %2559 = vmatprep.mubr.bf16.mxu0 0
        %2560 = vmatmul.mubr.bf16.gmra.mrb[0].mxu0 %v2406
        %v2561 = vpop.f32.mrb[0].mxu0
        %v2562 = vadd.f32 %v2429, %v2561
        %v2563 = vpop.f32.mrb[0].mxu0
        %v2564 = vpop.f32.mrb[0].mxu0
        %v2565 = vadd.f32 %v2429, %v2564
        %v2566 = vpop.f32.mrb[0].mxu0
        %2567 = vmatprep.mubr.bf16.mxu0 0
        %2568 = vmatmul.mubr.bf16.gmra.mrb[0].mxu0 %v2407
        %v2569 = vpop.f32.mrb[0].mxu0
        %v2570 = vadd.f32 %v2429, %v2569
        %v2571 = vpop.f32.mrb[0].mxu0
        %v2572 = vpop.f32.mrb[0].mxu0
        %v2573 = vadd.f32 %v2429, %v2572
        %v2574 = vpop.f32.mrb[0].mxu0
        %2575 = vdwg.mxu0
        %vm2600 = vcmask 1045504
        %v2601 = vrot.slane %v367, 2
        %v2602 = vrot.slane %v368, 2
        %v2603 = vsel %vm2600, %v2601, %v2602
        %v2604 = vrot.slane %v369, 2
        %v2605 = vsel %vm2600, %v2602, %v2604
        %v2606 = vrot.slane %v370, 2
        %v2607 = vrot.slane %v371, 2
        %v2608 = vsel %vm2600, %v2606, %v2607
        %v2609 = vrot.slane %v372, 2
        %v2610 = vsel %vm2600, %v2607, %v2609
        %v2611 = vrot.slane %v373, 2
        %v2612 = vrot.slane %v374, 2
        %v2613 = vsel %vm2600, %v2611, %v2612
        %v2614 = vrot.slane %v375, 2
        %v2615 = vsel %vm2600, %v2612, %v2614
        %v2616 = vrot.slane %v376, 2
        %v2617 = vrot.slane %v377, 2
        %v2618 = vsel %vm2600, %v2616, %v2617
        %v2619 = vrot.slane %v378, 2
        %v2620 = vsel %vm2600, %v2617, %v2619
        %v2621 = vrot.slane %v379, 2
        %v2622 = vrot.slane %v380, 2
        %v2623 = vsel %vm2600, %v2621, %v2622
        %v2624 = vrot.slane %v381, 2
        %v2625 = vsel %vm2600, %v2622, %v2624
        %v2626 = vrot.slane %v382, 2
        %v2627 = vrot.slane %v383, 2
        %v2628 = vsel %vm2600, %v2626, %v2627
        %v2629 = vrot.slane %v384, 2
        %v2630 = vsel %vm2600, %v2627, %v2629
        %v2631 = vrot.slane %v385, 2
        %v2632 = vrot.slane %v386, 2
        %v2633 = vsel %vm2600, %v2631, %v2632
        %v2634 = vrot.slane %v387, 2
        %v2635 = vsel %vm2600, %v2632, %v2634
        %v2636 = vrot.slane %v388, 2
        %v2637 = vrot.slane %v389, 2
        %v2638 = vsel %vm2600, %v2636, %v2637
        %v2639 = vrot.slane %v390, 2
        %v2640 = vsel %vm2600, %v2637, %v2639
        %v2657 = vadd.f32 %v2514, %v2603
        %v2658 = vadd.f32 %v2517, %v2605
        %v2659 = vadd.f32 %v2522, %v2608
        %v2660 = vadd.f32 %v2525, %v2610
        %v2661 = vadd.f32 %v2530, %v2613
        %v2662 = vadd.f32 %v2533, %v2615
        %v2663 = vadd.f32 %v2538, %v2618
        %v2664 = vadd.f32 %v2541, %v2620
        %v2665 = vadd.f32 %v2546, %v2623
        %v2666 = vadd.f32 %v2549, %v2625
        %v2667 = vadd.f32 %v2554, %v2628
        %v2668 = vadd.f32 %v2557, %v2630
        %v2669 = vadd.f32 %v2562, %v2633
        %v2670 = vadd.f32 %v2565, %v2635
        %v2671 = vadd.f32 %v2570, %v2638
        %v2672 = vadd.f32 %v2573, %v2640
        %2673 = vst [vmem:[%s358] sm:$0xff] %v2657
        %2674 = vst [vmem:[%s358 + $0x8] sm:$0xff] %v2658
        %2675 = vst [vmem:[%s358 + $0x10] sm:$0xff] %v2659
        %2676 = vst [vmem:[%s358 + $0x18] sm:$0xff] %v2660
        %2677 = vst [vmem:[%s358 + $0x20] sm:$0xff] %v2661
        %2678 = vst [vmem:[%s358 + $0x28] sm:$0xff] %v2662
        %2679 = vst [vmem:[%s358 + $0x30] sm:$0xff] %v2663
        %2680 = vst [vmem:[%s358 + $0x38] sm:$0xff] %v2664
        %2681 = vst [vmem:[%s358 + $0x40] sm:$0xff] %v2665
        %2682 = vst [vmem:[%s358 + $0x48] sm:$0xff] %v2666
        %2683 = vst [vmem:[%s358 + $0x50] sm:$0xff] %v2667
        %2684 = vst [vmem:[%s358 + $0x58] sm:$0xff] %v2668
        %2685 = vst [vmem:[%s358 + $0x60] sm:$0xff] %v2669
        %2686 = vst [vmem:[%s358 + $0x68] sm:$0xff] %v2670
        %2687 = vst [vmem:[%s358 + $0x70] sm:$0xff] %v2671
        %2688 = vst [vmem:[%s358 + $0x78] sm:$0xff] %v2672
        %s2689 = sand.u32 %s202, 1
        %s2690 = scalar_lea.sflag [#allocation5], %s2689
        %s2691 = sand.u32 %s202, 1
        %s2692 = smul.addr %s2691, 128
        %s2693 = scalar_lea.vmem [#allocation11], %s2692
        // Predicated region
        $region65: #{tpu_custom_call.1} parent=47 // pred_check
          %p2694 = pneg %p212
        $region66: #{tpu_custom_call.1} parent=47 // pred_check_branch
          %2696 = sbr.rel (%p2694) target = $region68
        $region67: #{tpu_custom_call.1} parent=47 // pred_region
          %s2697 = smul.u32 8, %s31
          %s2699 = ssub.s32 2048, 2048
          %2700 = vsyncadd %s2690, %s2699
          %s2701 = smul.addr %s2697, 2
          %s2702 = smul.addr %s30, 32
          %s2703 = sadd.s32 %s2701, %s2702
          %s2704 = smul.addr %s2703, 128
          %s2705 = scalar_lea.hbm %s7, %s2704
          %s2706 = sshll.u32 %s2693, 4
          %s2707 = int_to_ptr.vmem [resolvable:$true] %s2706
          %2712 = dma.vmem_to_hbm [thread:$0]  %s2707, 2048, %s2705, %s2690, 128, 128, 8
        $region68: #{tpu_custom_call.1} parent=47 // pred_fallthru
          _
      $region48: #{tpu_custom_call.1} parent=5 // pred_fallthru
        _
      %p2713 = scmp.le.s32.totalorder 2, %s21
      // Predicated region
      $region69: #{tpu_custom_call.1} parent=5 // pred_check
        %p2714 = pneg %p2713
      $region70: #{tpu_custom_call.1} parent=5 // pred_check_branch
        %2716 = sbr.rel (%p2714) target = $region72
      $region71: #{tpu_custom_call.1} parent=5 // pred_region
        %s2717 = ssub.s32 %s21, 2
        // Predicated region
        $region73: #{tpu_custom_call.1} parent=71 // pred_check
          %p2718 = pneg %p218
        $region74: #{tpu_custom_call.1} parent=71 // pred_check_branch
          %2720 = sbr.rel (%p2718) target = $region76
        $region75: #{tpu_custom_call.1} parent=71 // pred_region
          %s2721 = sand.u32 %s203, 1
          %s2722 = scalar_lea.sflag [#allocation5], %s2721
          %s2723 = sand.u32 %s203, 1
          %s2724 = smul.addr %s2723, 128
          %s2725 = scalar_lea.vmem [#allocation11], %s2724
          %2726 = dma.done %s2722, 2048
        $region76: #{tpu_custom_call.1} parent=71 // pred_fallthru
          _
      $region72: #{tpu_custom_call.1} parent=5 // pred_fallthru
        _
    $region6: #{tpu_custom_call.1} parent=1 // loop_footer
      %s25 = sadd.s32 1, %s21
    $region7: #{tpu_custom_call.1} parent=1 // loop_footer_branch
      %20 = sbr.rel target = $region3
    $region8: #{tpu_custom_call.1} parent=1 // loop_exit
      _
    %2727 = vsyncpa [#allocation4], 1
    %s2728 = scalar_lea.sflag [#allocation4], 1
    %2729 = vsyncpa %s2728, 1
    %2730 = vsyncpa [#allocation7], 1
    %2731 = vsyncpa [#allocation10], 1
    %2732 = vsyncpa [#allocation5], 1
    %s2733 = scalar_lea.sflag [#allocation5], 1
    %2734 = vsyncpa %s2733, 1

</llo_original>
